<compile_context>
chip_gen: v7x
topology: tpu7x:2x2x1
jax: 0.10.0
libtpu: 0.0.40
codegen_flags: <defaults>
</compile_context>

<pallas_src>
import functools
import math

import jax
import jax.numpy as jnp
from jax.experimental import pallas as pl
from jax.experimental.pallas import tpu as pltpu


# ----------------------------------------------------------------------------
# Fused coupling-layer kernel
# ----------------------------------------------------------------------------
def _coupling_flow_kernel(
    x0l_ref, x0c_ref, x0r_ref,          # x0: left-halo / centre / right-halo blocks
    ml_ref, mc_ref, mr_ref,             # mask: left-halo / centre / right-halo blocks
    x1_ref,                             # x1 centre tile
    w_pre_ref, b_pre_ref,               # (H, Ch) bf16, (H, 1) f32
    w_in_ref, b_in_ref,                 # (L, K, 2H, H) bf16, (L, 2H, 1) f32
    w_rs_ref, b_rs_ref,                 # (L, 2H, H) bf16, (L, 2H, 1) f32
    w_post_ref, b_post_ref,             # (Ch, H) bf16, (Ch, 1) f32
    out_ref,                            # (1, Ch, Tt)
    *, tile_t, halo, halo_blk, kernel_size, n_layers, dilations):
  Tt = tile_t
  R = halo
  HB = halo_blk
  K = kernel_size
  cdt = w_pre_ref.dtype                 # bf16 compute dtype for matmul operands

  # Assemble the haloed window  [R left | Tt centre | R right]  along time (lanes).
  if R > 0:
    x0w = jnp.concatenate(
        [x0l_ref[0, :, HB - R:], x0c_ref[0], x0r_ref[0, :, :R]], axis=-1)
    mw = jnp.concatenate(
        [ml_ref[0, :, HB - R:], mc_ref[0], mr_ref[0, :, :R]], axis=-1)
  else:
    x0w = x0c_ref[0]
    mw = mc_ref[0]
  mc = mc_ref[0]                        # (1, Tt) centre mask

  # pre 1x1 conv + mask -> WaveNet input on the full haloed window
  h = jnp.dot(w_pre_ref[...], x0w.astype(cdt),
              preferred_element_type=jnp.float32)
  h = (h + b_pre_ref[...]) * mw         # (H, Tt + 2R), f32

  H = h.shape[0]
  skip = jnp.zeros((H, Tt), jnp.float32)

  # WaveNet stack with a shrinking valid window: after layer i the window loses
  # p_i columns on each side; the centre Tt columns stay exact (no re-padding).
  off = 0
  width = Tt + 2 * R
  for i in range(n_layers):
    d = dilations[i]
    p = (K - 1) * d // 2
    new_width = width - 2 * p
    hb = h.astype(cdt)

    # dilated conv (in_layer): K tap matmuls, f32 accumulation
    acc = jnp.dot(w_in_ref[i, 0], hb[:, 0:new_width],
                  preferred_element_type=jnp.float32)
    for k in range(1, K):
      acc = acc + jnp.dot(w_in_ref[i, k], hb[:, k * d:k * d + new_width],
                          preferred_element_type=jnp.float32)
    acc = acc + b_in_ref[i]                         # (2H, new_width)

    # gated activation (fused_add_tanh_sigmoid_multiply with g=None)
    acts = jnp.tanh(acc[:H]) * jax.nn.sigmoid(acc[H:])

    # 1x1 res/skip conv (last layer's res half is zero-padded at prep time)
    rs = jnp.dot(w_rs_ref[i], acts.astype(cdt),
                 preferred_element_type=jnp.float32) + b_rs_ref[i]

    off += p
    if i < n_layers - 1:
      h = (h[:, p:p + new_width] + rs[:H]) * mw[:, off:off + new_width]
    c0 = R - off
    skip = skip + rs[H:, c0:c0 + Tt]
    width = new_width

  # post 1x1 conv + affine update of x1 (mean_only -> exp(logs) == 1)
  skip = skip * mc
  m = jnp.dot(w_post_ref[...], skip.astype(cdt),
              preferred_element_type=jnp.float32) + b_post_ref[...]
  m = m * mc
  out_ref[0] = (m + x1_ref[0] * mc).astype(out_ref.dtype)


# ----------------------------------------------------------------------------
# Wrappers
# ----------------------------------------------------------------------------
def coupling_layer_forward(packed, x0, x1, x_mask, *, kernel_size,
                           dilation_rate, n_layers, tile_t=512):
  """One ResidualCouplingLayer (forward).  x0/x1: (B, C/2, T), x_mask: (B, 1, T)."""
  B, Ch, T = x0.shape
  dilations = tuple(dilation_rate ** i for i in range(n_layers))
  R = sum((kernel_size - 1) * d // 2 for d in dilations)     # total conv halo
  HB = 128 * pl.cdiv(max(R, 1), 128)                         # halo block (>= R, 128-aligned)

  # time tile: multiple of 128, >= halo block, <= tile_t, multiple of HB
  Tt = 128 * max(1, min(pl.cdiv(tile_t, 128), pl.cdiv(T, 128)))
  Tt = max(Tt, HB)
  Tt = HB * pl.cdiv(Tt, HB)
  NT = pl.cdiv(T, Tt)
  Tc = NT * Tt
  TB = Tt // HB                                              # halo blocks per tile

  # pad by one full tile on each side so halo/centre BlockSpecs are always in range;
  # padded zeros (x0=0, mask=0) reproduce the convs' zero padding exactly.
  x0_p = jnp.pad(x0, ((0, 0), (0, 0), (Tt, Tc - T + Tt)))
  m_p = jnp.pad(x_mask, ((0, 0), (0, 0), (Tt, Tc - T + Tt)))
  x1_c = jnp.pad(x1, ((0, 0), (0, 0), (0, Tc - T)))

  kernel = functools.partial(
      _coupling_flow_kernel, tile_t=Tt, halo=R, halo_blk=HB,
      kernel_size=kernel_size, n_layers=n_layers, dilations=dilations)

  def centre_spec(ch):                 # Tt-wide blocks; left pad = Tt -> block i+1
    return pl.BlockSpec((1, ch, Tt), lambda b, i: (b, 0, i + 1))

  def left_spec(ch):                   # HB-wide block just left of the centre tile
    return pl.BlockSpec((1, ch, HB), lambda b, i: (b, 0, (i + 1) * TB - 1))

  def right_spec(ch):                  # HB-wide block just right of the centre tile
    return pl.BlockSpec((1, ch, HB), lambda b, i: (b, 0, (i + 2) * TB))

  def wspec(shape):                    # grid-invariant weight block (stays in VMEM)
    nd = len(shape)
    return pl.BlockSpec(shape, lambda b, i, n=nd: (0,) * n)

  out = pl.pallas_call(
      kernel,
      out_shape=jax.ShapeDtypeStruct((B, Ch, Tc), x1.dtype),
      grid=(B, NT),
      in_specs=[
          left_spec(Ch), centre_spec(Ch), right_spec(Ch),      # x0
          left_spec(1), centre_spec(1), right_spec(1),         # mask
          pl.BlockSpec((1, Ch, Tt), lambda b, i: (b, 0, i)),   # x1 (unpadded-left)
          wspec(packed["w_pre"].shape), wspec(packed["b_pre"].shape),
          wspec(packed["w_in"].shape), wspec(packed["b_in"].shape),
          wspec(packed["w_rs"].shape), wspec(packed["b_rs"].shape),
          wspec(packed["w_post"].shape), wspec(packed["b_post"].shape),
      ],
      out_specs=pl.BlockSpec((1, Ch, Tt), lambda b, i: (b, 0, i)),
      compiler_params=pltpu.CompilerParams(
          dimension_semantics=("parallel", "parallel"),
          vmem_limit_bytes=64 * 1024 * 1024),
  )(x0_p, x0_p, x0_p, m_p, m_p, m_p, x1_c,
    packed["w_pre"], packed["b_pre"], packed["w_in"], packed["b_in"],
    packed["w_rs"], packed["b_rs"], packed["w_post"], packed["b_post"])
  return out[:, :, :T]


def residual_coupling_block_forward(params, x, x_mask, *, kernel_size,
                                    dilation_rate, n_layers, tile_t=512):
  """ResidualCouplingBlock.forward(x, x_mask, g=None, reverse=False)."""
  C = x.shape[1]
  Ch = C // 2
  x0 = x[:, :Ch, :]
  x1 = x[:, Ch:, :]
  for packed in params:
    x1_new = coupling_layer_forward(
        packed, x0, x1, x_mask, kernel_size=kernel_size,
        dilation_rate=dilation_rate, n_layers=n_layers, tile_t=tile_t)
    # modules.Flip(): channel-reverse of cat([x0, x1_new]); re-split for next flow.
    x0, x1 = x1_new[:, ::-1, :], x0[:, ::-1, :]
  return jnp.concatenate([x0, x1], axis=1)


# ----------------------------------------------------------------------------
# Parameter init (PyTorch conv layouts) + one-time re-layout for the kernel
# ----------------------------------------------------------------------------
def init_coupling_params(key, channels, hidden, kernel_size, dilation_rate,
                         n_layers):
  """weight_norm is identity at init; weights kept in PyTorch (Cout, Cin, K) layout."""
  assert channels % 2 == 0 and kernel_size % 2 == 1
  Ch = channels // 2
  keys = iter(jax.random.split(key, 2 * n_layers + 2))

  def conv_init(k, cout, cin, ksz, scale):
    kw, kb = jax.random.split(k)
    w = jax.random.normal(kw, (cout, cin, ksz), jnp.float32) * scale
    b = jax.random.normal(kb, (cout,), jnp.float32) * scale
    return w, b

  p = {"pre": conv_init(next(keys), hidden, Ch, 1, 1.0 / math.sqrt(Ch)),
       "in_layers": [], "res_skip_layers": []}
  for i in range(n_layers):
    p["in_layers"].append(
        conv_init(next(keys), 2 * hidden, hidden, kernel_size,
                  1.0 / math.sqrt(hidden * kernel_size)))
    rs_ch = 2 * hidden if i < n_layers - 1 else hidden
    p["res_skip_layers"].append(
        conv_init(next(keys), rs_ch, hidden, 1, 1.0 / math.sqrt(hidden)))
  # NOTE: the PyTorch module zero-inits `post`; random here so the test exercises real compute.
  p["post"] = conv_init(next(keys), Ch, hidden, 1, 0.1)
  return p


def pack_coupling_params(p, compute_dtype=jnp.bfloat16):
  """One-time re-layout: channel-first matmul weights, taps stacked, bf16 operands."""
  w_pre, b_pre = p["pre"]
  H = w_pre.shape[0]
  w_in = jnp.stack([jnp.transpose(w, (2, 0, 1)) for w, _ in p["in_layers"]])   # (L,K,2H,H)
  b_in = jnp.stack([b for _, b in p["in_layers"]])[:, :, None]                  # (L,2H,1)
  w_rs_list, b_rs_list = [], []
  for w, b in p["res_skip_layers"]:
    w2 = w[:, :, 0]
    if w2.shape[0] == H:                  # last layer: pad the (unused) res half with zeros
      w2 = jnp.concatenate([jnp.zeros((H, H), w2.dtype), w2], axis=0)
      b = jnp.concatenate([jnp.zeros((H,), b.dtype), b], axis=0)
    w_rs_list.append(w2)
    b_rs_list.append(b)
  w_post, b_post = p["post"]
  return dict(
      w_pre=w_pre[:, :, 0].astype(compute_dtype), b_pre=b_pre[:, None],
      w_in=w_in.astype(compute_dtype), b_in=b_in,
      w_rs=jnp.stack(w_rs_list).astype(compute_dtype),
      b_rs=jnp.stack(b_rs_list)[:, :, None],
      w_post=w_post[:, :, 0].astype(compute_dtype), b_post=b_post[:, None])


# ----------------------------------------------------------------------------
# Pure-JAX reference (mirrors the PyTorch module) for validation
# ----------------------------------------------------------------------------
def _conv1d_ref(x, w, b, dilation=1, compute_dtype=jnp.bfloat16):
  Cout, Cin, Kk = w.shape
  pad = (Kk - 1) * dilation // 2
  T = x.shape[-1]
  xp = jnp.pad(x, ((0, 0), (0, 0), (pad, pad)))
  out = jnp.zeros((x.shape[0], Cout, T), jnp.float32)
  for k in range(Kk):
    xs = xp[:, :, k * dilation:k * dilation + T]
    out = out + jnp.einsum("oi,bit->bot", w[:, :, k].astype(compute_dtype),
                           xs.astype(compute_dtype),
                           preferred_element_type=jnp.float32)
  return out + b[None, :, None]


def _coupling_layer_ref(p, x0, x1, mask, *, dilation_rate, n_layers):
  H = p["pre"][0].shape[0]
  h = _conv1d_ref(x0, *p["pre"]) * mask
  output = jnp.zeros_like(h)
  for i in range(n_layers):
    d = dilation_rate ** i
    x_in = _conv1d_ref(h, *p["in_layers"][i], dilation=d)
    acts = jnp.tanh(x_in[:, :H]) * jax.nn.sigmoid(x_in[:, H:])
    rs = _conv1d_ref(acts, *p["res_skip_layers"][i])
    if i < n_layers - 1:
      h = (h + rs[:, :H]) * mask
      output = output + rs[:, H:]
    else:
      output = output + rs
  m = _conv1d_ref(output * mask, *p["post"]) * mask
  return m + x1 * mask


def residual_coupling_block_ref(raw_params, x, x_mask, *, dilation_rate, n_layers):
  Ch = x.shape[1] // 2
  x0, x1 = x[:, :Ch, :], x[:, Ch:, :]
  for p in raw_params:
    x1_new = _coupling_layer_ref(p, x0, x1, x_mask,
                                 dilation_rate=dilation_rate, n_layers=n_layers)
    x0, x1 = x1_new[:, ::-1, :], x0[:, ::-1, :]
  return jnp.concatenate([x0, x1], axis=1)


# ----------------------------------------------------------------------------
if __name__ == "__main__":
  channels = 8
  hidden_channels = 32
  kernel_size = 5
  dilation_rate = 1
  n_layers = 4
  n_flows = 4
  B, T = 2, 200

  key = jax.random.PRNGKey(0)
  kx, kp = jax.random.split(key)
  x = jax.random.normal(kx, (B, channels, T), jnp.float32)
  lengths = jnp.array([T, 137])
  x_mask = (jnp.arange(T)[None, None, :] < lengths[:, None, None]).astype(jnp.float32)

  raw_flows, packed_flows = [], []
  for fk in jax.random.split(kp, n_flows):
    raw = init_coupling_params(fk, channels, hidden_channels, kernel_size,
                               dilation_rate, n_layers)
    raw_flows.append(raw)
    packed_flows.append(pack_coupling_params(raw))

  # tile_t=128 forces multiple time tiles so the halo path is exercised.
  fwd = jax.jit(functools.partial(
      residual_coupling_block_forward, kernel_size=kernel_size,
      dilation_rate=dilation_rate, n_layers=n_layers, tile_t=128))
  y = fwd(packed_flows, x, x_mask)
  jax.block_until_ready(y)
  assert y.shape == (B, channels, T)

  y_ref = residual_coupling_block_ref(
      raw_flows, x, x_mask, dilation_rate=dilation_rate, n_layers=n_layers)
  err = float(jnp.max(jnp.abs(y - y_ref)))
  assert err < 5e-2, f"max abs error vs reference: {err}"
  print("KERNEL_OK")
</pallas_src>

<mosaic_0001>
module attributes {stable_mosaic.version = 11 : i64} {
  func.func @_coupling_flow_kernel(%arg0: i32, %arg1: i32, %arg2: memref<1x4x128xf32, #tpu.memory_space<vmem>>, %arg3: memref<1x4x128xf32, #tpu.memory_space<vmem>>, %arg4: memref<1x4x128xf32, #tpu.memory_space<vmem>>, %arg5: memref<1x1x128xf32, #tpu.memory_space<vmem>>, %arg6: memref<1x1x128xf32, #tpu.memory_space<vmem>>, %arg7: memref<1x1x128xf32, #tpu.memory_space<vmem>>, %arg8: memref<1x4x128xf32, #tpu.memory_space<vmem>>, %arg9: memref<32x4xbf16, #tpu.memory_space<vmem>>, %arg10: memref<32x1xf32, #tpu.memory_space<vmem>>, %arg11: memref<4x5x64x32xbf16, #tpu.memory_space<vmem>>, %arg12: memref<4x64x1xf32, #tpu.memory_space<vmem>>, %arg13: memref<4x64x32xbf16, #tpu.memory_space<vmem>>, %arg14: memref<4x64x1xf32, #tpu.memory_space<vmem>>, %arg15: memref<4x32xbf16, #tpu.memory_space<vmem>>, %arg16: memref<4x1xf32, #tpu.memory_space<vmem>>, %arg17: memref<1x4x128xf32, #tpu.memory_space<vmem>>) attributes {dimension_semantics = [#tpu.dimension_semantics<parallel>, #tpu.dimension_semantics<parallel>], iteration_bounds = array<i64: 2, 2>, scalar_prefetch = 0 : i64, scratch_operands = 0 : i64, tpu.core_type = #tpu.core_type<tc>, window_params = [{transform_indices = @transform_0, window_bounds = array<i64: 1, 4, 128>}, {transform_indices = @transform_1, window_bounds = array<i64: 1, 4, 128>}, {transform_indices = @transform_2, window_bounds = array<i64: 1, 4, 128>}, {transform_indices = @transform_3, window_bounds = array<i64: 1, 1, 128>}, {transform_indices = @transform_4, window_bounds = array<i64: 1, 1, 128>}, {transform_indices = @transform_5, window_bounds = array<i64: 1, 1, 128>}, {transform_indices = @transform_6, window_bounds = array<i64: 1, 4, 128>}, {pipeline_mode = #tpu.pipeline_mode<synchronous>, transform_indices = @transform_7, window_bounds = array<i64: 32, 4>}, {pipeline_mode = #tpu.pipeline_mode<synchronous>, transform_indices = @transform_8, window_bounds = array<i64: 32, 1>}, {pipeline_mode = #tpu.pipeline_mode<synchronous>, transform_indices = @transform_9, window_bounds = array<i64: 4, 5, 64, 32>}, {pipeline_mode = #tpu.pipeline_mode<synchronous>, transform_indices = @transform_10, window_bounds = array<i64: 4, 64, 1>}, {pipeline_mode = #tpu.pipeline_mode<synchronous>, transform_indices = @transform_11, window_bounds = array<i64: 4, 64, 32>}, {pipeline_mode = #tpu.pipeline_mode<synchronous>, transform_indices = @transform_12, window_bounds = array<i64: 4, 64, 1>}, {pipeline_mode = #tpu.pipeline_mode<synchronous>, transform_indices = @transform_13, window_bounds = array<i64: 4, 32>}, {pipeline_mode = #tpu.pipeline_mode<synchronous>, transform_indices = @transform_14, window_bounds = array<i64: 4, 1>}, {transform_indices = @transform_15, window_bounds = array<i64: 1, 4, 128>}]} {
    %c0 = arith.constant 0 : index
    %c0_0 = arith.constant 0 : index
    %c120 = arith.constant 120 : index
    %0 = vector.load %arg2[%c0, %c0_0, %c120] : memref<1x4x128xf32, #tpu.memory_space<vmem>>, vector<1x4x8xf32>
    %1 = vector.shape_cast %0 : vector<1x4x8xf32> to vector<4x8xf32>
    %c0_1 = arith.constant 0 : index
    %c0_2 = arith.constant 0 : index
    %c0_3 = arith.constant 0 : index
    %2 = vector.load %arg3[%c0_1, %c0_2, %c0_3] : memref<1x4x128xf32, #tpu.memory_space<vmem>>, vector<1x4x128xf32>
    %3 = vector.shape_cast %2 : vector<1x4x128xf32> to vector<4x128xf32>
    %c0_4 = arith.constant 0 : index
    %c0_5 = arith.constant 0 : index
    %c0_6 = arith.constant 0 : index
    %4 = vector.load %arg4[%c0_4, %c0_5, %c0_6] : memref<1x4x128xf32, #tpu.memory_space<vmem>>, vector<1x4x8xf32>
    %5 = vector.shape_cast %4 : vector<1x4x8xf32> to vector<4x8xf32>
    %6 = tpu.concatenate %1, %3, %5 in 1 : vector<4x8xf32>, vector<4x128xf32>, vector<4x8xf32> -> vector<4x144xf32>
    %c0_7 = arith.constant 0 : index
    %c0_8 = arith.constant 0 : index
    %c120_9 = arith.constant 120 : index
    %7 = vector.load %arg5[%c0_7, %c0_8, %c120_9] : memref<1x1x128xf32, #tpu.memory_space<vmem>>, vector<1x1x8xf32>
    %8 = vector.shape_cast %7 : vector<1x1x8xf32> to vector<1x8xf32>
    %c0_10 = arith.constant 0 : index
    %c0_11 = arith.constant 0 : index
    %c0_12 = arith.constant 0 : index
    %9 = vector.load %arg6[%c0_10, %c0_11, %c0_12] : memref<1x1x128xf32, #tpu.memory_space<vmem>>, vector<1x1x128xf32>
    %10 = vector.shape_cast %9 : vector<1x1x128xf32> to vector<1x128xf32>
    %c0_13 = arith.constant 0 : index
    %c0_14 = arith.constant 0 : index
    %c0_15 = arith.constant 0 : index
    %11 = vector.load %arg7[%c0_13, %c0_14, %c0_15] : memref<1x1x128xf32, #tpu.memory_space<vmem>>, vector<1x1x8xf32>
    %12 = vector.shape_cast %11 : vector<1x1x8xf32> to vector<1x8xf32>
    %13 = tpu.concatenate %8, %10, %12 in 1 : vector<1x8xf32>, vector<1x128xf32>, vector<1x8xf32> -> vector<1x144xf32>
    %c0_16 = arith.constant 0 : index
    %c0_17 = arith.constant 0 : index
    %c0_18 = arith.constant 0 : index
    %14 = vector.load %arg6[%c0_16, %c0_17, %c0_18] : memref<1x1x128xf32, #tpu.memory_space<vmem>>, vector<1x1x128xf32>
    %15 = vector.shape_cast %14 : vector<1x1x128xf32> to vector<1x128xf32>
    %c0_19 = arith.constant 0 : index
    %c0_20 = arith.constant 0 : index
    %16 = vector.load %arg9[%c0_19, %c0_20] : memref<32x4xbf16, #tpu.memory_space<vmem>>, vector<32x4xbf16>
    %17 = arith.truncf %6 : vector<4x144xf32> to vector<4x144xbf16>
    %cst = arith.constant dense<0.000000e+00> : vector<32x144xf32>
    %18 = tpu.matmul %16, %17, %cst {dimension_numbers = #tpu.dot_dimension_numbers<[1], [0], [0], [1], [0, 0, 1, 1], [], []>} : vector<32x4xbf16>, vector<4x144xbf16>, vector<32x144xf32> -> vector<32x144xf32>
    %c0_21 = arith.constant 0 : index
    %c0_22 = arith.constant 0 : index
    %19 = vector.load %arg10[%c0_21, %c0_22] : memref<32x1xf32, #tpu.memory_space<vmem>>, vector<32x1xf32>
    %20 = vector.broadcast %19 : vector<32x1xf32> to vector<32x144xf32>
    %21 = arith.addf %18, %20 : vector<32x144xf32>
    %22 = vector.broadcast %13 : vector<1x144xf32> to vector<32x144xf32>
    %23 = arith.mulf %21, %22 : vector<32x144xf32>
    %cst_23 = arith.constant 0.000000e+00 : f32
    %24 = vector.broadcast %cst_23 : f32 to vector<32x128xf32>
    %25 = arith.truncf %23 : vector<32x144xf32> to vector<32x144xbf16>
    %c0_24 = arith.constant 0 : index
    %c0_25 = arith.constant 0 : index
    %c0_26 = arith.constant 0 : index
    %c0_27 = arith.constant 0 : index
    %26 = vector.load %arg11[%c0_24, %c0_25, %c0_26, %c0_27] : memref<4x5x64x32xbf16, #tpu.memory_space<vmem>>, vector<1x1x64x32xbf16>
    %27 = vector.shape_cast %26 : vector<1x1x64x32xbf16> to vector<64x32xbf16>
    %28 = vector.extract_strided_slice %25 {offsets = [0, 0], sizes = [32, 140], strides = [1, 1]} : vector<32x144xbf16> to vector<32x140xbf16>
    %cst_28 = arith.constant dense<0.000000e+00> : vector<64x140xf32>
    %29 = tpu.matmul %27, %28, %cst_28 {dimension_numbers = #tpu.dot_dimension_numbers<[1], [0], [0], [1], [0, 0, 1, 1], [], []>} : vector<64x32xbf16>, vector<32x140xbf16>, vector<64x140xf32> -> vector<64x140xf32>
    %c0_29 = arith.constant 0 : index
    %c1 = arith.constant 1 : index
    %c0_30 = arith.constant 0 : index
    %c0_31 = arith.constant 0 : index
    %30 = vector.load %arg11[%c0_29, %c1, %c0_30, %c0_31] : memref<4x5x64x32xbf16, #tpu.memory_space<vmem>>, vector<1x1x64x32xbf16>
    %31 = vector.shape_cast %30 : vector<1x1x64x32xbf16> to vector<64x32xbf16>
    %32 = vector.extract_strided_slice %25 {offsets = [0, 1], sizes = [32, 140], strides = [1, 1]} : vector<32x144xbf16> to vector<32x140xbf16>
    %cst_32 = arith.constant dense<0.000000e+00> : vector<64x140xf32>
    %33 = tpu.matmul %31, %32, %cst_32 {dimension_numbers = #tpu.dot_dimension_numbers<[1], [0], [0], [1], [0, 0, 1, 1], [], []>} : vector<64x32xbf16>, vector<32x140xbf16>, vector<64x140xf32> -> vector<64x140xf32>
    %34 = arith.addf %29, %33 : vector<64x140xf32>
    %c0_33 = arith.constant 0 : index
    %c2 = arith.constant 2 : index
    %c0_34 = arith.constant 0 : index
    %c0_35 = arith.constant 0 : index
    %35 = vector.load %arg11[%c0_33, %c2, %c0_34, %c0_35] : memref<4x5x64x32xbf16, #tpu.memory_space<vmem>>, vector<1x1x64x32xbf16>
    %36 = vector.shape_cast %35 : vector<1x1x64x32xbf16> to vector<64x32xbf16>
    %37 = vector.extract_strided_slice %25 {offsets = [0, 2], sizes = [32, 140], strides = [1, 1]} : vector<32x144xbf16> to vector<32x140xbf16>
    %cst_36 = arith.constant dense<0.000000e+00> : vector<64x140xf32>
    %38 = tpu.matmul %36, %37, %cst_36 {dimension_numbers = #tpu.dot_dimension_numbers<[1], [0], [0], [1], [0, 0, 1, 1], [], []>} : vector<64x32xbf16>, vector<32x140xbf16>, vector<64x140xf32> -> vector<64x140xf32>
    %39 = arith.addf %34, %38 : vector<64x140xf32>
    %c0_37 = arith.constant 0 : index
    %c3 = arith.constant 3 : index
    %c0_38 = arith.constant 0 : index
    %c0_39 = arith.constant 0 : index
    %40 = vector.load %arg11[%c0_37, %c3, %c0_38, %c0_39] : memref<4x5x64x32xbf16, #tpu.memory_space<vmem>>, vector<1x1x64x32xbf16>
    %41 = vector.shape_cast %40 : vector<1x1x64x32xbf16> to vector<64x32xbf16>
    %42 = vector.extract_strided_slice %25 {offsets = [0, 3], sizes = [32, 140], strides = [1, 1]} : vector<32x144xbf16> to vector<32x140xbf16>
    %cst_40 = arith.constant dense<0.000000e+00> : vector<64x140xf32>
    %43 = tpu.matmul %41, %42, %cst_40 {dimension_numbers = #tpu.dot_dimension_numbers<[1], [0], [0], [1], [0, 0, 1, 1], [], []>} : vector<64x32xbf16>, vector<32x140xbf16>, vector<64x140xf32> -> vector<64x140xf32>
    %44 = arith.addf %39, %43 : vector<64x140xf32>
    %c0_41 = arith.constant 0 : index
    %c4 = arith.constant 4 : index
    %c0_42 = arith.constant 0 : index
    %c0_43 = arith.constant 0 : index
    %45 = vector.load %arg11[%c0_41, %c4, %c0_42, %c0_43] : memref<4x5x64x32xbf16, #tpu.memory_space<vmem>>, vector<1x1x64x32xbf16>
    %46 = vector.shape_cast %45 : vector<1x1x64x32xbf16> to vector<64x32xbf16>
    %47 = vector.extract_strided_slice %25 {offsets = [0, 4], sizes = [32, 140], strides = [1, 1]} : vector<32x144xbf16> to vector<32x140xbf16>
    %cst_44 = arith.constant dense<0.000000e+00> : vector<64x140xf32>
    %48 = tpu.matmul %46, %47, %cst_44 {dimension_numbers = #tpu.dot_dimension_numbers<[1], [0], [0], [1], [0, 0, 1, 1], [], []>} : vector<64x32xbf16>, vector<32x140xbf16>, vector<64x140xf32> -> vector<64x140xf32>
    %49 = arith.addf %44, %48 : vector<64x140xf32>
    %c0_45 = arith.constant 0 : index
    %c0_46 = arith.constant 0 : index
    %c0_47 = arith.constant 0 : index
    %50 = vector.load %arg12[%c0_45, %c0_46, %c0_47] : memref<4x64x1xf32, #tpu.memory_space<vmem>>, vector<1x64x1xf32>
    %51 = vector.shape_cast %50 : vector<1x64x1xf32> to vector<64x1xf32>
    %52 = vector.broadcast %51 : vector<64x1xf32> to vector<64x140xf32>
    %53 = arith.addf %49, %52 : vector<64x140xf32>
    %54 = vector.extract_strided_slice %53 {offsets = [0, 0], sizes = [32, 140], strides = [1, 1]} : vector<64x140xf32> to vector<32x140xf32>
    %55 = math.tanh %54 : vector<32x140xf32>
    %56 = vector.extract_strided_slice %53 {offsets = [32, 0], sizes = [32, 140], strides = [1, 1]} : vector<64x140xf32> to vector<32x140xf32>
    %57 = arith.negf %56 : vector<32x140xf32>
    %58 = math.exp %57 : vector<32x140xf32>
    %cst_48 = arith.constant 1.000000e+00 : f32
    %59 = vector.broadcast %cst_48 : f32 to vector<32x140xf32>
    %60 = arith.addf %59, %58 : vector<32x140xf32>
    %61 = arith.divf %59, %60 : vector<32x140xf32>
    %62 = arith.mulf %55, %61 : vector<32x140xf32>
    %c0_49 = arith.constant 0 : index
    %c0_50 = arith.constant 0 : index
    %c0_51 = arith.constant 0 : index
    %63 = vector.load %arg13[%c0_49, %c0_50, %c0_51] : memref<4x64x32xbf16, #tpu.memory_space<vmem>>, vector<1x64x32xbf16>
    %64 = vector.shape_cast %63 : vector<1x64x32xbf16> to vector<64x32xbf16>
    %65 = arith.truncf %62 : vector<32x140xf32> to vector<32x140xbf16>
    %cst_52 = arith.constant dense<0.000000e+00> : vector<64x140xf32>
    %66 = tpu.matmul %64, %65, %cst_52 {dimension_numbers = #tpu.dot_dimension_numbers<[1], [0], [0], [1], [0, 0, 1, 1], [], []>} : vector<64x32xbf16>, vector<32x140xbf16>, vector<64x140xf32> -> vector<64x140xf32>
    %c0_53 = arith.constant 0 : index
    %c0_54 = arith.constant 0 : index
    %c0_55 = arith.constant 0 : index
    %67 = vector.load %arg14[%c0_53, %c0_54, %c0_55] : memref<4x64x1xf32, #tpu.memory_space<vmem>>, vector<1x64x1xf32>
    %68 = vector.shape_cast %67 : vector<1x64x1xf32> to vector<64x1xf32>
    %69 = vector.broadcast %68 : vector<64x1xf32> to vector<64x140xf32>
    %70 = arith.addf %66, %69 : vector<64x140xf32>
    %71 = vector.extract_strided_slice %23 {offsets = [0, 2], sizes = [32, 140], strides = [1, 1]} : vector<32x144xf32> to vector<32x140xf32>
    %72 = vector.extract_strided_slice %70 {offsets = [0, 0], sizes = [32, 140], strides = [1, 1]} : vector<64x140xf32> to vector<32x140xf32>
    %73 = arith.addf %71, %72 : vector<32x140xf32>
    %74 = vector.extract_strided_slice %13 {offsets = [0, 2], sizes = [1, 140], strides = [1, 1]} : vector<1x144xf32> to vector<1x140xf32>
    %75 = vector.broadcast %74 : vector<1x140xf32> to vector<32x140xf32>
    %76 = arith.mulf %73, %75 : vector<32x140xf32>
    %77 = vector.extract_strided_slice %70 {offsets = [32, 6], sizes = [32, 128], strides = [1, 1]} : vector<64x140xf32> to vector<32x128xf32>
    %78 = arith.addf %24, %77 : vector<32x128xf32>
    %79 = arith.truncf %76 : vector<32x140xf32> to vector<32x140xbf16>
    %c1_56 = arith.constant 1 : index
    %c0_57 = arith.constant 0 : index
    %c0_58 = arith.constant 0 : index
    %c0_59 = arith.constant 0 : index
    %80 = vector.load %arg11[%c1_56, %c0_57, %c0_58, %c0_59] : memref<4x5x64x32xbf16, #tpu.memory_space<vmem>>, vector<1x1x64x32xbf16>
    %81 = vector.shape_cast %80 : vector<1x1x64x32xbf16> to vector<64x32xbf16>
    %82 = vector.extract_strided_slice %79 {offsets = [0, 0], sizes = [32, 136], strides = [1, 1]} : vector<32x140xbf16> to vector<32x136xbf16>
    %cst_60 = arith.constant dense<0.000000e+00> : vector<64x136xf32>
    %83 = tpu.matmul %81, %82, %cst_60 {dimension_numbers = #tpu.dot_dimension_numbers<[1], [0], [0], [1], [0, 0, 1, 1], [], []>} : vector<64x32xbf16>, vector<32x136xbf16>, vector<64x136xf32> -> vector<64x136xf32>
    %c1_61 = arith.constant 1 : index
    %c1_62 = arith.constant 1 : index
    %c0_63 = arith.constant 0 : index
    %c0_64 = arith.constant 0 : index
    %84 = vector.load %arg11[%c1_61, %c1_62, %c0_63, %c0_64] : memref<4x5x64x32xbf16, #tpu.memory_space<vmem>>, vector<1x1x64x32xbf16>
    %85 = vector.shape_cast %84 : vector<1x1x64x32xbf16> to vector<64x32xbf16>
    %86 = vector.extract_strided_slice %79 {offsets = [0, 1], sizes = [32, 136], strides = [1, 1]} : vector<32x140xbf16> to vector<32x136xbf16>
    %cst_65 = arith.constant dense<0.000000e+00> : vector<64x136xf32>
    %87 = tpu.matmul %85, %86, %cst_65 {dimension_numbers = #tpu.dot_dimension_numbers<[1], [0], [0], [1], [0, 0, 1, 1], [], []>} : vector<64x32xbf16>, vector<32x136xbf16>, vector<64x136xf32> -> vector<64x136xf32>
    %88 = arith.addf %83, %87 : vector<64x136xf32>
    %c1_66 = arith.constant 1 : index
    %c2_67 = arith.constant 2 : index
    %c0_68 = arith.constant 0 : index
    %c0_69 = arith.constant 0 : index
    %89 = vector.load %arg11[%c1_66, %c2_67, %c0_68, %c0_69] : memref<4x5x64x32xbf16, #tpu.memory_space<vmem>>, vector<1x1x64x32xbf16>
    %90 = vector.shape_cast %89 : vector<1x1x64x32xbf16> to vector<64x32xbf16>
    %91 = vector.extract_strided_slice %79 {offsets = [0, 2], sizes = [32, 136], strides = [1, 1]} : vector<32x140xbf16> to vector<32x136xbf16>
    %cst_70 = arith.constant dense<0.000000e+00> : vector<64x136xf32>
    %92 = tpu.matmul %90, %91, %cst_70 {dimension_numbers = #tpu.dot_dimension_numbers<[1], [0], [0], [1], [0, 0, 1, 1], [], []>} : vector<64x32xbf16>, vector<32x136xbf16>, vector<64x136xf32> -> vector<64x136xf32>
    %93 = arith.addf %88, %92 : vector<64x136xf32>
    %c1_71 = arith.constant 1 : index
    %c3_72 = arith.constant 3 : index
    %c0_73 = arith.constant 0 : index
    %c0_74 = arith.constant 0 : index
    %94 = vector.load %arg11[%c1_71, %c3_72, %c0_73, %c0_74] : memref<4x5x64x32xbf16, #tpu.memory_space<vmem>>, vector<1x1x64x32xbf16>
    %95 = vector.shape_cast %94 : vector<1x1x64x32xbf16> to vector<64x32xbf16>
    %96 = vector.extract_strided_slice %79 {offsets = [0, 3], sizes = [32, 136], strides = [1, 1]} : vector<32x140xbf16> to vector<32x136xbf16>
    %cst_75 = arith.constant dense<0.000000e+00> : vector<64x136xf32>
    %97 = tpu.matmul %95, %96, %cst_75 {dimension_numbers = #tpu.dot_dimension_numbers<[1], [0], [0], [1], [0, 0, 1, 1], [], []>} : vector<64x32xbf16>, vector<32x136xbf16>, vector<64x136xf32> -> vector<64x136xf32>
    %98 = arith.addf %93, %97 : vector<64x136xf32>
    %c1_76 = arith.constant 1 : index
    %c4_77 = arith.constant 4 : index
    %c0_78 = arith.constant 0 : index
    %c0_79 = arith.constant 0 : index
    %99 = vector.load %arg11[%c1_76, %c4_77, %c0_78, %c0_79] : memref<4x5x64x32xbf16, #tpu.memory_space<vmem>>, vector<1x1x64x32xbf16>
    %100 = vector.shape_cast %99 : vector<1x1x64x32xbf16> to vector<64x32xbf16>
    %101 = vector.extract_strided_slice %79 {offsets = [0, 4], sizes = [32, 136], strides = [1, 1]} : vector<32x140xbf16> to vector<32x136xbf16>
    %cst_80 = arith.constant dense<0.000000e+00> : vector<64x136xf32>
    %102 = tpu.matmul %100, %101, %cst_80 {dimension_numbers = #tpu.dot_dimension_numbers<[1], [0], [0], [1], [0, 0, 1, 1], [], []>} : vector<64x32xbf16>, vector<32x136xbf16>, vector<64x136xf32> -> vector<64x136xf32>
    %103 = arith.addf %98, %102 : vector<64x136xf32>
    %c1_81 = arith.constant 1 : index
    %c0_82 = arith.constant 0 : index
    %c0_83 = arith.constant 0 : index
    %104 = vector.load %arg12[%c1_81, %c0_82, %c0_83] : memref<4x64x1xf32, #tpu.memory_space<vmem>>, vector<1x64x1xf32>
    %105 = vector.shape_cast %104 : vector<1x64x1xf32> to vector<64x1xf32>
    %106 = vector.broadcast %105 : vector<64x1xf32> to vector<64x136xf32>
    %107 = arith.addf %103, %106 : vector<64x136xf32>
    %108 = vector.extract_strided_slice %107 {offsets = [0, 0], sizes = [32, 136], strides = [1, 1]} : vector<64x136xf32> to vector<32x136xf32>
    %109 = math.tanh %108 : vector<32x136xf32>
    %110 = vector.extract_strided_slice %107 {offsets = [32, 0], sizes = [32, 136], strides = [1, 1]} : vector<64x136xf32> to vector<32x136xf32>
    %111 = arith.negf %110 : vector<32x136xf32>
    %112 = math.exp %111 : vector<32x136xf32>
    %cst_84 = arith.constant 1.000000e+00 : f32
    %113 = vector.broadcast %cst_84 : f32 to vector<32x136xf32>
    %114 = arith.addf %113, %112 : vector<32x136xf32>
    %115 = arith.divf %113, %114 : vector<32x136xf32>
    %116 = arith.mulf %109, %115 : vector<32x136xf32>
    %c1_85 = arith.constant 1 : index
    %c0_86 = arith.constant 0 : index
    %c0_87 = arith.constant 0 : index
    %117 = vector.load %arg13[%c1_85, %c0_86, %c0_87] : memref<4x64x32xbf16, #tpu.memory_space<vmem>>, vector<1x64x32xbf16>
    %118 = vector.shape_cast %117 : vector<1x64x32xbf16> to vector<64x32xbf16>
    %119 = arith.truncf %116 : vector<32x136xf32> to vector<32x136xbf16>
    %cst_88 = arith.constant dense<0.000000e+00> : vector<64x136xf32>
    %120 = tpu.matmul %118, %119, %cst_88 {dimension_numbers = #tpu.dot_dimension_numbers<[1], [0], [0], [1], [0, 0, 1, 1], [], []>} : vector<64x32xbf16>, vector<32x136xbf16>, vector<64x136xf32> -> vector<64x136xf32>
    %c1_89 = arith.constant 1 : index
    %c0_90 = arith.constant 0 : index
    %c0_91 = arith.constant 0 : index
    %121 = vector.load %arg14[%c1_89, %c0_90, %c0_91] : memref<4x64x1xf32, #tpu.memory_space<vmem>>, vector<1x64x1xf32>
    %122 = vector.shape_cast %121 : vector<1x64x1xf32> to vector<64x1xf32>
    %123 = vector.broadcast %122 : vector<64x1xf32> to vector<64x136xf32>
    %124 = arith.addf %120, %123 : vector<64x136xf32>
    %125 = vector.extract_strided_slice %76 {offsets = [0, 2], sizes = [32, 136], strides = [1, 1]} : vector<32x140xf32> to vector<32x136xf32>
    %126 = vector.extract_strided_slice %124 {offsets = [0, 0], sizes = [32, 136], strides = [1, 1]} : vector<64x136xf32> to vector<32x136xf32>
    %127 = arith.addf %125, %126 : vector<32x136xf32>
    %128 = vector.extract_strided_slice %13 {offsets = [0, 4], sizes = [1, 136], strides = [1, 1]} : vector<1x144xf32> to vector<1x136xf32>
    %129 = vector.broadcast %128 : vector<1x136xf32> to vector<32x136xf32>
    %130 = arith.mulf %127, %129 : vector<32x136xf32>
    %131 = vector.extract_strided_slice %124 {offsets = [32, 4], sizes = [32, 128], strides = [1, 1]} : vector<64x136xf32> to vector<32x128xf32>
    %132 = arith.addf %78, %131 : vector<32x128xf32>
    %133 = arith.truncf %130 : vector<32x136xf32> to vector<32x136xbf16>
    %c2_92 = arith.constant 2 : index
    %c0_93 = arith.constant 0 : index
    %c0_94 = arith.constant 0 : index
    %c0_95 = arith.constant 0 : index
    %134 = vector.load %arg11[%c2_92, %c0_93, %c0_94, %c0_95] : memref<4x5x64x32xbf16, #tpu.memory_space<vmem>>, vector<1x1x64x32xbf16>
    %135 = vector.shape_cast %134 : vector<1x1x64x32xbf16> to vector<64x32xbf16>
    %136 = vector.extract_strided_slice %133 {offsets = [0, 0], sizes = [32, 132], strides = [1, 1]} : vector<32x136xbf16> to vector<32x132xbf16>
    %cst_96 = arith.constant dense<0.000000e+00> : vector<64x132xf32>
    %137 = tpu.matmul %135, %136, %cst_96 {dimension_numbers = #tpu.dot_dimension_numbers<[1], [0], [0], [1], [0, 0, 1, 1], [], []>} : vector<64x32xbf16>, vector<32x132xbf16>, vector<64x132xf32> -> vector<64x132xf32>
    %c2_97 = arith.constant 2 : index
    %c1_98 = arith.constant 1 : index
    %c0_99 = arith.constant 0 : index
    %c0_100 = arith.constant 0 : index
    %138 = vector.load %arg11[%c2_97, %c1_98, %c0_99, %c0_100] : memref<4x5x64x32xbf16, #tpu.memory_space<vmem>>, vector<1x1x64x32xbf16>
    %139 = vector.shape_cast %138 : vector<1x1x64x32xbf16> to vector<64x32xbf16>
    %140 = vector.extract_strided_slice %133 {offsets = [0, 1], sizes = [32, 132], strides = [1, 1]} : vector<32x136xbf16> to vector<32x132xbf16>
    %cst_101 = arith.constant dense<0.000000e+00> : vector<64x132xf32>
    %141 = tpu.matmul %139, %140, %cst_101 {dimension_numbers = #tpu.dot_dimension_numbers<[1], [0], [0], [1], [0, 0, 1, 1], [], []>} : vector<64x32xbf16>, vector<32x132xbf16>, vector<64x132xf32> -> vector<64x132xf32>
    %142 = arith.addf %137, %141 : vector<64x132xf32>
    %c2_102 = arith.constant 2 : index
    %c2_103 = arith.constant 2 : index
    %c0_104 = arith.constant 0 : index
    %c0_105 = arith.constant 0 : index
    %143 = vector.load %arg11[%c2_102, %c2_103, %c0_104, %c0_105] : memref<4x5x64x32xbf16, #tpu.memory_space<vmem>>, vector<1x1x64x32xbf16>
    %144 = vector.shape_cast %143 : vector<1x1x64x32xbf16> to vector<64x32xbf16>
    %145 = vector.extract_strided_slice %133 {offsets = [0, 2], sizes = [32, 132], strides = [1, 1]} : vector<32x136xbf16> to vector<32x132xbf16>
    %cst_106 = arith.constant dense<0.000000e+00> : vector<64x132xf32>
    %146 = tpu.matmul %144, %145, %cst_106 {dimension_numbers = #tpu.dot_dimension_numbers<[1], [0], [0], [1], [0, 0, 1, 1], [], []>} : vector<64x32xbf16>, vector<32x132xbf16>, vector<64x132xf32> -> vector<64x132xf32>
    %147 = arith.addf %142, %146 : vector<64x132xf32>
    %c2_107 = arith.constant 2 : index
    %c3_108 = arith.constant 3 : index
    %c0_109 = arith.constant 0 : index
    %c0_110 = arith.constant 0 : index
    %148 = vector.load %arg11[%c2_107, %c3_108, %c0_109, %c0_110] : memref<4x5x64x32xbf16, #tpu.memory_space<vmem>>, vector<1x1x64x32xbf16>
    %149 = vector.shape_cast %148 : vector<1x1x64x32xbf16> to vector<64x32xbf16>
    %150 = vector.extract_strided_slice %133 {offsets = [0, 3], sizes = [32, 132], strides = [1, 1]} : vector<32x136xbf16> to vector<32x132xbf16>
    %cst_111 = arith.constant dense<0.000000e+00> : vector<64x132xf32>
    %151 = tpu.matmul %149, %150, %cst_111 {dimension_numbers = #tpu.dot_dimension_numbers<[1], [0], [0], [1], [0, 0, 1, 1], [], []>} : vector<64x32xbf16>, vector<32x132xbf16>, vector<64x132xf32> -> vector<64x132xf32>
    %152 = arith.addf %147, %151 : vector<64x132xf32>
    %c2_112 = arith.constant 2 : index
    %c4_113 = arith.constant 4 : index
    %c0_114 = arith.constant 0 : index
    %c0_115 = arith.constant 0 : index
    %153 = vector.load %arg11[%c2_112, %c4_113, %c0_114, %c0_115] : memref<4x5x64x32xbf16, #tpu.memory_space<vmem>>, vector<1x1x64x32xbf16>
    %154 = vector.shape_cast %153 : vector<1x1x64x32xbf16> to vector<64x32xbf16>
    %155 = vector.extract_strided_slice %133 {offsets = [0, 4], sizes = [32, 132], strides = [1, 1]} : vector<32x136xbf16> to vector<32x132xbf16>
    %cst_116 = arith.constant dense<0.000000e+00> : vector<64x132xf32>
    %156 = tpu.matmul %154, %155, %cst_116 {dimension_numbers = #tpu.dot_dimension_numbers<[1], [0], [0], [1], [0, 0, 1, 1], [], []>} : vector<64x32xbf16>, vector<32x132xbf16>, vector<64x132xf32> -> vector<64x132xf32>
    %157 = arith.addf %152, %156 : vector<64x132xf32>
    %c2_117 = arith.constant 2 : index
    %c0_118 = arith.constant 0 : index
    %c0_119 = arith.constant 0 : index
    %158 = vector.load %arg12[%c2_117, %c0_118, %c0_119] : memref<4x64x1xf32, #tpu.memory_space<vmem>>, vector<1x64x1xf32>
    %159 = vector.shape_cast %158 : vector<1x64x1xf32> to vector<64x1xf32>
    %160 = vector.broadcast %159 : vector<64x1xf32> to vector<64x132xf32>
    %161 = arith.addf %157, %160 : vector<64x132xf32>
    %162 = vector.extract_strided_slice %161 {offsets = [0, 0], sizes = [32, 132], strides = [1, 1]} : vector<64x132xf32> to vector<32x132xf32>
    %163 = math.tanh %162 : vector<32x132xf32>
    %164 = vector.extract_strided_slice %161 {offsets = [32, 0], sizes = [32, 132], strides = [1, 1]} : vector<64x132xf32> to vector<32x132xf32>
    %165 = arith.negf %164 : vector<32x132xf32>
    %166 = math.exp %165 : vector<32x132xf32>
    %cst_120 = arith.constant 1.000000e+00 : f32
    %167 = vector.broadcast %cst_120 : f32 to vector<32x132xf32>
    %168 = arith.addf %167, %166 : vector<32x132xf32>
    %169 = arith.divf %167, %168 : vector<32x132xf32>
    %170 = arith.mulf %163, %169 : vector<32x132xf32>
    %c2_121 = arith.constant 2 : index
    %c0_122 = arith.constant 0 : index
    %c0_123 = arith.constant 0 : index
    %171 = vector.load %arg13[%c2_121, %c0_122, %c0_123] : memref<4x64x32xbf16, #tpu.memory_space<vmem>>, vector<1x64x32xbf16>
    %172 = vector.shape_cast %171 : vector<1x64x32xbf16> to vector<64x32xbf16>
    %173 = arith.truncf %170 : vector<32x132xf32> to vector<32x132xbf16>
    %cst_124 = arith.constant dense<0.000000e+00> : vector<64x132xf32>
    %174 = tpu.matmul %172, %173, %cst_124 {dimension_numbers = #tpu.dot_dimension_numbers<[1], [0], [0], [1], [0, 0, 1, 1], [], []>} : vector<64x32xbf16>, vector<32x132xbf16>, vector<64x132xf32> -> vector<64x132xf32>
    %c2_125 = arith.constant 2 : index
    %c0_126 = arith.constant 0 : index
    %c0_127 = arith.constant 0 : index
    %175 = vector.load %arg14[%c2_125, %c0_126, %c0_127] : memref<4x64x1xf32, #tpu.memory_space<vmem>>, vector<1x64x1xf32>
    %176 = vector.shape_cast %175 : vector<1x64x1xf32> to vector<64x1xf32>
    %177 = vector.broadcast %176 : vector<64x1xf32> to vector<64x132xf32>
    %178 = arith.addf %174, %177 : vector<64x132xf32>
    %179 = vector.extract_strided_slice %130 {offsets = [0, 2], sizes = [32, 132], strides = [1, 1]} : vector<32x136xf32> to vector<32x132xf32>
    %180 = vector.extract_strided_slice %178 {offsets = [0, 0], sizes = [32, 132], strides = [1, 1]} : vector<64x132xf32> to vector<32x132xf32>
    %181 = arith.addf %179, %180 : vector<32x132xf32>
    %182 = vector.extract_strided_slice %13 {offsets = [0, 6], sizes = [1, 132], strides = [1, 1]} : vector<1x144xf32> to vector<1x132xf32>
    %183 = vector.broadcast %182 : vector<1x132xf32> to vector<32x132xf32>
    %184 = arith.mulf %181, %183 : vector<32x132xf32>
    %185 = vector.extract_strided_slice %178 {offsets = [32, 2], sizes = [32, 128], strides = [1, 1]} : vector<64x132xf32> to vector<32x128xf32>
    %186 = arith.addf %132, %185 : vector<32x128xf32>
    %187 = arith.truncf %184 : vector<32x132xf32> to vector<32x132xbf16>
    %c3_128 = arith.constant 3 : index
    %c0_129 = arith.constant 0 : index
    %c0_130 = arith.constant 0 : index
    %c0_131 = arith.constant 0 : index
    %188 = vector.load %arg11[%c3_128, %c0_129, %c0_130, %c0_131] : memref<4x5x64x32xbf16, #tpu.memory_space<vmem>>, vector<1x1x64x32xbf16>
    %189 = vector.shape_cast %188 : vector<1x1x64x32xbf16> to vector<64x32xbf16>
    %190 = vector.extract_strided_slice %187 {offsets = [0, 0], sizes = [32, 128], strides = [1, 1]} : vector<32x132xbf16> to vector<32x128xbf16>
    %cst_132 = arith.constant dense<0.000000e+00> : vector<64x128xf32>
    %191 = tpu.matmul %189, %190, %cst_132 {dimension_numbers = #tpu.dot_dimension_numbers<[1], [0], [0], [1], [0, 0, 1, 1], [], []>} : vector<64x32xbf16>, vector<32x128xbf16>, vector<64x128xf32> -> vector<64x128xf32>
    %c3_133 = arith.constant 3 : index
    %c1_134 = arith.constant 1 : index
    %c0_135 = arith.constant 0 : index
    %c0_136 = arith.constant 0 : index
    %192 = vector.load %arg11[%c3_133, %c1_134, %c0_135, %c0_136] : memref<4x5x64x32xbf16, #tpu.memory_space<vmem>>, vector<1x1x64x32xbf16>
    %193 = vector.shape_cast %192 : vector<1x1x64x32xbf16> to vector<64x32xbf16>
    %194 = vector.extract_strided_slice %187 {offsets = [0, 1], sizes = [32, 128], strides = [1, 1]} : vector<32x132xbf16> to vector<32x128xbf16>
    %cst_137 = arith.constant dense<0.000000e+00> : vector<64x128xf32>
    %195 = tpu.matmul %193, %194, %cst_137 {dimension_numbers = #tpu.dot_dimension_numbers<[1], [0], [0], [1], [0, 0, 1, 1], [], []>} : vector<64x32xbf16>, vector<32x128xbf16>, vector<64x128xf32> -> vector<64x128xf32>
    %196 = arith.addf %191, %195 : vector<64x128xf32>
    %c3_138 = arith.constant 3 : index
    %c2_139 = arith.constant 2 : index
    %c0_140 = arith.constant 0 : index
    %c0_141 = arith.constant 0 : index
    %197 = vector.load %arg11[%c3_138, %c2_139, %c0_140, %c0_141] : memref<4x5x64x32xbf16, #tpu.memory_space<vmem>>, vector<1x1x64x32xbf16>
    %198 = vector.shape_cast %197 : vector<1x1x64x32xbf16> to vector<64x32xbf16>
    %199 = vector.extract_strided_slice %187 {offsets = [0, 2], sizes = [32, 128], strides = [1, 1]} : vector<32x132xbf16> to vector<32x128xbf16>
    %cst_142 = arith.constant dense<0.000000e+00> : vector<64x128xf32>
    %200 = tpu.matmul %198, %199, %cst_142 {dimension_numbers = #tpu.dot_dimension_numbers<[1], [0], [0], [1], [0, 0, 1, 1], [], []>} : vector<64x32xbf16>, vector<32x128xbf16>, vector<64x128xf32> -> vector<64x128xf32>
    %201 = arith.addf %196, %200 : vector<64x128xf32>
    %c3_143 = arith.constant 3 : index
    %c3_144 = arith.constant 3 : index
    %c0_145 = arith.constant 0 : index
    %c0_146 = arith.constant 0 : index
    %202 = vector.load %arg11[%c3_143, %c3_144, %c0_145, %c0_146] : memref<4x5x64x32xbf16, #tpu.memory_space<vmem>>, vector<1x1x64x32xbf16>
    %203 = vector.shape_cast %202 : vector<1x1x64x32xbf16> to vector<64x32xbf16>
    %204 = vector.extract_strided_slice %187 {offsets = [0, 3], sizes = [32, 128], strides = [1, 1]} : vector<32x132xbf16> to vector<32x128xbf16>
    %cst_147 = arith.constant dense<0.000000e+00> : vector<64x128xf32>
    %205 = tpu.matmul %203, %204, %cst_147 {dimension_numbers = #tpu.dot_dimension_numbers<[1], [0], [0], [1], [0, 0, 1, 1], [], []>} : vector<64x32xbf16>, vector<32x128xbf16>, vector<64x128xf32> -> vector<64x128xf32>
    %206 = arith.addf %201, %205 : vector<64x128xf32>
    %c3_148 = arith.constant 3 : index
    %c4_149 = arith.constant 4 : index
    %c0_150 = arith.constant 0 : index
    %c0_151 = arith.constant 0 : index
    %207 = vector.load %arg11[%c3_148, %c4_149, %c0_150, %c0_151] : memref<4x5x64x32xbf16, #tpu.memory_space<vmem>>, vector<1x1x64x32xbf16>
    %208 = vector.shape_cast %207 : vector<1x1x64x32xbf16> to vector<64x32xbf16>
    %209 = vector.extract_strided_slice %187 {offsets = [0, 4], sizes = [32, 128], strides = [1, 1]} : vector<32x132xbf16> to vector<32x128xbf16>
    %cst_152 = arith.constant dense<0.000000e+00> : vector<64x128xf32>
    %210 = tpu.matmul %208, %209, %cst_152 {dimension_numbers = #tpu.dot_dimension_numbers<[1], [0], [0], [1], [0, 0, 1, 1], [], []>} : vector<64x32xbf16>, vector<32x128xbf16>, vector<64x128xf32> -> vector<64x128xf32>
    %211 = arith.addf %206, %210 : vector<64x128xf32>
    %c3_153 = arith.constant 3 : index
    %c0_154 = arith.constant 0 : index
    %c0_155 = arith.constant 0 : index
    %212 = vector.load %arg12[%c3_153, %c0_154, %c0_155] : memref<4x64x1xf32, #tpu.memory_space<vmem>>, vector<1x64x1xf32>
    %213 = vector.shape_cast %212 : vector<1x64x1xf32> to vector<64x1xf32>
    %214 = vector.broadcast %213 : vector<64x1xf32> to vector<64x128xf32>
    %215 = arith.addf %211, %214 : vector<64x128xf32>
    %216 = vector.extract_strided_slice %215 {offsets = [0, 0], sizes = [32, 128], strides = [1, 1]} : vector<64x128xf32> to vector<32x128xf32>
    %217 = math.tanh %216 : vector<32x128xf32>
    %218 = vector.extract_strided_slice %215 {offsets = [32, 0], sizes = [32, 128], strides = [1, 1]} : vector<64x128xf32> to vector<32x128xf32>
    %219 = arith.negf %218 : vector<32x128xf32>
    %220 = math.exp %219 : vector<32x128xf32>
    %cst_156 = arith.constant 1.000000e+00 : f32
    %221 = vector.broadcast %cst_156 : f32 to vector<32x128xf32>
    %222 = arith.addf %221, %220 : vector<32x128xf32>
    %223 = arith.divf %221, %222 : vector<32x128xf32>
    %224 = arith.mulf %217, %223 : vector<32x128xf32>
    %c3_157 = arith.constant 3 : index
    %c0_158 = arith.constant 0 : index
    %c0_159 = arith.constant 0 : index
    %225 = vector.load %arg13[%c3_157, %c0_158, %c0_159] : memref<4x64x32xbf16, #tpu.memory_space<vmem>>, vector<1x64x32xbf16>
    %226 = vector.shape_cast %225 : vector<1x64x32xbf16> to vector<64x32xbf16>
    %227 = arith.truncf %224 : vector<32x128xf32> to vector<32x128xbf16>
    %cst_160 = arith.constant dense<0.000000e+00> : vector<64x128xf32>
    %228 = tpu.matmul %226, %227, %cst_160 {dimension_numbers = #tpu.dot_dimension_numbers<[1], [0], [0], [1], [0, 0, 1, 1], [], []>} : vector<64x32xbf16>, vector<32x128xbf16>, vector<64x128xf32> -> vector<64x128xf32>
    %c3_161 = arith.constant 3 : index
    %c0_162 = arith.constant 0 : index
    %c0_163 = arith.constant 0 : index
    %229 = vector.load %arg14[%c3_161, %c0_162, %c0_163] : memref<4x64x1xf32, #tpu.memory_space<vmem>>, vector<1x64x1xf32>
    %230 = vector.shape_cast %229 : vector<1x64x1xf32> to vector<64x1xf32>
    %231 = vector.broadcast %230 : vector<64x1xf32> to vector<64x128xf32>
    %232 = arith.addf %228, %231 : vector<64x128xf32>
    %233 = vector.extract_strided_slice %232 {offsets = [32, 0], sizes = [32, 128], strides = [1, 1]} : vector<64x128xf32> to vector<32x128xf32>
    %234 = arith.addf %186, %233 : vector<32x128xf32>
    %235 = vector.broadcast %15 : vector<1x128xf32> to vector<32x128xf32>
    %236 = arith.mulf %234, %235 : vector<32x128xf32>
    %c0_164 = arith.constant 0 : index
    %c0_165 = arith.constant 0 : index
    %237 = vector.load %arg15[%c0_164, %c0_165] : memref<4x32xbf16, #tpu.memory_space<vmem>>, vector<4x32xbf16>
    %238 = arith.truncf %236 : vector<32x128xf32> to vector<32x128xbf16>
    %cst_166 = arith.constant dense<0.000000e+00> : vector<4x128xf32>
    %239 = tpu.matmul %237, %238, %cst_166 {dimension_numbers = #tpu.dot_dimension_numbers<[1], [0], [0], [1], [0, 0, 1, 1], [], []>} : vector<4x32xbf16>, vector<32x128xbf16>, vector<4x128xf32> -> vector<4x128xf32>
    %c0_167 = arith.constant 0 : index
    %c0_168 = arith.constant 0 : index
    %240 = vector.load %arg16[%c0_167, %c0_168] : memref<4x1xf32, #tpu.memory_space<vmem>>, vector<4x1xf32>
    %241 = vector.broadcast %240 : vector<4x1xf32> to vector<4x128xf32>
    %242 = arith.addf %239, %241 : vector<4x128xf32>
    %243 = vector.broadcast %15 : vector<1x128xf32> to vector<4x128xf32>
    %244 = arith.mulf %242, %243 : vector<4x128xf32>
    %c0_169 = arith.constant 0 : index
    %c0_170 = arith.constant 0 : index
    %c0_171 = arith.constant 0 : index
    %245 = vector.load %arg8[%c0_169, %c0_170, %c0_171] : memref<1x4x128xf32, #tpu.memory_space<vmem>>, vector<1x4x128xf32>
    %246 = vector.shape_cast %245 : vector<1x4x128xf32> to vector<4x128xf32>
    %247 = vector.broadcast %15 : vector<1x128xf32> to vector<4x128xf32>
    %248 = arith.mulf %246, %247 : vector<4x128xf32>
    %249 = arith.addf %244, %248 : vector<4x128xf32>
    %c0_172 = arith.constant 0 : index
    %c0_173 = arith.constant 0 : index
    %c0_174 = arith.constant 0 : index
    %250 = vector.load %arg17[%c0_172, %c0_173, %c0_174] : memref<1x4x128xf32, #tpu.memory_space<vmem>>, vector<1x4x128xf32>
    %251 = vector.shape_cast %250 : vector<1x4x128xf32> to vector<4x128xf32>
    %252 = vector.shape_cast %249 : vector<4x128xf32> to vector<1x4x128xf32>
    tpu.vector_store %arg17[%c0_172, %c0_173, %c0_174], %252 {strides = array<i32>} : memref<1x4x128xf32, #tpu.memory_space<vmem>>, vector<1x4x128xf32>,
    return
  }
  func.func @transform_0(%arg0: i32, %arg1: i32) -> (i32, i32, i32) {
    %c1_i32 = arith.constant 1 : i32
    %0 = arith.addi %arg1, %c1_i32 : i32
    %c1_i32_0 = arith.constant 1 : i32
    %1 = arith.muli %0, %c1_i32_0 : i32
    %c1_i32_1 = arith.constant 1 : i32
    %2 = arith.subi %1, %c1_i32_1 : i32
    %c0_i32 = arith.constant 0 : i32
    %c0_i32_2 = arith.constant 0 : i32
    return %arg0, %c0_i32, %2 : i32, i32, i32
  }
  func.func @transform_1(%arg0: i32, %arg1: i32) -> (i32, i32, i32) {
    %c1_i32 = arith.constant 1 : i32
    %0 = arith.addi %arg1, %c1_i32 : i32
    %c0_i32 = arith.constant 0 : i32
    %c0_i32_0 = arith.constant 0 : i32
    return %arg0, %c0_i32, %0 : i32, i32, i32
  }
  func.func @transform_2(%arg0: i32, %arg1: i32) -> (i32, i32, i32) {
    %c2_i32 = arith.constant 2 : i32
    %0 = arith.addi %arg1, %c2_i32 : i32
    %c1_i32 = arith.constant 1 : i32
    %1 = arith.muli %0, %c1_i32 : i32
    %c0_i32 = arith.constant 0 : i32
    %c0_i32_0 = arith.constant 0 : i32
    return %arg0, %c0_i32, %1 : i32, i32, i32
  }
  func.func @transform_3(%arg0: i32, %arg1: i32) -> (i32, i32, i32) {
    %c1_i32 = arith.constant 1 : i32
    %0 = arith.addi %arg1, %c1_i32 : i32
    %c1_i32_0 = arith.constant 1 : i32
    %1 = arith.muli %0, %c1_i32_0 : i32
    %c1_i32_1 = arith.constant 1 : i32
    %2 = arith.subi %1, %c1_i32_1 : i32
    %c0_i32 = arith.constant 0 : i32
    %c0_i32_2 = arith.constant 0 : i32
    return %arg0, %c0_i32, %2 : i32, i32, i32
  }
  func.func @transform_4(%arg0: i32, %arg1: i32) -> (i32, i32, i32) {
    %c1_i32 = arith.constant 1 : i32
    %0 = arith.addi %arg1, %c1_i32 : i32
    %c0_i32 = arith.constant 0 : i32
    %c0_i32_0 = arith.constant 0 : i32
    return %arg0, %c0_i32, %0 : i32, i32, i32
  }
  func.func @transform_5(%arg0: i32, %arg1: i32) -> (i32, i32, i32) {
    %c2_i32 = arith.constant 2 : i32
    %0 = arith.addi %arg1, %c2_i32 : i32
    %c1_i32 = arith.constant 1 : i32
    %1 = arith.muli %0, %c1_i32 : i32
    %c0_i32 = arith.constant 0 : i32
    %c0_i32_0 = arith.constant 0 : i32
    return %arg0, %c0_i32, %1 : i32, i32, i32
  }
  func.func @transform_6(%arg0: i32, %arg1: i32) -> (i32, i32, i32) {
    %c0_i32 = arith.constant 0 : i32
    %c0_i32_0 = arith.constant 0 : i32
    return %arg0, %c0_i32, %arg1 : i32, i32, i32
  }
  func.func @transform_7(%arg0: i32, %arg1: i32) -> (i32, i32) {
    %c0_i32 = arith.constant 0 : i32
    %c0_i32_0 = arith.constant 0 : i32
    %c0_i32_1 = arith.constant 0 : i32
    return %c0_i32, %c0_i32_0 : i32, i32
  }
  func.func @transform_8(%arg0: i32, %arg1: i32) -> (i32, i32) {
    %c0_i32 = arith.constant 0 : i32
    %c0_i32_0 = arith.constant 0 : i32
    %c0_i32_1 = arith.constant 0 : i32
    return %c0_i32, %c0_i32_0 : i32, i32
  }
  func.func @transform_9(%arg0: i32, %arg1: i32) -> (i32, i32, i32, i32) {
    %c0_i32 = arith.constant 0 : i32
    %c0_i32_0 = arith.constant 0 : i32
    %c0_i32_1 = arith.constant 0 : i32
    %c0_i32_2 = arith.constant 0 : i32
    %c0_i32_3 = arith.constant 0 : i32
    return %c0_i32, %c0_i32_0, %c0_i32_1, %c0_i32_2 : i32, i32, i32, i32
  }
  func.func @transform_10(%arg0: i32, %arg1: i32) -> (i32, i32, i32) {
    %c0_i32 = arith.constant 0 : i32
    %c0_i32_0 = arith.constant 0 : i32
    %c0_i32_1 = arith.constant 0 : i32
    %c0_i32_2 = arith.constant 0 : i32
    return %c0_i32, %c0_i32_0, %c0_i32_1 : i32, i32, i32
  }
  func.func @transform_11(%arg0: i32, %arg1: i32) -> (i32, i32, i32) {
    %c0_i32 = arith.constant 0 : i32
    %c0_i32_0 = arith.constant 0 : i32
    %c0_i32_1 = arith.constant 0 : i32
    %c0_i32_2 = arith.constant 0 : i32
    return %c0_i32, %c0_i32_0, %c0_i32_1 : i32, i32, i32
  }
  func.func @transform_12(%arg0: i32, %arg1: i32) -> (i32, i32, i32) {
    %c0_i32 = arith.constant 0 : i32
    %c0_i32_0 = arith.constant 0 : i32
    %c0_i32_1 = arith.constant 0 : i32
    %c0_i32_2 = arith.constant 0 : i32
    return %c0_i32, %c0_i32_0, %c0_i32_1 : i32, i32, i32
  }
  func.func @transform_13(%arg0: i32, %arg1: i32) -> (i32, i32) {
    %c0_i32 = arith.constant 0 : i32
    %c0_i32_0 = arith.constant 0 : i32
    %c0_i32_1 = arith.constant 0 : i32
    return %c0_i32, %c0_i32_0 : i32, i32
  }
  func.func @transform_14(%arg0: i32, %arg1: i32) -> (i32, i32) {
    %c0_i32 = arith.constant 0 : i32
    %c0_i32_0 = arith.constant 0 : i32
    %c0_i32_1 = arith.constant 0 : i32
    return %c0_i32, %c0_i32_0 : i32, i32
  }
  func.func @transform_15(%arg0: i32, %arg1: i32) -> (i32, i32, i32) {
    %c0_i32 = arith.constant 0 : i32
    %c0_i32_0 = arith.constant 0 : i32
    return %arg0, %c0_i32, %arg1 : i32, i32, i32
  }
}

</mosaic_0001>

<llo_original>
// kernel: residual_coupling_block_forward.4
$region0: #{residual_coupling_block_forward.4}
  #allocation0 [shape = 'u32[]', space=smem, size = 0x4, offset = 0x4, fixed_abs, tag = 'smem constant byte address 0x4 - core index']
  #allocation1 [shape = 'u32[144,128]{1,0:T(1,128)}', space=vmem, size = 0x12000, scoped, tag = 'internal scratch']
  %s0 = inlined_call_operand.hbm [shape: f32[2,4,512], index: 0, kind: input, shape index: {}, may-alias: {0,1,2}]
  %s1 = inlined_call_operand.hbm [shape: f32[2,4,512], index: 1, kind: input, shape index: {}, may-alias: {0,1,2}]
  %s2 = inlined_call_operand.hbm [shape: f32[2,4,512], index: 2, kind: input, shape index: {}, may-alias: {0,1,2}]
  %s3 = inlined_call_operand.hbm [shape: f32[2,1,512], index: 3, kind: input, shape index: {}, may-alias: {3,4,5}]
  %s4 = inlined_call_operand.hbm [shape: f32[2,1,512], index: 4, kind: input, shape index: {}, may-alias: {3,4,5}]
  %s5 = inlined_call_operand.hbm [shape: f32[2,1,512], index: 5, kind: input, shape index: {}, may-alias: {3,4,5}]
  %s6 = inlined_call_operand.hbm [shape: f32[2,4,256], index: 6, kind: input, shape index: {}]
  %s7 = inlined_call_operand.hbm [shape: bf16[32,4], index: 7, kind: input, shape index: {}]
  %s8 = inlined_call_operand.hbm [shape: f32[32,1], index: 8, kind: input, shape index: {}]
  %s9 = inlined_call_operand.hbm [shape: bf16[4,5,64,32], index: 9, kind: input, shape index: {}]
  %s10 = inlined_call_operand.hbm [shape: f32[4,64,1], index: 10, kind: input, shape index: {}]
  %s11 = inlined_call_operand.hbm [shape: bf16[4,64,32], index: 11, kind: input, shape index: {}]
  %s12 = inlined_call_operand.hbm [shape: f32[4,64,1], index: 12, kind: input, shape index: {}]
  %s13 = inlined_call_operand.hbm [shape: bf16[4,32], index: 13, kind: input, shape index: {}]
  %s14 = inlined_call_operand.hbm [shape: f32[4,1], index: 14, kind: input, shape index: {}]
  %s15 = inlined_call_operand.hbm [shape: f32[2,4,256], index: 15, kind: output, shape index: {}]
  %s16 = sld [smem:[#allocation0]]
  $region153: #{residual_coupling_block_forward.4} parent=0
    _
  %s18 = ssub.s32 1, %s16
  %s19 = scalar_select 0, %s18, %s16
  $region1: #{residual_coupling_block_forward.4} parent=0
    #allocation2 [shape = 'u8[4096]{0}', space=vmem, size = 0x1000, scoped, tag = 'input window, operand 0']
    #allocation3 [shape = 's32[2]{0}', space=sflag, size = 0x8, scoped, tag = 'scoped memory for residual_coupling_block_forward.4']
    #allocation4 [shape = 's32[2]{0}', space=sflag, size = 0x8, scoped, tag = 'scoped memory for residual_coupling_block_forward.4']
    #allocation5 [shape = 'u8[4096]{0}', space=vmem, size = 0x1000, scoped, tag = 'input window, operand 1']
    #allocation6 [shape = 's32[2]{0}', space=sflag, size = 0x8, scoped, tag = 'scoped memory for residual_coupling_block_forward.4']
    #allocation7 [shape = 'u8[4096]{0}', space=vmem, size = 0x1000, scoped, tag = 'input window, operand 2']
    #allocation8 [shape = 'u8[1024]{0}', space=vmem, size = 0x400, scoped, tag = 'input window, operand 3']
    #allocation9 [shape = 's32[2]{0}', space=sflag, size = 0x8, scoped, tag = 'scoped memory for residual_coupling_block_forward.4']
    #allocation10 [shape = 'u8[1024]{0}', space=vmem, size = 0x400, scoped, tag = 'input window, operand 4']
    #allocation11 [shape = 'u8[1024]{0}', space=vmem, size = 0x400, scoped, tag = 'input window, operand 5']
    #allocation12 [shape = 's32[2]{0}', space=sflag, size = 0x8, scoped, tag = 'scoped memory for residual_coupling_block_forward.4']
    #allocation13 [shape = 'u8[4096]{0}', space=vmem, size = 0x1000, scoped, tag = 'input window, operand 6']
    #allocation14 [shape = 'u8[8192]{0}', space=vmem, size = 0x2000, scoped, tag = 'input window, operand 7, single buffered']
    #allocation15 [shape = 's32[1]{0}', space=sflag, size = 0x4, scoped, tag = 'scoped memory for residual_coupling_block_forward.4']
    #allocation16 [shape = 'u8[16384]{0}', space=vmem, size = 0x4000, scoped, tag = 'input window, operand 8, single buffered']
    #allocation17 [shape = 'u8[327680]{0}', space=vmem, size = 0x50000, scoped, tag = 'input window, operand 9, single buffered']
    #allocation18 [shape = 's32[1]{0}', space=sflag, size = 0x4, scoped, tag = 'scoped memory for residual_coupling_block_forward.4']
    #allocation19 [shape = 'u8[131072]{0}', space=vmem, size = 0x20000, scoped, tag = 'input window, operand 10, single buffered']
    #allocation20 [shape = 'u8[65536]{0}', space=vmem, size = 0x10000, scoped, tag = 'input window, operand 11, single buffered']
    #allocation21 [shape = 's32[1]{0}', space=sflag, size = 0x4, scoped, tag = 'scoped memory for residual_coupling_block_forward.4']
    #allocation22 [shape = 'u8[131072]{0}', space=vmem, size = 0x20000, scoped, tag = 'input window, operand 12, single buffered']
    #allocation23 [shape = 'u8[1024]{0}', space=vmem, size = 0x400, scoped, tag = 'input window, operand 13, single buffered']
    #allocation24 [shape = 's32[1]{0}', space=sflag, size = 0x4, scoped, tag = 'scoped memory for residual_coupling_block_forward.4']
    #allocation25 [shape = 'u8[2048]{0}', space=vmem, size = 0x800, scoped, tag = 'input window, operand 14, single buffered']
    #allocation26 [shape = 'u8[4096]{0}', space=vmem, size = 0x1000, scoped, tag = 'output window, operand 0']
    %20 = vsyncpa [#allocation3], 0
    %s21 = scalar_lea.sflag [#allocation3], 1
    %22 = vsyncpa %s21, 0
    %23 = vsyncpa [#allocation6], 0
    %s24 = scalar_lea.sflag [#allocation6], 1
    %25 = vsyncpa %s24, 0
    %26 = vsyncpa [#allocation9], 0
    %s27 = scalar_lea.sflag [#allocation9], 1
    %28 = vsyncpa %s27, 0
    %29 = vsyncpa [#allocation12], 0
    %s30 = scalar_lea.sflag [#allocation12], 1
    %31 = vsyncpa %s30, 0
    %32 = vsyncpa [#allocation15], 0
    %33 = vsyncpa [#allocation18], 0
    %34 = vsyncpa [#allocation21], 0
    %35 = vsyncpa [#allocation24], 0
    %36 = vsyncpa [#allocation4], 0
    %s37 = scalar_lea.sflag [#allocation4], 1
    %38 = vsyncpa %s37, 0
    loop: start=0, step=1, limit=6
    $region2: #{residual_coupling_block_forward.4} parent=1 // loop_pre_header
      _
    $region3: #{residual_coupling_block_forward.4} parent=1 // loop_header
      %s40 = sphi 0, %s44
      %p41 = scmp.ge.s32.totalorder %s40, 6
      %s47 = sphi 0, %s59
      %s48 = sphi 0, %s55
      %s49 = sphi 0, %s47
      %s50 = sphi 0, %s48
      %s51 = sphi 0, %s49
      %s52 = sphi 0, %s50
      %s64 = sphi 0, %s66
      %s67 = sphi 0, %s64
      %s68 = sphi 0, %s67
      %s84 = sphi 0, %s68
      %s94 = sphi 0, %s96
      %s97 = sphi 0, %s94
      %s98 = sphi 0, %s97
      %s114 = sphi 0, %s98
      %s124 = sphi 0, %s126
      %s127 = sphi 0, %s124
      %s128 = sphi 0, %s127
      %s144 = sphi 0, %s128
      %s152 = sphi 0, %s154
      %s155 = sphi 0, %s152
      %s156 = sphi 0, %s155
      %s172 = sphi 0, %s156
      %s182 = sphi 0, %s184
      %s185 = sphi 0, %s182
      %s186 = sphi 0, %s185
      %s202 = sphi 0, %s186
      %s212 = sphi 0, %s214
      %s215 = sphi 0, %s212
      %s216 = sphi 0, %s215
      %s232 = sphi 0, %s216
      %s240 = sphi 0, %s242
      %s243 = sphi 0, %s240
      %s244 = sphi 0, %s243
      %s260 = sphi 0, %s244
      %s264 = sphi 0, %s264
      %s266 = sphi 0, %s264
      %s267 = sphi 0, %s266
      %s281 = sphi 0, %s267
      %s285 = sphi 0, %s285
      %s287 = sphi 0, %s285
      %s288 = sphi 0, %s287
      %s302 = sphi 0, %s288
      %s306 = sphi 0, %s306
      %s308 = sphi 0, %s306
      %s309 = sphi 0, %s308
      %s323 = sphi 0, %s309
      %s327 = sphi 0, %s327
      %s329 = sphi 0, %s327
      %s330 = sphi 0, %s329
      %s344 = sphi 0, %s330
      %s348 = sphi 0, %s348
      %s350 = sphi 0, %s348
      %s351 = sphi 0, %s350
      %s365 = sphi 0, %s351
      %s369 = sphi 0, %s369
      %s371 = sphi 0, %s369
      %s372 = sphi 0, %s371
      %s386 = sphi 0, %s372
      %s390 = sphi 0, %s390
      %s392 = sphi 0, %s390
      %s393 = sphi 0, %s392
      %s407 = sphi 0, %s393
      %s411 = sphi 0, %s411
      %s413 = sphi 0, %s411
      %s414 = sphi 0, %s413
      %s428 = sphi 0, %s414
      %s436 = sphi 0, %s438
      %s439 = sphi 0, %s436
      %s440 = sphi 0, %s439
      %s456 = sphi 0, %s440
    $region4: #{residual_coupling_block_forward.4} parent=1 // loop_header_branch
      %43 = sbr.rel (%p41) target = $region8
    $region5: #{residual_coupling_block_forward.4} parent=1 // loop_body
      %s45 = ssub.s32 %s40, 1
      %s46 = ssub.s32 %s40, 2
      %s53 = sadd.s32 1, %s48
      %p54 = scmp.ge.s32.totalorder %s53, 2
      %s55 = scalar_select %p54, 0, %s53
      %s56 = sadd.s32 1, %s47
      %s57 = scalar_select %p54, %s56, %s47
      %p58 = scmp.ge.s32.totalorder %s57, 2
      %s59 = scalar_select %p58, 0, %s57
      %s60 = ssub.s32 %s47, %s59
      %s61 = ssub.s32 %s48, %s55
      %s62 = sor.u32 %s60, %s61
      %p63 = scmp.eq.s32.totalorder %s62, 0
      %s65 = sadd.s32 %s64, 1
      %s66 = scalar_select %p63, %s64, %s65
      %p69 = pneg %p63
      %p70 = scmp.eq.s32.totalorder %s40, 3
      %p71 = por %p69, %p70
      %p72 = scmp.ne.s32.totalorder %s64, %s67
      %p73 = scmp.eq.s32.totalorder %s40, 0
      %p74 = por %p72, %p73
      %p75 = scmp.ne.s32.totalorder %s64, %s67
      %p76 = scmp.eq.s32.totalorder %s45, 3
      %p77 = por %p75, %p76
      %p78 = scmp.ne.s32.totalorder %s67, %s68
      %p79 = scmp.eq.s32.totalorder %s45, 0
      %p80 = por %p78, %p79
      %p81 = scmp.ne.s32.totalorder %s67, %s68
      %p82 = scmp.eq.s32.totalorder %s46, 3
      %p83 = por %p81, %p82
      %p85 = scmp.ne.s32.totalorder %s68, %s84
      %p86 = scmp.eq.s32.totalorder %s46, 0
      %p87 = por %p85, %p86
      %s88 = sadd.s32 %s48, 1
      %s89 = sadd.s32 %s55, 1
      %s90 = ssub.s32 %s47, %s59
      %s91 = ssub.s32 %s88, %s89
      %s92 = sor.u32 %s90, %s91
      %p93 = scmp.eq.s32.totalorder %s92, 0
      %s95 = sadd.s32 %s94, 1
      %s96 = scalar_select %p93, %s94, %s95
      %p99 = pneg %p93
      %p100 = scmp.eq.s32.totalorder %s40, 3
      %p101 = por %p99, %p100
      %p102 = scmp.ne.s32.totalorder %s94, %s97
      %p103 = scmp.eq.s32.totalorder %s40, 0
      %p104 = por %p102, %p103
      %p105 = scmp.ne.s32.totalorder %s94, %s97
      %p106 = scmp.eq.s32.totalorder %s45, 3
      %p107 = por %p105, %p106
      %p108 = scmp.ne.s32.totalorder %s97, %s98
      %p109 = scmp.eq.s32.totalorder %s45, 0
      %p110 = por %p108, %p109
      %p111 = scmp.ne.s32.totalorder %s97, %s98
      %p112 = scmp.eq.s32.totalorder %s46, 3
      %p113 = por %p111, %p112
      %p115 = scmp.ne.s32.totalorder %s98, %s114
      %p116 = scmp.eq.s32.totalorder %s46, 0
      %p117 = por %p115, %p116
      %s118 = sadd.s32 %s48, 2
      %s119 = sadd.s32 %s55, 2
      %s120 = ssub.s32 %s47, %s59
      %s121 = ssub.s32 %s118, %s119
      %s122 = sor.u32 %s120, %s121
      %p123 = scmp.eq.s32.totalorder %s122, 0
      %s125 = sadd.s32 %s124, 1
      %s126 = scalar_select %p123, %s124, %s125
      %p129 = pneg %p123
      %p130 = scmp.eq.s32.totalorder %s40, 3
      %p131 = por %p129, %p130
      %p132 = scmp.ne.s32.totalorder %s124, %s127
      %p133 = scmp.eq.s32.totalorder %s40, 0
      %p134 = por %p132, %p133
      %p135 = scmp.ne.s32.totalorder %s124, %s127
      %p136 = scmp.eq.s32.totalorder %s45, 3
      %p137 = por %p135, %p136
      %p138 = scmp.ne.s32.totalorder %s127, %s128
      %p139 = scmp.eq.s32.totalorder %s45, 0
      %p140 = por %p138, %p139
      %p141 = scmp.ne.s32.totalorder %s127, %s128
      %p142 = scmp.eq.s32.totalorder %s46, 3
      %p143 = por %p141, %p142
      %p145 = scmp.ne.s32.totalorder %s128, %s144
      %p146 = scmp.eq.s32.totalorder %s46, 0
      %p147 = por %p145, %p146
      %s148 = ssub.s32 %s47, %s59
      %s149 = ssub.s32 %s48, %s55
      %s150 = sor.u32 %s148, %s149
      %p151 = scmp.eq.s32.totalorder %s150, 0
      %s153 = sadd.s32 %s152, 1
      %s154 = scalar_select %p151, %s152, %s153
      %p157 = pneg %p151
      %p158 = scmp.eq.s32.totalorder %s40, 3
      %p159 = por %p157, %p158
      %p160 = scmp.ne.s32.totalorder %s152, %s155
      %p161 = scmp.eq.s32.totalorder %s40, 0
      %p162 = por %p160, %p161
      %p163 = scmp.ne.s32.totalorder %s152, %s155
      %p164 = scmp.eq.s32.totalorder %s45, 3
      %p165 = por %p163, %p164
      %p166 = scmp.ne.s32.totalorder %s155, %s156
      %p167 = scmp.eq.s32.totalorder %s45, 0
      %p168 = por %p166, %p167
      %p169 = scmp.ne.s32.totalorder %s155, %s156
      %p170 = scmp.eq.s32.totalorder %s46, 3
      %p171 = por %p169, %p170
      %p173 = scmp.ne.s32.totalorder %s156, %s172
      %p174 = scmp.eq.s32.totalorder %s46, 0
      %p175 = por %p173, %p174
      %s176 = sadd.s32 %s48, 1
      %s177 = sadd.s32 %s55, 1
      %s178 = ssub.s32 %s47, %s59
      %s179 = ssub.s32 %s176, %s177
      %s180 = sor.u32 %s178, %s179
      %p181 = scmp.eq.s32.totalorder %s180, 0
      %s183 = sadd.s32 %s182, 1
      %s184 = scalar_select %p181, %s182, %s183
      %p187 = pneg %p181
      %p188 = scmp.eq.s32.totalorder %s40, 3
      %p189 = por %p187, %p188
      %p190 = scmp.ne.s32.totalorder %s182, %s185
      %p191 = scmp.eq.s32.totalorder %s40, 0
      %p192 = por %p190, %p191
      %p193 = scmp.ne.s32.totalorder %s182, %s185
      %p194 = scmp.eq.s32.totalorder %s45, 3
      %p195 = por %p193, %p194
      %p196 = scmp.ne.s32.totalorder %s185, %s186
      %p197 = scmp.eq.s32.totalorder %s45, 0
      %p198 = por %p196, %p197
      %p199 = scmp.ne.s32.totalorder %s185, %s186
      %p200 = scmp.eq.s32.totalorder %s46, 3
      %p201 = por %p199, %p200
      %p203 = scmp.ne.s32.totalorder %s186, %s202
      %p204 = scmp.eq.s32.totalorder %s46, 0
      %p205 = por %p203, %p204
      %s206 = sadd.s32 %s48, 2
      %s207 = sadd.s32 %s55, 2
      %s208 = ssub.s32 %s47, %s59
      %s209 = ssub.s32 %s206, %s207
      %s210 = sor.u32 %s208, %s209
      %p211 = scmp.eq.s32.totalorder %s210, 0
      %s213 = sadd.s32 %s212, 1
      %s214 = scalar_select %p211, %s212, %s213
      %p217 = pneg %p211
      %p218 = scmp.eq.s32.totalorder %s40, 3
      %p219 = por %p217, %p218
      %p220 = scmp.ne.s32.totalorder %s212, %s215
      %p221 = scmp.eq.s32.totalorder %s40, 0
      %p222 = por %p220, %p221
      %p223 = scmp.ne.s32.totalorder %s212, %s215
      %p224 = scmp.eq.s32.totalorder %s45, 3
      %p225 = por %p223, %p224
      %p226 = scmp.ne.s32.totalorder %s215, %s216
      %p227 = scmp.eq.s32.totalorder %s45, 0
      %p228 = por %p226, %p227
      %p229 = scmp.ne.s32.totalorder %s215, %s216
      %p230 = scmp.eq.s32.totalorder %s46, 3
      %p231 = por %p229, %p230
      %p233 = scmp.ne.s32.totalorder %s216, %s232
      %p234 = scmp.eq.s32.totalorder %s46, 0
      %p235 = por %p233, %p234
      %s236 = ssub.s32 %s47, %s59
      %s237 = ssub.s32 %s48, %s55
      %s238 = sor.u32 %s236, %s237
      %p239 = scmp.eq.s32.totalorder %s238, 0
      %s241 = sadd.s32 %s240, 1
      %s242 = scalar_select %p239, %s240, %s241
      %p245 = pneg %p239
      %p246 = scmp.eq.s32.totalorder %s40, 3
      %p247 = por %p245, %p246
      %p248 = scmp.ne.s32.totalorder %s240, %s243
      %p249 = scmp.eq.s32.totalorder %s40, 0
      %p250 = por %p248, %p249
      %p251 = scmp.ne.s32.totalorder %s240, %s243
      %p252 = scmp.eq.s32.totalorder %s45, 3
      %p253 = por %p251, %p252
      %p254 = scmp.ne.s32.totalorder %s243, %s244
      %p255 = scmp.eq.s32.totalorder %s45, 0
      %p256 = por %p254, %p255
      %p257 = scmp.ne.s32.totalorder %s243, %s244
      %p258 = scmp.eq.s32.totalorder %s46, 3
      %p259 = por %p257, %p258
      %p261 = scmp.ne.s32.totalorder %s244, %s260
      %p262 = scmp.eq.s32.totalorder %s46, 0
      %p263 = por %p261, %p262
      %s265 = sadd.s32 %s264, 1
      %p268 = scmp.eq.s32.totalorder %s40, 3
      %p269 = scmp.ne.s32.totalorder %s264, %s266
      %p270 = scmp.eq.s32.totalorder %s40, 0
      %p271 = por %p269, %p270
      %p272 = scmp.ne.s32.totalorder %s264, %s266
      %p273 = scmp.eq.s32.totalorder %s45, 3
      %p274 = por %p272, %p273
      %p275 = scmp.ne.s32.totalorder %s266, %s267
      %p276 = scmp.eq.s32.totalorder %s45, 0
      %p277 = por %p275, %p276
      %p278 = scmp.ne.s32.totalorder %s266, %s267
      %p279 = scmp.eq.s32.totalorder %s46, 3
      %p280 = por %p278, %p279
      %p282 = scmp.ne.s32.totalorder %s267, %s281
      %p283 = scmp.eq.s32.totalorder %s46, 0
      %p284 = por %p282, %p283
      %s286 = sadd.s32 %s285, 1
      %p289 = scmp.eq.s32.totalorder %s40, 3
      %p290 = scmp.ne.s32.totalorder %s285, %s287
      %p291 = scmp.eq.s32.totalorder %s40, 0
      %p292 = por %p290, %p291
      %p293 = scmp.ne.s32.totalorder %s285, %s287
      %p294 = scmp.eq.s32.totalorder %s45, 3
      %p295 = por %p293, %p294
      %p296 = scmp.ne.s32.totalorder %s287, %s288
      %p297 = scmp.eq.s32.totalorder %s45, 0
      %p298 = por %p296, %p297
      %p299 = scmp.ne.s32.totalorder %s287, %s288
      %p300 = scmp.eq.s32.totalorder %s46, 3
      %p301 = por %p299, %p300
      %p303 = scmp.ne.s32.totalorder %s288, %s302
      %p304 = scmp.eq.s32.totalorder %s46, 0
      %p305 = por %p303, %p304
      %s307 = sadd.s32 %s306, 1
      %p310 = scmp.eq.s32.totalorder %s40, 3
      %p311 = scmp.ne.s32.totalorder %s306, %s308
      %p312 = scmp.eq.s32.totalorder %s40, 0
      %p313 = por %p311, %p312
      %p314 = scmp.ne.s32.totalorder %s306, %s308
      %p315 = scmp.eq.s32.totalorder %s45, 3
      %p316 = por %p314, %p315
      %p317 = scmp.ne.s32.totalorder %s308, %s309
      %p318 = scmp.eq.s32.totalorder %s45, 0
      %p319 = por %p317, %p318
      %p320 = scmp.ne.s32.totalorder %s308, %s309
      %p321 = scmp.eq.s32.totalorder %s46, 3
      %p322 = por %p320, %p321
      %p324 = scmp.ne.s32.totalorder %s309, %s323
      %p325 = scmp.eq.s32.totalorder %s46, 0
      %p326 = por %p324, %p325
      %s328 = sadd.s32 %s327, 1
      %p331 = scmp.eq.s32.totalorder %s40, 3
      %p332 = scmp.ne.s32.totalorder %s327, %s329
      %p333 = scmp.eq.s32.totalorder %s40, 0
      %p334 = por %p332, %p333
      %p335 = scmp.ne.s32.totalorder %s327, %s329
      %p336 = scmp.eq.s32.totalorder %s45, 3
      %p337 = por %p335, %p336
      %p338 = scmp.ne.s32.totalorder %s329, %s330
      %p339 = scmp.eq.s32.totalorder %s45, 0
      %p340 = por %p338, %p339
      %p341 = scmp.ne.s32.totalorder %s329, %s330
      %p342 = scmp.eq.s32.totalorder %s46, 3
      %p343 = por %p341, %p342
      %p345 = scmp.ne.s32.totalorder %s330, %s344
      %p346 = scmp.eq.s32.totalorder %s46, 0
      %p347 = por %p345, %p346
      %s349 = sadd.s32 %s348, 1
      %p352 = scmp.eq.s32.totalorder %s40, 3
      %p353 = scmp.ne.s32.totalorder %s348, %s350
      %p354 = scmp.eq.s32.totalorder %s40, 0
      %p355 = por %p353, %p354
      %p356 = scmp.ne.s32.totalorder %s348, %s350
      %p357 = scmp.eq.s32.totalorder %s45, 3
      %p358 = por %p356, %p357
      %p359 = scmp.ne.s32.totalorder %s350, %s351
      %p360 = scmp.eq.s32.totalorder %s45, 0
      %p361 = por %p359, %p360
      %p362 = scmp.ne.s32.totalorder %s350, %s351
      %p363 = scmp.eq.s32.totalorder %s46, 3
      %p364 = por %p362, %p363
      %p366 = scmp.ne.s32.totalorder %s351, %s365
      %p367 = scmp.eq.s32.totalorder %s46, 0
      %p368 = por %p366, %p367
      %s370 = sadd.s32 %s369, 1
      %p373 = scmp.eq.s32.totalorder %s40, 3
      %p374 = scmp.ne.s32.totalorder %s369, %s371
      %p375 = scmp.eq.s32.totalorder %s40, 0
      %p376 = por %p374, %p375
      %p377 = scmp.ne.s32.totalorder %s369, %s371
      %p378 = scmp.eq.s32.totalorder %s45, 3
      %p379 = por %p377, %p378
      %p380 = scmp.ne.s32.totalorder %s371, %s372
      %p381 = scmp.eq.s32.totalorder %s45, 0
      %p382 = por %p380, %p381
      %p383 = scmp.ne.s32.totalorder %s371, %s372
      %p384 = scmp.eq.s32.totalorder %s46, 3
      %p385 = por %p383, %p384
      %p387 = scmp.ne.s32.totalorder %s372, %s386
      %p388 = scmp.eq.s32.totalorder %s46, 0
      %p389 = por %p387, %p388
      %s391 = sadd.s32 %s390, 1
      %p394 = scmp.eq.s32.totalorder %s40, 3
      %p395 = scmp.ne.s32.totalorder %s390, %s392
      %p396 = scmp.eq.s32.totalorder %s40, 0
      %p397 = por %p395, %p396
      %p398 = scmp.ne.s32.totalorder %s390, %s392
      %p399 = scmp.eq.s32.totalorder %s45, 3
      %p400 = por %p398, %p399
      %p401 = scmp.ne.s32.totalorder %s392, %s393
      %p402 = scmp.eq.s32.totalorder %s45, 0
      %p403 = por %p401, %p402
      %p404 = scmp.ne.s32.totalorder %s392, %s393
      %p405 = scmp.eq.s32.totalorder %s46, 3
      %p406 = por %p404, %p405
      %p408 = scmp.ne.s32.totalorder %s393, %s407
      %p409 = scmp.eq.s32.totalorder %s46, 0
      %p410 = por %p408, %p409
      %s412 = sadd.s32 %s411, 1
      %p415 = scmp.eq.s32.totalorder %s40, 3
      %p416 = scmp.ne.s32.totalorder %s411, %s413
      %p417 = scmp.eq.s32.totalorder %s40, 0
      %p418 = por %p416, %p417
      %p419 = scmp.ne.s32.totalorder %s411, %s413
      %p420 = scmp.eq.s32.totalorder %s45, 3
      %p421 = por %p419, %p420
      %p422 = scmp.ne.s32.totalorder %s413, %s414
      %p423 = scmp.eq.s32.totalorder %s45, 0
      %p424 = por %p422, %p423
      %p425 = scmp.ne.s32.totalorder %s413, %s414
      %p426 = scmp.eq.s32.totalorder %s46, 3
      %p427 = por %p425, %p426
      %p429 = scmp.ne.s32.totalorder %s414, %s428
      %p430 = scmp.eq.s32.totalorder %s46, 0
      %p431 = por %p429, %p430
      %s432 = ssub.s32 %s47, %s59
      %s433 = ssub.s32 %s48, %s55
      %s434 = sor.u32 %s432, %s433
      %p435 = scmp.eq.s32.totalorder %s434, 0
      %s437 = sadd.s32 %s436, 1
      %s438 = scalar_select %p435, %s436, %s437
      %p441 = pneg %p435
      %p442 = scmp.eq.s32.totalorder %s40, 3
      %p443 = por %p441, %p442
      %p444 = scmp.ne.s32.totalorder %s436, %s439
      %p445 = scmp.eq.s32.totalorder %s40, 0
      %p446 = por %p444, %p445
      %p447 = scmp.ne.s32.totalorder %s436, %s439
      %p448 = scmp.eq.s32.totalorder %s45, 3
      %p449 = por %p447, %p448
      %p450 = scmp.ne.s32.totalorder %s439, %s440
      %p451 = scmp.eq.s32.totalorder %s45, 0
      %p452 = por %p450, %p451
      %p453 = scmp.ne.s32.totalorder %s439, %s440
      %p454 = scmp.eq.s32.totalorder %s46, 3
      %p455 = por %p453, %p454
      %p457 = scmp.ne.s32.totalorder %s440, %s456
      %p458 = scmp.eq.s32.totalorder %s46, 0
      %p459 = por %p457, %p458
      %p460 = scmp.le.s32.totalorder 1, %s40
      %p461 = scmp.lt.s32.totalorder %s40, 5
      %p462 = pnand %p460, %p461
      %p463 = pneg %p462
      // Predicated region
      $region9: #{residual_coupling_block_forward.4} parent=5 // pred_check
        _
      $region10: #{residual_coupling_block_forward.4} parent=5 // pred_check_branch
        %465 = sbr.rel (%p462) target = $region12
      $region11: #{residual_coupling_block_forward.4} parent=5 // pred_region
        %s466 = ssub.s32 %s40, 1
        // Predicated region
        $region13: #{residual_coupling_block_forward.4} parent=11 // pred_check
          %p467 = pneg %p277
        $region14: #{residual_coupling_block_forward.4} parent=11 // pred_check_branch
          %469 = sbr.rel (%p467) target = $region16
        $region15: #{residual_coupling_block_forward.4} parent=11 // pred_region
          %s471 = ssub.s32 256, 256
          %472 = vsyncadd [#allocation15], %s471
          %s473 = sshll.u32 [#allocation14], 4
          %s474 = int_to_ptr.vmem [resolvable:$true] %s473
          %479 = dma.hbm_to_vmem [thread:$0]  %s7, 256, %s474, [#allocation15], 64, 64, 4
        $region16: #{residual_coupling_block_forward.4} parent=11 // pred_fallthru
          _
        // Predicated region
        $region17: #{residual_coupling_block_forward.4} parent=11 // pred_check
          %p480 = pneg %p298
        $region18: #{residual_coupling_block_forward.4} parent=11 // pred_check_branch
          %482 = sbr.rel (%p480) target = $region20
        $region19: #{residual_coupling_block_forward.4} parent=11 // pred_region
          %s484 = ssub.s32 512, 512
          %485 = vsyncadd [#allocation15], %s484
          %s486 = sshll.u32 [#allocation16], 4
          %s487 = int_to_ptr.vmem [resolvable:$true] %s486
          %492 = dma.hbm_to_vmem [thread:$0]  %s8, 512, %s487, [#allocation15], 128, 128, 8
        $region20: #{residual_coupling_block_forward.4} parent=11 // pred_fallthru
          _
        // Predicated region
        $region21: #{residual_coupling_block_forward.4} parent=11 // pred_check
          %p493 = pneg %p319
        $region22: #{residual_coupling_block_forward.4} parent=11 // pred_check_branch
          %495 = sbr.rel (%p493) target = $region24
        $region23: #{residual_coupling_block_forward.4} parent=11 // pred_region
          %s497 = ssub.s32 10240, 10240
          %498 = vsyncadd [#allocation18], %s497
          %s499 = sshll.u32 [#allocation17], 4
          %s500 = int_to_ptr.vmem [resolvable:$true] %s499
          %505 = dma.hbm_to_vmem [thread:$0]  %s9, 10240, %s500, [#allocation18], 64, 64, 4
        $region24: #{residual_coupling_block_forward.4} parent=11 // pred_fallthru
          _
        // Predicated region
        $region25: #{residual_coupling_block_forward.4} parent=11 // pred_check
          %p506 = pneg %p340
        $region26: #{residual_coupling_block_forward.4} parent=11 // pred_check_branch
          %508 = sbr.rel (%p506) target = $region28
        $region27: #{residual_coupling_block_forward.4} parent=11 // pred_region
          %s510 = ssub.s32 4096, 4096
          %511 = vsyncadd [#allocation18], %s510
          %s512 = sshll.u32 [#allocation19], 4
          %s513 = int_to_ptr.vmem [resolvable:$true] %s512
          %518 = dma.hbm_to_vmem [thread:$0]  %s10, 4096, %s513, [#allocation18], 128, 128, 8
        $region28: #{residual_coupling_block_forward.4} parent=11 // pred_fallthru
          _
        // Predicated region
        $region29: #{residual_coupling_block_forward.4} parent=11 // pred_check
          %p519 = pneg %p361
        $region30: #{residual_coupling_block_forward.4} parent=11 // pred_check_branch
          %521 = sbr.rel (%p519) target = $region32
        $region31: #{residual_coupling_block_forward.4} parent=11 // pred_region
          %s523 = ssub.s32 2048, 2048
          %524 = vsyncadd [#allocation21], %s523
          %s525 = sshll.u32 [#allocation20], 4
          %s526 = int_to_ptr.vmem [resolvable:$true] %s525
          %531 = dma.hbm_to_vmem [thread:$0]  %s11, 2048, %s526, [#allocation21], 64, 64, 4
        $region32: #{residual_coupling_block_forward.4} parent=11 // pred_fallthru
          _
        // Predicated region
        $region33: #{residual_coupling_block_forward.4} parent=11 // pred_check
          %p532 = pneg %p382
        $region34: #{residual_coupling_block_forward.4} parent=11 // pred_check_branch
          %534 = sbr.rel (%p532) target = $region36
        $region35: #{residual_coupling_block_forward.4} parent=11 // pred_region
          %s536 = ssub.s32 4096, 4096
          %537 = vsyncadd [#allocation21], %s536
          %s538 = sshll.u32 [#allocation22], 4
          %s539 = int_to_ptr.vmem [resolvable:$true] %s538
          %544 = dma.hbm_to_vmem [thread:$0]  %s12, 4096, %s539, [#allocation21], 128, 128, 8
        $region36: #{residual_coupling_block_forward.4} parent=11 // pred_fallthru
          _
        // Predicated region
        $region37: #{residual_coupling_block_forward.4} parent=11 // pred_check
          %p545 = pneg %p403
        $region38: #{residual_coupling_block_forward.4} parent=11 // pred_check_branch
          %547 = sbr.rel (%p545) target = $region40
        $region39: #{residual_coupling_block_forward.4} parent=11 // pred_region
          %s549 = ssub.s32 32, 32
          %550 = vsyncadd [#allocation24], %s549
          %s552 = sshll.u32 [#allocation23], 4
          %s553 = int_to_ptr.vmem [resolvable:$true] %s552
          %555 = dma.hbm_to_vmem [thread:$0]  %s13, 32, %s553, [#allocation24]
        $region40: #{residual_coupling_block_forward.4} parent=11 // pred_fallthru
          _
        // Predicated region
        $region41: #{residual_coupling_block_forward.4} parent=11 // pred_check
          %p556 = pneg %p424
        $region42: #{residual_coupling_block_forward.4} parent=11 // pred_check_branch
          %558 = sbr.rel (%p556) target = $region44
        $region43: #{residual_coupling_block_forward.4} parent=11 // pred_region
          %s560 = ssub.s32 64, 64
          %561 = vsyncadd [#allocation24], %s560
          %s563 = sshll.u32 [#allocation25], 4
          %s564 = int_to_ptr.vmem [resolvable:$true] %s563
          %566 = dma.hbm_to_vmem [thread:$0]  %s14, 64, %s564, [#allocation24]
        $region44: #{residual_coupling_block_forward.4} parent=11 // pred_fallthru
          _
      $region12: #{residual_coupling_block_forward.4} parent=5 // pred_fallthru
        _
      %p567 = scmp.lt.s32.totalorder %s40, 4
      // Predicated region
      $region45: #{residual_coupling_block_forward.4} parent=5 // pred_check
        %p568 = pneg %p567
      $region46: #{residual_coupling_block_forward.4} parent=5 // pred_check_branch
        %570 = sbr.rel (%p568) target = $region48
      $region47: #{residual_coupling_block_forward.4} parent=5 // pred_region
        // Predicated region
        $region49: #{residual_coupling_block_forward.4} parent=47 // pred_check
          %p571 = pneg %p74
        $region50: #{residual_coupling_block_forward.4} parent=47 // pred_check_branch
          %573 = sbr.rel (%p571) target = $region52
        $region51: #{residual_coupling_block_forward.4} parent=47 // pred_region
          %s574 = sand.u32 %s64, 1
          %s575 = scalar_lea.sflag [#allocation3], %s574
          %s576 = sand.u32 %s64, 1
          %s577 = smul.addr %s576, 4
          %s578 = scalar_lea.vmem [#allocation2], %s577
          %s580 = ssub.s32 64, 64
          %581 = vsyncadd %s575, %s580
          %s582 = smul.addr %s47, 4
          %s583 = sadd.s32 %s48, %s582
          %s584 = smul.addr %s583, 64
          %s585 = scalar_lea.hbm %s0, %s584
          %s587 = sshll.u32 %s578, 4
          %s588 = int_to_ptr.vmem [resolvable:$true] %s587
          %590 = dma.hbm_to_vmem [thread:$0]  %s585, 64, %s588, %s575
        $region52: #{residual_coupling_block_forward.4} parent=47 // pred_fallthru
          _
        // Predicated region
        $region53: #{residual_coupling_block_forward.4} parent=47 // pred_check
          %p591 = pneg %p104
        $region54: #{residual_coupling_block_forward.4} parent=47 // pred_check_branch
          %593 = sbr.rel (%p591) target = $region56
        $region55: #{residual_coupling_block_forward.4} parent=47 // pred_region
          %s594 = sand.u32 %s40, 1
          %s595 = scalar_lea.sflag [#allocation6], %s594
          %s596 = sand.u32 %s94, 1
          %s597 = smul.addr %s596, 4
          %s598 = scalar_lea.vmem [#allocation5], %s597
          %s599 = sadd.s32 %s48, 1
          %s601 = ssub.s32 64, 64
          %602 = vsyncadd %s595, %s601
          %s603 = smul.addr %s47, 4
          %s604 = sadd.s32 %s599, %s603
          %s605 = smul.addr %s604, 64
          %s606 = scalar_lea.hbm %s1, %s605
          %s608 = sshll.u32 %s598, 4
          %s609 = int_to_ptr.vmem [resolvable:$true] %s608
          %611 = dma.hbm_to_vmem [thread:$0]  %s606, 64, %s609, %s595
        $region56: #{residual_coupling_block_forward.4} parent=47 // pred_fallthru
          _
        // Predicated region
        $region57: #{residual_coupling_block_forward.4} parent=47 // pred_check
          %p612 = pneg %p134
        $region58: #{residual_coupling_block_forward.4} parent=47 // pred_check_branch
          %614 = sbr.rel (%p612) target = $region60
        $region59: #{residual_coupling_block_forward.4} parent=47 // pred_region
          %s615 = sand.u32 %s40, 1
          %s616 = scalar_lea.sflag [#allocation6], %s615
          %s617 = sand.u32 %s124, 1
          %s618 = smul.addr %s617, 4
          %s619 = scalar_lea.vmem [#allocation7], %s618
          %s620 = sadd.s32 %s48, 2
          %s622 = ssub.s32 64, 64
          %623 = vsyncadd %s616, %s622
          %s624 = smul.addr %s47, 4
          %s625 = sadd.s32 %s620, %s624
          %s626 = smul.addr %s625, 64
          %s627 = scalar_lea.hbm %s2, %s626
          %s629 = sshll.u32 %s619, 4
          %s630 = int_to_ptr.vmem [resolvable:$true] %s629
          %632 = dma.hbm_to_vmem [thread:$0]  %s627, 64, %s630, %s616
        $region60: #{residual_coupling_block_forward.4} parent=47 // pred_fallthru
          _
        // Predicated region
        $region61: #{residual_coupling_block_forward.4} parent=47 // pred_check
          %p633 = pneg %p162
        $region62: #{residual_coupling_block_forward.4} parent=47 // pred_check_branch
          %635 = sbr.rel (%p633) target = $region64
        $region63: #{residual_coupling_block_forward.4} parent=47 // pred_region
          %s636 = sand.u32 %s40, 1
          %s637 = scalar_lea.sflag [#allocation9], %s636
          %s638 = sand.u32 %s152, 1
          %s639 = scalar_lea.vmem [#allocation8], %s638
          %s641 = ssub.s32 16, 16
          %642 = vsyncadd %s637, %s641
          %s643 = smul.addr %s47, 4
          %s644 = sadd.s32 %s48, %s643
          %s645 = smul.addr %s644, 16
          %s646 = scalar_lea.hbm %s3, %s645
          %s648 = sshll.u32 %s639, 4
          %s649 = int_to_ptr.vmem [resolvable:$true] %s648
          %651 = dma.hbm_to_vmem [thread:$0]  %s646, 16, %s649, %s637
        $region64: #{residual_coupling_block_forward.4} parent=47 // pred_fallthru
          _
        // Predicated region
        $region65: #{residual_coupling_block_forward.4} parent=47 // pred_check
          %p652 = pneg %p192
        $region66: #{residual_coupling_block_forward.4} parent=47 // pred_check_branch
          %654 = sbr.rel (%p652) target = $region68
        $region67: #{residual_coupling_block_forward.4} parent=47 // pred_region
          %s655 = sand.u32 %s40, 1
          %s656 = scalar_lea.sflag [#allocation9], %s655
          %s657 = sand.u32 %s182, 1
          %s658 = scalar_lea.vmem [#allocation10], %s657
          %s659 = sadd.s32 %s48, 1
          %s661 = ssub.s32 16, 16
          %662 = vsyncadd %s656, %s661
          %s663 = smul.addr %s47, 4
          %s664 = sadd.s32 %s659, %s663
          %s665 = smul.addr %s664, 16
          %s666 = scalar_lea.hbm %s4, %s665
          %s668 = sshll.u32 %s658, 4
          %s669 = int_to_ptr.vmem [resolvable:$true] %s668
          %671 = dma.hbm_to_vmem [thread:$0]  %s666, 16, %s669, %s656
        $region68: #{residual_coupling_block_forward.4} parent=47 // pred_fallthru
          _
        // Predicated region
        $region69: #{residual_coupling_block_forward.4} parent=47 // pred_check
          %p672 = pneg %p222
        $region70: #{residual_coupling_block_forward.4} parent=47 // pred_check_branch
          %674 = sbr.rel (%p672) target = $region72
        $region71: #{residual_coupling_block_forward.4} parent=47 // pred_region
          %s675 = sand.u32 %s40, 1
          %s676 = scalar_lea.sflag [#allocation12], %s675
          %s677 = sand.u32 %s212, 1
          %s678 = scalar_lea.vmem [#allocation11], %s677
          %s679 = sadd.s32 %s48, 2
          %s681 = ssub.s32 16, 16
          %682 = vsyncadd %s676, %s681
          %s683 = smul.addr %s47, 4
          %s684 = sadd.s32 %s679, %s683
          %s685 = smul.addr %s684, 16
          %s686 = scalar_lea.hbm %s5, %s685
          %s688 = sshll.u32 %s678, 4
          %s689 = int_to_ptr.vmem [resolvable:$true] %s688
          %691 = dma.hbm_to_vmem [thread:$0]  %s686, 16, %s689, %s676
        $region72: #{residual_coupling_block_forward.4} parent=47 // pred_fallthru
          _
        // Predicated region
        $region73: #{residual_coupling_block_forward.4} parent=47 // pred_check
          %p692 = pneg %p250
        $region74: #{residual_coupling_block_forward.4} parent=47 // pred_check_branch
          %694 = sbr.rel (%p692) target = $region76
        $region75: #{residual_coupling_block_forward.4} parent=47 // pred_region
          %s695 = sand.u32 %s40, 1
          %s696 = scalar_lea.sflag [#allocation12], %s695
          %s697 = sand.u32 %s240, 1
          %s698 = smul.addr %s697, 4
          %s699 = scalar_lea.vmem [#allocation13], %s698
          %s701 = ssub.s32 64, 64
          %702 = vsyncadd %s696, %s701
          %s703 = smul.addr %s47, 2
          %s704 = sadd.s32 %s48, %s703
          %s705 = smul.addr %s704, 64
          %s706 = scalar_lea.hbm %s6, %s705
          %s708 = sshll.u32 %s699, 4
          %s709 = int_to_ptr.vmem [resolvable:$true] %s708
          %711 = dma.hbm_to_vmem [thread:$0]  %s706, 64, %s709, %s696
        $region76: #{residual_coupling_block_forward.4} parent=47 // pred_fallthru
          _
      $region48: #{residual_coupling_block_forward.4} parent=5 // pred_fallthru
        _
      %p712 = scmp.le.s32.totalorder 1, %s40
      %p713 = scmp.lt.s32.totalorder %s40, 5
      %p714 = pnand %p712, %p713
      %p715 = pneg %p714
      // Predicated region
      $region77: #{residual_coupling_block_forward.4} parent=5 // pred_check
        _
      $region78: #{residual_coupling_block_forward.4} parent=5 // pred_check_branch
        %717 = sbr.rel (%p714) target = $region80
      $region79: #{residual_coupling_block_forward.4} parent=5 // pred_region
        %s718 = ssub.s32 %s40, 1
        %s719 = sand.u32 %s67, 1
        %s720 = scalar_lea.sflag [#allocation3], %s719
        %s721 = sand.u32 %s67, 1
        %s722 = smul.addr %s721, 4
        %s723 = scalar_lea.vmem [#allocation2], %s722
        // Predicated region
        $region81: #{residual_coupling_block_forward.4} parent=79 // pred_check
          %p724 = pneg %p80
        $region82: #{residual_coupling_block_forward.4} parent=79 // pred_check_branch
          %726 = sbr.rel (%p724) target = $region84
        $region83: #{residual_coupling_block_forward.4} parent=79 // pred_region
          %727 = dma.done %s720, 64
        $region84: #{residual_coupling_block_forward.4} parent=79 // pred_fallthru
          _
        %s728 = sand.u32 %s45, 1
        %s729 = scalar_lea.sflag [#allocation6], %s728
        %s730 = sand.u32 %s97, 1
        %s731 = smul.addr %s730, 4
        %s732 = scalar_lea.vmem [#allocation5], %s731
        // Predicated region
        $region85: #{residual_coupling_block_forward.4} parent=79 // pred_check
          %p733 = pneg %p110
        $region86: #{residual_coupling_block_forward.4} parent=79 // pred_check_branch
          %735 = sbr.rel (%p733) target = $region88
        $region87: #{residual_coupling_block_forward.4} parent=79 // pred_region
          %736 = dma.done %s729, 64
        $region88: #{residual_coupling_block_forward.4} parent=79 // pred_fallthru
          _
        %s737 = sand.u32 %s45, 1
        %s738 = scalar_lea.sflag [#allocation6], %s737
        %s739 = sand.u32 %s127, 1
        %s740 = smul.addr %s739, 4
        %s741 = scalar_lea.vmem [#allocation7], %s740
        // Predicated region
        $region89: #{residual_coupling_block_forward.4} parent=79 // pred_check
          %p742 = pneg %p140
        $region90: #{residual_coupling_block_forward.4} parent=79 // pred_check_branch
          %744 = sbr.rel (%p742) target = $region92
        $region91: #{residual_coupling_block_forward.4} parent=79 // pred_region
          %745 = dma.done %s738, 64
        $region92: #{residual_coupling_block_forward.4} parent=79 // pred_fallthru
          _
        %s746 = sand.u32 %s45, 1
        %s747 = scalar_lea.sflag [#allocation9], %s746
        %s748 = sand.u32 %s155, 1
        %s749 = scalar_lea.vmem [#allocation8], %s748
        // Predicated region
        $region93: #{residual_coupling_block_forward.4} parent=79 // pred_check
          %p750 = pneg %p168
        $region94: #{residual_coupling_block_forward.4} parent=79 // pred_check_branch
          %752 = sbr.rel (%p750) target = $region96
        $region95: #{residual_coupling_block_forward.4} parent=79 // pred_region
          %753 = dma.done %s747, 16
        $region96: #{residual_coupling_block_forward.4} parent=79 // pred_fallthru
          _
        %s754 = sand.u32 %s45, 1
        %s755 = scalar_lea.sflag [#allocation9], %s754
        %s756 = sand.u32 %s185, 1
        %s757 = scalar_lea.vmem [#allocation10], %s756
        // Predicated region
        $region97: #{residual_coupling_block_forward.4} parent=79 // pred_check
          %p758 = pneg %p198
        $region98: #{residual_coupling_block_forward.4} parent=79 // pred_check_branch
          %760 = sbr.rel (%p758) target = $region100
        $region99: #{residual_coupling_block_forward.4} parent=79 // pred_region
          %761 = dma.done %s755, 16
        $region100: #{residual_coupling_block_forward.4} parent=79 // pred_fallthru
          _
        %s762 = sand.u32 %s45, 1
        %s763 = scalar_lea.sflag [#allocation12], %s762
        %s764 = sand.u32 %s215, 1
        %s765 = scalar_lea.vmem [#allocation11], %s764
        // Predicated region
        $region101: #{residual_coupling_block_forward.4} parent=79 // pred_check
          %p766 = pneg %p228
        $region102: #{residual_coupling_block_forward.4} parent=79 // pred_check_branch
          %768 = sbr.rel (%p766) target = $region104
        $region103: #{residual_coupling_block_forward.4} parent=79 // pred_region
          %769 = dma.done %s763, 16
        $region104: #{residual_coupling_block_forward.4} parent=79 // pred_fallthru
          _
        %s770 = sand.u32 %s45, 1
        %s771 = scalar_lea.sflag [#allocation12], %s770
        %s772 = sand.u32 %s243, 1
        %s773 = smul.addr %s772, 4
        %s774 = scalar_lea.vmem [#allocation13], %s773
        // Predicated region
        $region105: #{residual_coupling_block_forward.4} parent=79 // pred_check
          %p775 = pneg %p256
        $region106: #{residual_coupling_block_forward.4} parent=79 // pred_check_branch
          %777 = sbr.rel (%p775) target = $region108
        $region107: #{residual_coupling_block_forward.4} parent=79 // pred_region
          %778 = dma.done %s771, 64
        $region108: #{residual_coupling_block_forward.4} parent=79 // pred_fallthru
          _
        // Predicated region
        $region109: #{residual_coupling_block_forward.4} parent=79 // pred_check
          %p779 = pneg %p277
        $region110: #{residual_coupling_block_forward.4} parent=79 // pred_check_branch
          %781 = sbr.rel (%p779) target = $region112
        $region111: #{residual_coupling_block_forward.4} parent=79 // pred_region
          %782 = dma.done [#allocation15], 256
        $region112: #{residual_coupling_block_forward.4} parent=79 // pred_fallthru
          _
        // Predicated region
        $region113: #{residual_coupling_block_forward.4} parent=79 // pred_check
          %p783 = pneg %p298
        $region114: #{residual_coupling_block_forward.4} parent=79 // pred_check_branch
          %785 = sbr.rel (%p783) target = $region116
        $region115: #{residual_coupling_block_forward.4} parent=79 // pred_region
          %786 = dma.done [#allocation15], 512
        $region116: #{residual_coupling_block_forward.4} parent=79 // pred_fallthru
          _
        // Predicated region
        $region117: #{residual_coupling_block_forward.4} parent=79 // pred_check
          %p787 = pneg %p319
        $region118: #{residual_coupling_block_forward.4} parent=79 // pred_check_branch
          %789 = sbr.rel (%p787) target = $region120
        $region119: #{residual_coupling_block_forward.4} parent=79 // pred_region
          %790 = dma.done [#allocation18], 10240
        $region120: #{residual_coupling_block_forward.4} parent=79 // pred_fallthru
          _
        // Predicated region
        $region121: #{residual_coupling_block_forward.4} parent=79 // pred_check
          %p791 = pneg %p340
        $region122: #{residual_coupling_block_forward.4} parent=79 // pred_check_branch
          %793 = sbr.rel (%p791) target = $region124
        $region123: #{residual_coupling_block_forward.4} parent=79 // pred_region
          %794 = dma.done [#allocation18], 4096
        $region124: #{residual_coupling_block_forward.4} parent=79 // pred_fallthru
          _
        // Predicated region
        $region125: #{residual_coupling_block_forward.4} parent=79 // pred_check
          %p795 = pneg %p361
        $region126: #{residual_coupling_block_forward.4} parent=79 // pred_check_branch
          %797 = sbr.rel (%p795) target = $region128
        $region127: #{residual_coupling_block_forward.4} parent=79 // pred_region
          %798 = dma.done [#allocation21], 2048
        $region128: #{residual_coupling_block_forward.4} parent=79 // pred_fallthru
          _
        // Predicated region
        $region129: #{residual_coupling_block_forward.4} parent=79 // pred_check
          %p799 = pneg %p382
        $region130: #{residual_coupling_block_forward.4} parent=79 // pred_check_branch
          %801 = sbr.rel (%p799) target = $region132
        $region131: #{residual_coupling_block_forward.4} parent=79 // pred_region
          %802 = dma.done [#allocation21], 4096
        $region132: #{residual_coupling_block_forward.4} parent=79 // pred_fallthru
          _
        // Predicated region
        $region133: #{residual_coupling_block_forward.4} parent=79 // pred_check
          %p803 = pneg %p403
        $region134: #{residual_coupling_block_forward.4} parent=79 // pred_check_branch
          %805 = sbr.rel (%p803) target = $region136
        $region135: #{residual_coupling_block_forward.4} parent=79 // pred_region
          %806 = dma.done [#allocation24], 32
        $region136: #{residual_coupling_block_forward.4} parent=79 // pred_fallthru
          _
        // Predicated region
        $region137: #{residual_coupling_block_forward.4} parent=79 // pred_check
          %p807 = pneg %p424
        $region138: #{residual_coupling_block_forward.4} parent=79 // pred_check_branch
          %809 = sbr.rel (%p807) target = $region140
        $region139: #{residual_coupling_block_forward.4} parent=79 // pred_region
          %810 = dma.done [#allocation24], 64
        $region140: #{residual_coupling_block_forward.4} parent=79 // pred_fallthru
          _
        %s811 = sand.u32 %s67, 1
        %s812 = scalar_lea.sflag [#allocation3], %s811
        %s813 = sand.u32 %s67, 1
        %s814 = smul.addr %s813, 4
        %s815 = scalar_lea.vmem [#allocation2], %s814
        %p816 = pneg %p80
        %p817 = pneg %p77
        %s818 = sand.u32 %s45, 1
        %s819 = scalar_lea.sflag [#allocation6], %s818
        %s820 = sand.u32 %s97, 1
        %s821 = smul.addr %s820, 4
        %s822 = scalar_lea.vmem [#allocation5], %s821
        %p823 = pneg %p110
        %p824 = pneg %p107
        %s825 = sand.u32 %s45, 1
        %s826 = scalar_lea.sflag [#allocation6], %s825
        %s827 = sand.u32 %s127, 1
        %s828 = smul.addr %s827, 4
        %s829 = scalar_lea.vmem [#allocation7], %s828
        %p830 = pneg %p140
        %p831 = pneg %p137
        %s832 = sand.u32 %s45, 1
        %s833 = scalar_lea.sflag [#allocation9], %s832
        %s834 = sand.u32 %s155, 1
        %s835 = scalar_lea.vmem [#allocation8], %s834
        %p836 = pneg %p168
        %p837 = pneg %p165
        %s838 = sand.u32 %s45, 1
        %s839 = scalar_lea.sflag [#allocation9], %s838
        %s840 = sand.u32 %s185, 1
        %s841 = scalar_lea.vmem [#allocation10], %s840
        %p842 = pneg %p198
        %p843 = pneg %p195
        %s844 = sand.u32 %s45, 1
        %s845 = scalar_lea.sflag [#allocation12], %s844
        %s846 = sand.u32 %s215, 1
        %s847 = scalar_lea.vmem [#allocation11], %s846
        %p848 = pneg %p228
        %p849 = pneg %p225
        %s850 = sand.u32 %s45, 1
        %s851 = scalar_lea.sflag [#allocation12], %s850
        %s852 = sand.u32 %s243, 1
        %s853 = smul.addr %s852, 4
        %s854 = scalar_lea.vmem [#allocation13], %s853
        %p855 = pneg %p256
        %p856 = pneg %p253
        %p857 = pneg %p277
        %p858 = pneg %p274
        %p859 = pneg %p298
        %p860 = pneg %p295
        %p861 = pneg %p319
        %p862 = pneg %p316
        %p863 = pneg %p340
        %p864 = pneg %p337
        %p865 = pneg %p361
        %p866 = pneg %p358
        %p867 = pneg %p382
        %p868 = pneg %p379
        %p869 = pneg %p403
        %p870 = pneg %p400
        %p871 = pneg %p424
        %p872 = pneg %p421
        %p873 = pneg %p452
        %p874 = pneg %p449
        %s875 = sand.u32 %s439, 1
        %s876 = scalar_lea.sflag [#allocation4], %s875
        %s877 = sand.u32 %s439, 1
        %s878 = smul.addr %s877, 4
        %s879 = scalar_lea.vmem [#allocation26], %s878
        %s880 = sadd.s32 %s50, 1
        %s881 = sadd.s32 %s50, 2
        %s882 = sadd.s32 %s50, 1
        %s883 = sadd.s32 %s50, 2
        %v885 = vld [vmem:[%s723] sm:$0xf]
        %v886 = vld [vmem:[%s732] sm:$0xf]
        %v887 = vld [vmem:[%s741] sm:$0xf]
        %889 = vrot.lane.b32.xlu0 %v885, 8
        %v890 = vpop.permute.xlu0 %889
        %893 = vrot.lane.b32.xlu0 %v886, 8
        %v894 = vpop.permute.xlu0 %893
        %897 = vrot.lane.b32.xlu0 %v887, 8
        %v898 = vpop.permute.xlu0 %897
        %vm900 = vcmask 64512
        %v901 = vsel %vm900, %v890, %v894
        %v902 = vsel %vm900, %v894, %v898
        %v903 = vld [vmem:[%s749] sm:$0x1]
        %v904 = vld [vmem:[%s757] sm:$0x1]
        %v905 = vld [vmem:[%s765] sm:$0x1]
        %v907 = vlaneseq
        %v908 = vshrl.u32 %v907, 7
        %v909 = vsub.s32 0, %v908
        %v910 = vrot.slane %v903, %v909
        %911 = vrot.lane.b32.xlu0 %v910, 8
        %v912 = vpop.permute.xlu0 %911
        %v915 = vlaneseq
        %v916 = vshrl.u32 %v915, 7
        %v917 = vsub.s32 0, %v916
        %v918 = vrot.slane %v904, %v917
        %919 = vrot.lane.b32.xlu0 %v918, 8
        %v920 = vpop.permute.xlu0 %919
        %v923 = vlaneseq
        %v924 = vshrl.u32 %v923, 7
        %v925 = vsub.s32 0, %v924
        %v926 = vrot.slane %v905, %v925
        %927 = vrot.lane.b32.xlu0 %v926, 8
        %v928 = vpop.permute.xlu0 %927
        %v930 = vsel %vm900, %v912, %v920
        %v931 = vsel %vm900, %v920, %v928
        %v932 = vld [vmem:[#allocation14] sm:$0xf]
        %v933 = vld [vmem:[#allocation14 + $0x4] sm:$0xf]
        %v934 = vld [vmem:[#allocation14 + $0x8] sm:$0xf]
        %v935 = vld [vmem:[#allocation14 + $0xc] sm:$0xf]
        %v936 = vpack.c.bf16 %v901, %v901
        %v937 = vpack.c.bf16 %v902, %v902
        %v938 = vld [vmem:[#allocation16] sm:$0xff]
        %v939 = vld [vmem:[#allocation16 + $0x8] sm:$0xff]
        %v940 = vld [vmem:[#allocation16 + $0x10] sm:$0xff]
        %v941 = vld [vmem:[#allocation16 + $0x18] sm:$0xff]
        %943 = vset.pattern.permute.xlu0 0
        %944 = vperm.xlu0 %943, %v938
        %v945 = vpop.permute.xlu0 %944
        %948 = vset.pattern.permute.xlu0 0
        %949 = vperm.xlu0 %948, %v939
        %v950 = vpop.permute.xlu0 %949
        %953 = vset.pattern.permute.xlu0 0
        %954 = vperm.xlu0 %953, %v940
        %v955 = vpop.permute.xlu0 %954
        %958 = vset.pattern.permute.xlu0 0
        %959 = vperm.xlu0 %958, %v941
        %v960 = vpop.permute.xlu0 %959
        %v966 = vunpack.c.l.b16 %v932
        %v967 = vunpack.c.l.b16 %v933
        %v968 = vunpack.c.l.b16 %v934
        %v969 = vunpack.c.l.b16 %v935
        %v970 = vpack.c.b16 %v967, %v966
        %v971 = vpack.c.b16 %v969, %v968
        %vm972 = vcmask 31744
        %v974 = vsel %vm972, %v970, 0
        %v977 = vsel %vm972, %v971, 0
        %vm979 = vcmask 1041408
        %v981 = vsel %vm979, %v936, 0
        %v984 = vsel %vm979, %v937, 0
        %986 = vmatprep.subr.bf16.mxu0 %v984
        %987 = vmatpush1.bf16.msra.mxu0 %v981
        %988 = vmatprep.subr.bf16.mxu0 0
        %989 = vmatpush1.bf16.msra.mxu0 0
        %990 = vmatprep.subr.bf16.mxu0 0
        %991 = vmatpush1.bf16.msra.mxu0 0
        %992 = vmatprep.subr.bf16.mxu0 0
        %993 = vmatpush1.bf16.msra.mxu0 0
        %994 = vmatprep.subr.bf16.mxu0 0
        %995 = vmatpush1.bf16.msra.mxu0 0
        %996 = vmatprep.subr.bf16.mxu0 0
        %997 = vmatpush1.bf16.msra.mxu0 0
        %998 = vmatprep.subr.bf16.mxu0 0
        %999 = vmatpush1.bf16.msra.mxu0 0
        %1000 = vmatprep.subr.bf16.mxu0 0
        %1001 = vmatpush1.bf16.msra.mxu0 0
        %1002 = vmatprep.subr.bf16.mxu0 0
        %1003 = vmatpush1.bf16.msra.mxu0 0
        %1004 = vmatprep.subr.bf16.mxu0 0
        %1005 = vmatpush1.bf16.msra.mxu0 0
        %1006 = vmatprep.subr.bf16.mxu0 0
        %1007 = vmatpush1.bf16.msra.mxu0 0
        %1008 = vmatprep.subr.bf16.mxu0 0
        %1009 = vmatpush1.bf16.msra.mxu0 0
        %1010 = vmatprep.subr.bf16.mxu0 0
        %1011 = vmatpush1.bf16.msra.mxu0 0
        %1012 = vmatprep.subr.bf16.mxu0 0
        %1013 = vmatpush1.bf16.msra.mxu0 0
        %1014 = vmatprep.subr.bf16.mxu0 0
        %1015 = vmatpush1.bf16.msra.mxu0 0
        %1016 = vmatprep.subr.bf16.mxu0 0
        %1017 = vmatpush1.bf16.msra.mxu0 0
        %1018 = vmatprep.mubr.bf16.mxu0 0
        %1019 = vmatmul.mubr.bf16.gmra.mrb[0].mxu0 %v974
        %v1020 = vpop.f32.mrb[0].mxu0
        %v1021 = vadd.f32 %v945, %v1020
        %v1022 = vpop.f32.mrb[0].mxu0
        %v1023 = vadd.f32 %v945, %v1022
        %v1024 = vpop.f32.mrb[0].mxu0
        %v1025 = vadd.f32 %v950, %v1024
        %v1026 = vpop.f32.mrb[0].mxu0
        %v1027 = vadd.f32 %v950, %v1026
        %1028 = vmatprep.mubr.bf16.mxu0 0
        %1029 = vmatmul.mubr.bf16.gmra.mrb[0].mxu0 %v977
        %v1030 = vpop.f32.mrb[0].mxu0
        %v1031 = vadd.f32 %v955, %v1030
        %v1032 = vpop.f32.mrb[0].mxu0
        %v1033 = vadd.f32 %v955, %v1032
        %v1034 = vpop.f32.mrb[0].mxu0
        %v1035 = vadd.f32 %v960, %v1034
        %v1036 = vpop.f32.mrb[0].mxu0
        %v1037 = vadd.f32 %v960, %v1036
        %1038 = vdwg.mxu0
        %v1039 = vlaneseq
        %v1040 = vshrl.u32 %v1039, 7
        %v1041 = vsub.s32 0, %v1040
        %v1042 = vrot.slane %v930, %v1041
        %v1043 = vlaneseq
        %v1044 = vshrl.u32 %v1043, 7
        %v1045 = vsub.s32 0, %v1044
        %v1046 = vrot.slane %v931, %v1045
        %v1047 = vmul.f32 %v1021, %v1042
        %v1048 = vmul.f32 %v1023, %v1046
        %v1049 = vmul.f32 %v1025, %v1042
        %v1050 = vmul.f32 %v1027, %v1046
        %v1051 = vmul.f32 %v1031, %v1042
        %v1052 = vmul.f32 %v1033, %v1046
        %v1053 = vmul.f32 %v1035, %v1042
        %v1054 = vmul.f32 %v1037, %v1046
        %v1055 = vpack.c.bf16 %v1049, %v1047
        %v1056 = vpack.c.bf16 %v1050, %v1048
        %v1057 = vpack.c.bf16 %v1053, %v1051
        %v1058 = vpack.c.bf16 %v1054, %v1052
        %v1059 = vld [vmem:[#allocation17] sm:$0xf]
        %v1060 = vld [vmem:[#allocation17 + $0x4] sm:$0xf]
        %v1061 = vld [vmem:[#allocation17 + $0x8] sm:$0xf]
        %v1062 = vld [vmem:[#allocation17 + $0xc] sm:$0xf]
        %v1063 = vld [vmem:[#allocation17 + $0x10] sm:$0xf]
        %v1064 = vld [vmem:[#allocation17 + $0x14] sm:$0xf]
        %v1065 = vld [vmem:[#allocation17 + $0x18] sm:$0xf]
        %v1066 = vld [vmem:[#allocation17 + $0x1c] sm:$0xf]
        %s1067 = scalar_lea.vmem [#allocation17], 32
        %v1068 = vld [vmem:[%s1067] sm:$0xf]
        %v1069 = vld [vmem:[%s1067 + $0x4] sm:$0xf]
        %v1070 = vld [vmem:[%s1067 + $0x8] sm:$0xf]
        %v1071 = vld [vmem:[%s1067 + $0xc] sm:$0xf]
        %v1072 = vld [vmem:[%s1067 + $0x10] sm:$0xf]
        %v1073 = vld [vmem:[%s1067 + $0x14] sm:$0xf]
        %v1074 = vld [vmem:[%s1067 + $0x18] sm:$0xf]
        %v1075 = vld [vmem:[%s1067 + $0x1c] sm:$0xf]
        %v1084 = vunpack.c.l.b16 %v1068
        %v1085 = vunpack.c.l.b16 %v1069
        %v1086 = vunpack.c.l.b16 %v1070
        %v1087 = vunpack.c.l.b16 %v1071
        %v1088 = vunpack.c.l.b16 %v1072
        %v1089 = vunpack.c.l.b16 %v1073
        %v1090 = vunpack.c.l.b16 %v1074
        %v1091 = vunpack.c.l.b16 %v1075
        %v1092 = vpack.c.b16 %v1085, %v1084
        %v1093 = vpack.c.b16 %v1087, %v1086
        %v1094 = vpack.c.b16 %v1089, %v1088
        %v1095 = vpack.c.b16 %v1091, %v1090
        %1100 = vrot.lane.b32.xlu0 %v1055, 127
        %v1101 = vpop.permute.xlu0 %1100
        %1102 = vrot.lane.b32.xlu0 %v1056, 127
        %v1103 = vpop.permute.xlu0 %1102
        %1104 = vrot.lane.b32.xlu0 %v1057, 127
        %v1105 = vpop.permute.xlu0 %1104
        %1106 = vrot.lane.b32.xlu0 %v1058, 127
        %v1107 = vpop.permute.xlu0 %1106
        %vm1108 = vcmask 1039360
        %v1109 = vsel %vm1108, %v1101, %v1103
        %v1110 = vsel %vm1108, %v1105, %v1107
        %vm1115 = vcmask 261120
        %v1117 = vsel %vm1115, %v1092, 0
        %v1120 = vsel %vm1115, %v1093, 0
        %v1123 = vsel %vm1115, %v1094, 0
        %v1126 = vsel %vm1115, %v1095, 0
        %1128 = vmatprep.subr.bf16.mxu0 %v1103
        %1129 = vmatpush1.bf16.msra.mxu0 %v1109
        %1130 = vmatprep.subr.bf16.mxu0 %v1107
        %1131 = vmatpush1.bf16.msra.mxu0 %v1110
        %1132 = vmatprep.subr.bf16.mxu0 0
        %1133 = vmatpush1.bf16.msra.mxu0 0
        %1134 = vmatprep.subr.bf16.mxu0 0
        %1135 = vmatpush1.bf16.msra.mxu0 0
        %1136 = vmatprep.subr.bf16.mxu0 0
        %1137 = vmatpush1.bf16.msra.mxu0 0
        %1138 = vmatprep.subr.bf16.mxu0 0
        %1139 = vmatpush1.bf16.msra.mxu0 0
        %1140 = vmatprep.subr.bf16.mxu0 0
        %1141 = vmatpush1.bf16.msra.mxu0 0
        %1142 = vmatprep.subr.bf16.mxu0 0
        %1143 = vmatpush1.bf16.msra.mxu0 0
        %1144 = vmatprep.subr.bf16.mxu0 0
        %1145 = vmatpush1.bf16.msra.mxu0 0
        %1146 = vmatprep.subr.bf16.mxu0 0
        %1147 = vmatpush1.bf16.msra.mxu0 0
        %1148 = vmatprep.subr.bf16.mxu0 0
        %1149 = vmatpush1.bf16.msra.mxu0 0
        %1150 = vmatprep.subr.bf16.mxu0 0
        %1151 = vmatpush1.bf16.msra.mxu0 0
        %1152 = vmatprep.subr.bf16.mxu0 0
        %1153 = vmatpush1.bf16.msra.mxu0 0
        %1154 = vmatprep.subr.bf16.mxu0 0
        %1155 = vmatpush1.bf16.msra.mxu0 0
        %1156 = vmatprep.subr.bf16.mxu0 0
        %1157 = vmatpush1.bf16.msra.mxu0 0
        %1158 = vmatprep.subr.bf16.mxu0 0
        %1159 = vmatpush1.bf16.msra.mxu0 0
        %1160 = vmatprep.mubr.bf16.mxu0 0
        %1161 = vmatmul.mubr.bf16.gmra.mrb[0].mxu0 %v1117
        %v1162 = vpop.f32.mrb[0].mxu0
        %v1163 = vadd.f32 0.0, %v1162
        %v1164 = vpop.f32.mrb[0].mxu0
        %v1165 = vadd.f32 0.0, %v1164
        %v1166 = vpop.f32.mrb[0].mxu0
        %v1167 = vadd.f32 0.0, %v1166
        %v1168 = vpop.f32.mrb[0].mxu0
        %v1169 = vadd.f32 0.0, %v1168
        %1170 = vmatprep.mubr.bf16.mxu0 0
        %1171 = vmatmul.mubr.bf16.gmra.mrb[0].mxu0 %v1120
        %v1172 = vpop.f32.mrb[0].mxu0
        %v1173 = vadd.f32 0.0, %v1172
        %v1174 = vpop.f32.mrb[0].mxu0
        %v1175 = vadd.f32 0.0, %v1174
        %v1176 = vpop.f32.mrb[0].mxu0
        %v1177 = vadd.f32 0.0, %v1176
        %v1178 = vpop.f32.mrb[0].mxu0
        %v1179 = vadd.f32 0.0, %v1178
        %1180 = vmatprep.mubr.bf16.mxu0 0
        %1181 = vmatmul.mubr.bf16.gmra.mrb[0].mxu0 %v1123
        %v1182 = vpop.f32.mrb[0].mxu0
        %v1183 = vadd.f32 0.0, %v1182
        %v1184 = vpop.f32.mrb[0].mxu0
        %v1185 = vadd.f32 0.0, %v1184
        %v1186 = vpop.f32.mrb[0].mxu0
        %v1187 = vadd.f32 0.0, %v1186
        %v1188 = vpop.f32.mrb[0].mxu0
        %v1189 = vadd.f32 0.0, %v1188
        %1190 = vmatprep.mubr.bf16.mxu0 0
        %1191 = vmatmul.mubr.bf16.gmra.mrb[0].mxu0 %v1126
        %v1192 = vpop.f32.mrb[0].mxu0
        %v1193 = vadd.f32 0.0, %v1192
        %v1194 = vpop.f32.mrb[0].mxu0
        %v1195 = vadd.f32 0.0, %v1194
        %v1196 = vpop.f32.mrb[0].mxu0
        %v1197 = vadd.f32 0.0, %v1196
        %v1198 = vpop.f32.mrb[0].mxu0
        %v1199 = vadd.f32 0.0, %v1198
        %1200 = vdwg.mxu0
        %v1209 = vunpack.c.l.b16 %v1059
        %v1210 = vunpack.c.l.b16 %v1060
        %v1211 = vunpack.c.l.b16 %v1061
        %v1212 = vunpack.c.l.b16 %v1062
        %v1213 = vunpack.c.l.b16 %v1063
        %v1214 = vunpack.c.l.b16 %v1064
        %v1215 = vunpack.c.l.b16 %v1065
        %v1216 = vunpack.c.l.b16 %v1066
        %v1217 = vpack.c.b16 %v1210, %v1209
        %v1218 = vpack.c.b16 %v1212, %v1211
        %v1219 = vpack.c.b16 %v1214, %v1213
        %v1220 = vpack.c.b16 %v1216, %v1215
        %v1222 = vsel %vm1115, %v1217, 0
        %v1225 = vsel %vm1115, %v1218, 0
        %v1228 = vsel %vm1115, %v1219, 0
        %v1231 = vsel %vm1115, %v1220, 0
        %1233 = vmatprep.subr.bf16.mxu0 %v1056
        %1234 = vmatpush1.bf16.msra.mxu0 %v1055
        %1235 = vmatprep.subr.bf16.mxu0 %v1058
        %1236 = vmatpush1.bf16.msra.mxu0 %v1057
        %1237 = vmatprep.subr.bf16.mxu0 0
        %1238 = vmatpush1.bf16.msra.mxu0 0
        %1239 = vmatprep.subr.bf16.mxu0 0
        %1240 = vmatpush1.bf16.msra.mxu0 0
        %1241 = vmatprep.subr.bf16.mxu0 0
        %1242 = vmatpush1.bf16.msra.mxu0 0
        %1243 = vmatprep.subr.bf16.mxu0 0
        %1244 = vmatpush1.bf16.msra.mxu0 0
        %1245 = vmatprep.subr.bf16.mxu0 0
        %1246 = vmatpush1.bf16.msra.mxu0 0
        %1247 = vmatprep.subr.bf16.mxu0 0
        %1248 = vmatpush1.bf16.msra.mxu0 0
        %1249 = vmatprep.subr.bf16.mxu0 0
        %1250 = vmatpush1.bf16.msra.mxu0 0
        %1251 = vmatprep.subr.bf16.mxu0 0
        %1252 = vmatpush1.bf16.msra.mxu0 0
        %1253 = vmatprep.subr.bf16.mxu0 0
        %1254 = vmatpush1.bf16.msra.mxu0 0
        %1255 = vmatprep.subr.bf16.mxu0 0
        %1256 = vmatpush1.bf16.msra.mxu0 0
        %1257 = vmatprep.subr.bf16.mxu0 0
        %1258 = vmatpush1.bf16.msra.mxu0 0
        %1259 = vmatprep.subr.bf16.mxu0 0
        %1260 = vmatpush1.bf16.msra.mxu0 0
        %1261 = vmatprep.subr.bf16.mxu0 0
        %1262 = vmatpush1.bf16.msra.mxu0 0
        %1263 = vmatprep.subr.bf16.mxu0 0
        %1264 = vmatpush1.bf16.msra.mxu0 0
        %1265 = vmatprep.mubr.bf16.mxu0 0
        %1266 = vmatmul.mubr.bf16.gmra.mrb[0].mxu0 %v1222
        %v1267 = vpop.f32.mrb[0].mxu0
        %v1268 = vadd.f32 %v1163, %v1267
        %v1269 = vpop.f32.mrb[0].mxu0
        %v1270 = vadd.f32 %v1165, %v1269
        %v1271 = vpop.f32.mrb[0].mxu0
        %v1272 = vadd.f32 %v1167, %v1271
        %v1273 = vpop.f32.mrb[0].mxu0
        %v1274 = vadd.f32 %v1169, %v1273
        %1275 = vmatprep.mubr.bf16.mxu0 0
        %1276 = vmatmul.mubr.bf16.gmra.mrb[0].mxu0 %v1225
        %v1277 = vpop.f32.mrb[0].mxu0
        %v1278 = vadd.f32 %v1173, %v1277
        %v1279 = vpop.f32.mrb[0].mxu0
        %v1280 = vadd.f32 %v1175, %v1279
        %v1281 = vpop.f32.mrb[0].mxu0
        %v1282 = vadd.f32 %v1177, %v1281
        %v1283 = vpop.f32.mrb[0].mxu0
        %v1284 = vadd.f32 %v1179, %v1283
        %1285 = vmatprep.mubr.bf16.mxu0 0
        %1286 = vmatmul.mubr.bf16.gmra.mrb[0].mxu0 %v1228
        %v1287 = vpop.f32.mrb[0].mxu0
        %v1288 = vadd.f32 %v1183, %v1287
        %v1289 = vpop.f32.mrb[0].mxu0
        %v1290 = vadd.f32 %v1185, %v1289
        %v1291 = vpop.f32.mrb[0].mxu0
        %v1292 = vadd.f32 %v1187, %v1291
        %v1293 = vpop.f32.mrb[0].mxu0
        %v1294 = vadd.f32 %v1189, %v1293
        %1295 = vmatprep.mubr.bf16.mxu0 0
        %1296 = vmatmul.mubr.bf16.gmra.mrb[0].mxu0 %v1231
        %v1297 = vpop.f32.mrb[0].mxu0
        %v1298 = vadd.f32 %v1193, %v1297
        %v1299 = vpop.f32.mrb[0].mxu0
        %v1300 = vadd.f32 %v1195, %v1299
        %v1301 = vpop.f32.mrb[0].mxu0
        %v1302 = vadd.f32 %v1197, %v1301
        %v1303 = vpop.f32.mrb[0].mxu0
        %v1304 = vadd.f32 %v1199, %v1303
        %1305 = vdwg.mxu0
        %s1306 = scalar_lea.vmem [#allocation17], 64
        %v1307 = vld [vmem:[%s1306] sm:$0xf]
        %v1308 = vld [vmem:[%s1306 + $0x4] sm:$0xf]
        %v1309 = vld [vmem:[%s1306 + $0x8] sm:$0xf]
        %v1310 = vld [vmem:[%s1306 + $0xc] sm:$0xf]
        %v1311 = vld [vmem:[%s1306 + $0x10] sm:$0xf]
        %v1312 = vld [vmem:[%s1306 + $0x14] sm:$0xf]
        %v1313 = vld [vmem:[%s1306 + $0x18] sm:$0xf]
        %v1314 = vld [vmem:[%s1306 + $0x1c] sm:$0xf]
        %v1323 = vunpack.c.l.b16 %v1307
        %v1324 = vunpack.c.l.b16 %v1308
        %v1325 = vunpack.c.l.b16 %v1309
        %v1326 = vunpack.c.l.b16 %v1310
        %v1327 = vunpack.c.l.b16 %v1311
        %v1328 = vunpack.c.l.b16 %v1312
        %v1329 = vunpack.c.l.b16 %v1313
        %v1330 = vunpack.c.l.b16 %v1314
        %v1331 = vpack.c.b16 %v1324, %v1323
        %v1332 = vpack.c.b16 %v1326, %v1325
        %v1333 = vpack.c.b16 %v1328, %v1327
        %v1334 = vpack.c.b16 %v1330, %v1329
        %1335 = vrot.lane.b32.xlu0 %v1055, 126
        %v1336 = vpop.permute.xlu0 %1335
        %1337 = vrot.lane.b32.xlu0 %v1056, 126
        %v1338 = vpop.permute.xlu0 %1337
        %1339 = vrot.lane.b32.xlu0 %v1057, 126
        %v1340 = vpop.permute.xlu0 %1339
        %1341 = vrot.lane.b32.xlu0 %v1058, 126
        %v1342 = vpop.permute.xlu0 %1341
        %vm1343 = vcmask 1031168
        %v1344 = vsel %vm1343, %v1336, %v1338
        %v1345 = vsel %vm1343, %v1340, %v1342
        %v1351 = vsel %vm1115, %v1331, 0
        %v1354 = vsel %vm1115, %v1332, 0
        %v1357 = vsel %vm1115, %v1333, 0
        %v1360 = vsel %vm1115, %v1334, 0
        %1362 = vmatprep.subr.bf16.mxu0 %v1338
        %1363 = vmatpush1.bf16.msra.mxu0 %v1344
        %1364 = vmatprep.subr.bf16.mxu0 %v1342
        %1365 = vmatpush1.bf16.msra.mxu0 %v1345
        %1366 = vmatprep.subr.bf16.mxu0 0
        %1367 = vmatpush1.bf16.msra.mxu0 0
        %1368 = vmatprep.subr.bf16.mxu0 0
        %1369 = vmatpush1.bf16.msra.mxu0 0
        %1370 = vmatprep.subr.bf16.mxu0 0
        %1371 = vmatpush1.bf16.msra.mxu0 0
        %1372 = vmatprep.subr.bf16.mxu0 0
        %1373 = vmatpush1.bf16.msra.mxu0 0
        %1374 = vmatprep.subr.bf16.mxu0 0
        %1375 = vmatpush1.bf16.msra.mxu0 0
        %1376 = vmatprep.subr.bf16.mxu0 0
        %1377 = vmatpush1.bf16.msra.mxu0 0
        %1378 = vmatprep.subr.bf16.mxu0 0
        %1379 = vmatpush1.bf16.msra.mxu0 0
        %1380 = vmatprep.subr.bf16.mxu0 0
        %1381 = vmatpush1.bf16.msra.mxu0 0
        %1382 = vmatprep.subr.bf16.mxu0 0
        %1383 = vmatpush1.bf16.msra.mxu0 0
        %1384 = vmatprep.subr.bf16.mxu0 0
        %1385 = vmatpush1.bf16.msra.mxu0 0
        %1386 = vmatprep.subr.bf16.mxu0 0
        %1387 = vmatpush1.bf16.msra.mxu0 0
        %1388 = vmatprep.subr.bf16.mxu0 0
        %1389 = vmatpush1.bf16.msra.mxu0 0
        %1390 = vmatprep.subr.bf16.mxu0 0
        %1391 = vmatpush1.bf16.msra.mxu0 0
        %1392 = vmatprep.subr.bf16.mxu0 0
        %1393 = vmatpush1.bf16.msra.mxu0 0
        %1394 = vmatprep.mubr.bf16.mxu0 0
        %1395 = vmatmul.mubr.bf16.gmra.mrb[0].mxu0 %v1351
        %v1396 = vpop.f32.mrb[0].mxu0
        %v1397 = vadd.f32 0.0, %v1396
        %v1398 = vpop.f32.mrb[0].mxu0
        %v1399 = vadd.f32 0.0, %v1398
        %v1400 = vpop.f32.mrb[0].mxu0
        %v1401 = vadd.f32 0.0, %v1400
        %v1402 = vpop.f32.mrb[0].mxu0
        %v1403 = vadd.f32 0.0, %v1402
        %1404 = vmatprep.mubr.bf16.mxu0 0
        %1405 = vmatmul.mubr.bf16.gmra.mrb[0].mxu0 %v1354
        %v1406 = vpop.f32.mrb[0].mxu0
        %v1407 = vadd.f32 0.0, %v1406
        %v1408 = vpop.f32.mrb[0].mxu0
        %v1409 = vadd.f32 0.0, %v1408
        %v1410 = vpop.f32.mrb[0].mxu0
        %v1411 = vadd.f32 0.0, %v1410
        %v1412 = vpop.f32.mrb[0].mxu0
        %v1413 = vadd.f32 0.0, %v1412
        %1414 = vmatprep.mubr.bf16.mxu0 0
        %1415 = vmatmul.mubr.bf16.gmra.mrb[0].mxu0 %v1357
        %v1416 = vpop.f32.mrb[0].mxu0
        %v1417 = vadd.f32 0.0, %v1416
        %v1418 = vpop.f32.mrb[0].mxu0
        %v1419 = vadd.f32 0.0, %v1418
        %v1420 = vpop.f32.mrb[0].mxu0
        %v1421 = vadd.f32 0.0, %v1420
        %v1422 = vpop.f32.mrb[0].mxu0
        %v1423 = vadd.f32 0.0, %v1422
        %1424 = vmatprep.mubr.bf16.mxu0 0
        %1425 = vmatmul.mubr.bf16.gmra.mrb[0].mxu0 %v1360
        %v1426 = vpop.f32.mrb[0].mxu0
        %v1427 = vadd.f32 0.0, %v1426
        %v1428 = vpop.f32.mrb[0].mxu0
        %v1429 = vadd.f32 0.0, %v1428
        %v1430 = vpop.f32.mrb[0].mxu0
        %v1431 = vadd.f32 0.0, %v1430
        %v1432 = vpop.f32.mrb[0].mxu0
        %v1433 = vadd.f32 0.0, %v1432
        %1434 = vdwg.mxu0
        %v1435 = vadd.f32 %v1268, %v1397
        %v1436 = vadd.f32 %v1270, %v1399
        %v1437 = vadd.f32 %v1272, %v1401
        %v1438 = vadd.f32 %v1274, %v1403
        %v1439 = vadd.f32 %v1278, %v1407
        %v1440 = vadd.f32 %v1280, %v1409
        %v1441 = vadd.f32 %v1282, %v1411
        %v1442 = vadd.f32 %v1284, %v1413
        %v1443 = vadd.f32 %v1288, %v1417
        %v1444 = vadd.f32 %v1290, %v1419
        %v1445 = vadd.f32 %v1292, %v1421
        %v1446 = vadd.f32 %v1294, %v1423
        %v1447 = vadd.f32 %v1298, %v1427
        %v1448 = vadd.f32 %v1300, %v1429
        %v1449 = vadd.f32 %v1302, %v1431
        %v1450 = vadd.f32 %v1304, %v1433
        %s1451 = scalar_lea.vmem [#allocation17], 96
        %v1452 = vld [vmem:[%s1451] sm:$0xf]
        %v1453 = vld [vmem:[%s1451 + $0x4] sm:$0xf]
        %v1454 = vld [vmem:[%s1451 + $0x8] sm:$0xf]
        %v1455 = vld [vmem:[%s1451 + $0xc] sm:$0xf]
        %v1456 = vld [vmem:[%s1451 + $0x10] sm:$0xf]
        %v1457 = vld [vmem:[%s1451 + $0x14] sm:$0xf]
        %v1458 = vld [vmem:[%s1451 + $0x18] sm:$0xf]
        %v1459 = vld [vmem:[%s1451 + $0x1c] sm:$0xf]
        %v1468 = vunpack.c.l.b16 %v1452
        %v1469 = vunpack.c.l.b16 %v1453
        %v1470 = vunpack.c.l.b16 %v1454
        %v1471 = vunpack.c.l.b16 %v1455
        %v1472 = vunpack.c.l.b16 %v1456
        %v1473 = vunpack.c.l.b16 %v1457
        %v1474 = vunpack.c.l.b16 %v1458
        %v1475 = vunpack.c.l.b16 %v1459
        %v1476 = vpack.c.b16 %v1469, %v1468
        %v1477 = vpack.c.b16 %v1471, %v1470
        %v1478 = vpack.c.b16 %v1473, %v1472
        %v1479 = vpack.c.b16 %v1475, %v1474
        %1480 = vrot.lane.b32.xlu0 %v1055, 125
        %v1481 = vpop.permute.xlu0 %1480
        %1482 = vrot.lane.b32.xlu0 %v1056, 125
        %v1483 = vpop.permute.xlu0 %1482
        %1484 = vrot.lane.b32.xlu0 %v1057, 125
        %v1485 = vpop.permute.xlu0 %1484
        %1486 = vrot.lane.b32.xlu0 %v1058, 125
        %v1487 = vpop.permute.xlu0 %1486
        %vm1488 = vcmask 1022976
        %v1489 = vsel %vm1488, %v1481, %v1483
        %v1490 = vsel %vm1488, %v1485, %v1487
        %v1496 = vsel %vm1115, %v1476, 0
        %v1499 = vsel %vm1115, %v1477, 0
        %v1502 = vsel %vm1115, %v1478, 0
        %v1505 = vsel %vm1115, %v1479, 0
        %1507 = vmatprep.subr.bf16.mxu0 %v1483
        %1508 = vmatpush1.bf16.msra.mxu0 %v1489
        %1509 = vmatprep.subr.bf16.mxu0 %v1487
        %1510 = vmatpush1.bf16.msra.mxu0 %v1490
        %1511 = vmatprep.subr.bf16.mxu0 0
        %1512 = vmatpush1.bf16.msra.mxu0 0
        %1513 = vmatprep.subr.bf16.mxu0 0
        %1514 = vmatpush1.bf16.msra.mxu0 0
        %1515 = vmatprep.subr.bf16.mxu0 0
        %1516 = vmatpush1.bf16.msra.mxu0 0
        %1517 = vmatprep.subr.bf16.mxu0 0
        %1518 = vmatpush1.bf16.msra.mxu0 0
        %1519 = vmatprep.subr.bf16.mxu0 0
        %1520 = vmatpush1.bf16.msra.mxu0 0
        %1521 = vmatprep.subr.bf16.mxu0 0
        %1522 = vmatpush1.bf16.msra.mxu0 0
        %1523 = vmatprep.subr.bf16.mxu0 0
        %1524 = vmatpush1.bf16.msra.mxu0 0
        %1525 = vmatprep.subr.bf16.mxu0 0
        %1526 = vmatpush1.bf16.msra.mxu0 0
        %1527 = vmatprep.subr.bf16.mxu0 0
        %1528 = vmatpush1.bf16.msra.mxu0 0
        %1529 = vmatprep.subr.bf16.mxu0 0
        %1530 = vmatpush1.bf16.msra.mxu0 0
        %1531 = vmatprep.subr.bf16.mxu0 0
        %1532 = vmatpush1.bf16.msra.mxu0 0
        %1533 = vmatprep.subr.bf16.mxu0 0
        %1534 = vmatpush1.bf16.msra.mxu0 0
        %1535 = vmatprep.subr.bf16.mxu0 0
        %1536 = vmatpush1.bf16.msra.mxu0 0
        %1537 = vmatprep.subr.bf16.mxu0 0
        %1538 = vmatpush1.bf16.msra.mxu0 0
        %1539 = vmatprep.mubr.bf16.mxu0 0
        %1540 = vmatmul.mubr.bf16.gmra.mrb[0].mxu0 %v1496
        %v1541 = vpop.f32.mrb[0].mxu0
        %v1542 = vadd.f32 0.0, %v1541
        %v1543 = vpop.f32.mrb[0].mxu0
        %v1544 = vadd.f32 0.0, %v1543
        %v1545 = vpop.f32.mrb[0].mxu0
        %v1546 = vadd.f32 0.0, %v1545
        %v1547 = vpop.f32.mrb[0].mxu0
        %v1548 = vadd.f32 0.0, %v1547
        %1549 = vmatprep.mubr.bf16.mxu0 0
        %1550 = vmatmul.mubr.bf16.gmra.mrb[0].mxu0 %v1499
        %v1551 = vpop.f32.mrb[0].mxu0
        %v1552 = vadd.f32 0.0, %v1551
        %v1553 = vpop.f32.mrb[0].mxu0
        %v1554 = vadd.f32 0.0, %v1553
        %v1555 = vpop.f32.mrb[0].mxu0
        %v1556 = vadd.f32 0.0, %v1555
        %v1557 = vpop.f32.mrb[0].mxu0
        %v1558 = vadd.f32 0.0, %v1557
        %1559 = vmatprep.mubr.bf16.mxu0 0
        %1560 = vmatmul.mubr.bf16.gmra.mrb[0].mxu0 %v1502
        %v1561 = vpop.f32.mrb[0].mxu0
        %v1562 = vadd.f32 0.0, %v1561
        %v1563 = vpop.f32.mrb[0].mxu0
        %v1564 = vadd.f32 0.0, %v1563
        %v1565 = vpop.f32.mrb[0].mxu0
        %v1566 = vadd.f32 0.0, %v1565
        %v1567 = vpop.f32.mrb[0].mxu0
        %v1568 = vadd.f32 0.0, %v1567
        %1569 = vmatprep.mubr.bf16.mxu0 0
        %1570 = vmatmul.mubr.bf16.gmra.mrb[0].mxu0 %v1505
        %v1571 = vpop.f32.mrb[0].mxu0
        %v1572 = vadd.f32 0.0, %v1571
        %v1573 = vpop.f32.mrb[0].mxu0
        %v1574 = vadd.f32 0.0, %v1573
        %v1575 = vpop.f32.mrb[0].mxu0
        %v1576 = vadd.f32 0.0, %v1575
        %v1577 = vpop.f32.mrb[0].mxu0
        %v1578 = vadd.f32 0.0, %v1577
        %1579 = vdwg.mxu0
        %v1580 = vadd.f32 %v1435, %v1542
        %v1581 = vadd.f32 %v1436, %v1544
        %v1582 = vadd.f32 %v1437, %v1546
        %v1583 = vadd.f32 %v1438, %v1548
        %v1584 = vadd.f32 %v1439, %v1552
        %v1585 = vadd.f32 %v1440, %v1554
        %v1586 = vadd.f32 %v1441, %v1556
        %v1587 = vadd.f32 %v1442, %v1558
        %v1588 = vadd.f32 %v1443, %v1562
        %v1589 = vadd.f32 %v1444, %v1564
        %v1590 = vadd.f32 %v1445, %v1566
        %v1591 = vadd.f32 %v1446, %v1568
        %v1592 = vadd.f32 %v1447, %v1572
        %v1593 = vadd.f32 %v1448, %v1574
        %v1594 = vadd.f32 %v1449, %v1576
        %v1595 = vadd.f32 %v1450, %v1578
        %s1596 = scalar_lea.vmem [#allocation17], 128
        %v1597 = vld [vmem:[%s1596] sm:$0xf]
        %v1598 = vld [vmem:[%s1596 + $0x4] sm:$0xf]
        %v1599 = vld [vmem:[%s1596 + $0x8] sm:$0xf]
        %v1600 = vld [vmem:[%s1596 + $0xc] sm:$0xf]
        %v1601 = vld [vmem:[%s1596 + $0x10] sm:$0xf]
        %v1602 = vld [vmem:[%s1596 + $0x14] sm:$0xf]
        %v1603 = vld [vmem:[%s1596 + $0x18] sm:$0xf]
        %v1604 = vld [vmem:[%s1596 + $0x1c] sm:$0xf]
        %v1613 = vunpack.c.l.b16 %v1597
        %v1614 = vunpack.c.l.b16 %v1598
        %v1615 = vunpack.c.l.b16 %v1599
        %v1616 = vunpack.c.l.b16 %v1600
        %v1617 = vunpack.c.l.b16 %v1601
        %v1618 = vunpack.c.l.b16 %v1602
        %v1619 = vunpack.c.l.b16 %v1603
        %v1620 = vunpack.c.l.b16 %v1604
        %v1621 = vpack.c.b16 %v1614, %v1613
        %v1622 = vpack.c.b16 %v1616, %v1615
        %v1623 = vpack.c.b16 %v1618, %v1617
        %v1624 = vpack.c.b16 %v1620, %v1619
        %1625 = vrot.lane.b32.xlu0 %v1055, 124
        %v1626 = vpop.permute.xlu0 %1625
        %1627 = vrot.lane.b32.xlu0 %v1056, 124
        %v1628 = vpop.permute.xlu0 %1627
        %1629 = vrot.lane.b32.xlu0 %v1057, 124
        %v1630 = vpop.permute.xlu0 %1629
        %1631 = vrot.lane.b32.xlu0 %v1058, 124
        %v1632 = vpop.permute.xlu0 %1631
        %vm1633 = vcmask 1014784
        %v1634 = vsel %vm1633, %v1626, %v1628
        %v1635 = vsel %vm1633, %v1630, %v1632
        %v1641 = vsel %vm1115, %v1621, 0
        %v1644 = vsel %vm1115, %v1622, 0
        %v1647 = vsel %vm1115, %v1623, 0
        %v1650 = vsel %vm1115, %v1624, 0
        %1652 = vmatprep.subr.bf16.mxu0 %v1628
        %1653 = vmatpush1.bf16.msra.mxu0 %v1634
        %1654 = vmatprep.subr.bf16.mxu0 %v1632
        %1655 = vmatpush1.bf16.msra.mxu0 %v1635
        %1656 = vmatprep.subr.bf16.mxu0 0
        %1657 = vmatpush1.bf16.msra.mxu0 0
        %1658 = vmatprep.subr.bf16.mxu0 0
        %1659 = vmatpush1.bf16.msra.mxu0 0
        %1660 = vmatprep.subr.bf16.mxu0 0
        %1661 = vmatpush1.bf16.msra.mxu0 0
        %1662 = vmatprep.subr.bf16.mxu0 0
        %1663 = vmatpush1.bf16.msra.mxu0 0
        %1664 = vmatprep.subr.bf16.mxu0 0
        %1665 = vmatpush1.bf16.msra.mxu0 0
        %1666 = vmatprep.subr.bf16.mxu0 0
        %1667 = vmatpush1.bf16.msra.mxu0 0
        %1668 = vmatprep.subr.bf16.mxu0 0
        %1669 = vmatpush1.bf16.msra.mxu0 0
        %1670 = vmatprep.subr.bf16.mxu0 0
        %1671 = vmatpush1.bf16.msra.mxu0 0
        %1672 = vmatprep.subr.bf16.mxu0 0
        %1673 = vmatpush1.bf16.msra.mxu0 0
        %1674 = vmatprep.subr.bf16.mxu0 0
        %1675 = vmatpush1.bf16.msra.mxu0 0
        %1676 = vmatprep.subr.bf16.mxu0 0
        %1677 = vmatpush1.bf16.msra.mxu0 0
        %1678 = vmatprep.subr.bf16.mxu0 0
        %1679 = vmatpush1.bf16.msra.mxu0 0
        %1680 = vmatprep.subr.bf16.mxu0 0
        %1681 = vmatpush1.bf16.msra.mxu0 0
        %1682 = vmatprep.subr.bf16.mxu0 0
        %1683 = vmatpush1.bf16.msra.mxu0 0
        %1684 = vmatprep.mubr.bf16.mxu0 0
        %1685 = vmatmul.mubr.bf16.gmra.mrb[0].mxu0 %v1641
        %v1686 = vpop.f32.mrb[0].mxu0
        %v1687 = vadd.f32 0.0, %v1686
        %v1688 = vpop.f32.mrb[0].mxu0
        %v1689 = vadd.f32 0.0, %v1688
        %v1690 = vpop.f32.mrb[0].mxu0
        %v1691 = vadd.f32 0.0, %v1690
        %v1692 = vpop.f32.mrb[0].mxu0
        %v1693 = vadd.f32 0.0, %v1692
        %1694 = vmatprep.mubr.bf16.mxu0 0
        %1695 = vmatmul.mubr.bf16.gmra.mrb[0].mxu0 %v1644
        %v1696 = vpop.f32.mrb[0].mxu0
        %v1697 = vadd.f32 0.0, %v1696
        %v1698 = vpop.f32.mrb[0].mxu0
        %v1699 = vadd.f32 0.0, %v1698
        %v1700 = vpop.f32.mrb[0].mxu0
        %v1701 = vadd.f32 0.0, %v1700
        %v1702 = vpop.f32.mrb[0].mxu0
        %v1703 = vadd.f32 0.0, %v1702
        %1704 = vmatprep.mubr.bf16.mxu0 0
        %1705 = vmatmul.mubr.bf16.gmra.mrb[0].mxu0 %v1647
        %v1706 = vpop.f32.mrb[0].mxu0
        %v1707 = vadd.f32 0.0, %v1706
        %v1708 = vpop.f32.mrb[0].mxu0
        %v1709 = vadd.f32 0.0, %v1708
        %v1710 = vpop.f32.mrb[0].mxu0
        %v1711 = vadd.f32 0.0, %v1710
        %v1712 = vpop.f32.mrb[0].mxu0
        %v1713 = vadd.f32 0.0, %v1712
        %1714 = vmatprep.mubr.bf16.mxu0 0
        %1715 = vmatmul.mubr.bf16.gmra.mrb[0].mxu0 %v1650
        %v1716 = vpop.f32.mrb[0].mxu0
        %v1717 = vadd.f32 0.0, %v1716
        %v1718 = vpop.f32.mrb[0].mxu0
        %v1719 = vadd.f32 0.0, %v1718
        %v1720 = vpop.f32.mrb[0].mxu0
        %v1721 = vadd.f32 0.0, %v1720
        %v1722 = vpop.f32.mrb[0].mxu0
        %v1723 = vadd.f32 0.0, %v1722
        %1724 = vdwg.mxu0
        %v1725 = vadd.f32 %v1580, %v1687
        %v1726 = vadd.f32 %v1581, %v1689
        %v1727 = vadd.f32 %v1582, %v1691
        %v1728 = vadd.f32 %v1583, %v1693
        %v1729 = vadd.f32 %v1584, %v1697
        %v1730 = vadd.f32 %v1585, %v1699
        %v1731 = vadd.f32 %v1586, %v1701
        %v1732 = vadd.f32 %v1587, %v1703
        %v1733 = vadd.f32 %v1588, %v1707
        %v1734 = vadd.f32 %v1589, %v1709
        %v1735 = vadd.f32 %v1590, %v1711
        %v1736 = vadd.f32 %v1591, %v1713
        %v1737 = vadd.f32 %v1592, %v1717
        %v1738 = vadd.f32 %v1593, %v1719
        %v1739 = vadd.f32 %v1594, %v1721
        %v1740 = vadd.f32 %v1595, %v1723
        %v1741 = vld [vmem:[#allocation19] sm:$0xff]
        %v1742 = vld [vmem:[#allocation19 + $0x8] sm:$0xff]
        %v1743 = vld [vmem:[#allocation19 + $0x10] sm:$0xff]
        %v1744 = vld [vmem:[#allocation19 + $0x18] sm:$0xff]
        %v1745 = vld [vmem:[#allocation19 + $0x20] sm:$0xff]
        %v1746 = vld [vmem:[#allocation19 + $0x28] sm:$0xff]
        %v1747 = vld [vmem:[#allocation19 + $0x30] sm:$0xff]
        %v1748 = vld [vmem:[#allocation19 + $0x38] sm:$0xff]
        %1750 = vset.pattern.permute.xlu0 0
        %1751 = vperm.xlu0 %1750, %v1741
        %v1752 = vpop.permute.xlu0 %1751
        %1755 = vset.pattern.permute.xlu0 0
        %1756 = vperm.xlu0 %1755, %v1742
        %v1757 = vpop.permute.xlu0 %1756
        %1760 = vset.pattern.permute.xlu0 0
        %1761 = vperm.xlu0 %1760, %v1743
        %v1762 = vpop.permute.xlu0 %1761
        %1765 = vset.pattern.permute.xlu0 0
        %1766 = vperm.xlu0 %1765, %v1744
        %v1767 = vpop.permute.xlu0 %1766
        %1770 = vset.pattern.permute.xlu0 0
        %1771 = vperm.xlu0 %1770, %v1745
        %v1772 = vpop.permute.xlu0 %1771
        %1775 = vset.pattern.permute.xlu0 0
        %1776 = vperm.xlu0 %1775, %v1746
        %v1777 = vpop.permute.xlu0 %1776
        %1780 = vset.pattern.permute.xlu0 0
        %1781 = vperm.xlu0 %1780, %v1747
        %v1782 = vpop.permute.xlu0 %1781
        %1785 = vset.pattern.permute.xlu0 0
        %1786 = vperm.xlu0 %1785, %v1748
        %v1787 = vpop.permute.xlu0 %1786
        %v1789 = vadd.f32 %v1725, %v1752
        %v1790 = vadd.f32 %v1726, %v1752
        %v1791 = vadd.f32 %v1727, %v1757
        %v1792 = vadd.f32 %v1728, %v1757
        %v1793 = vadd.f32 %v1729, %v1762
        %v1794 = vadd.f32 %v1730, %v1762
        %v1795 = vadd.f32 %v1731, %v1767
        %v1796 = vadd.f32 %v1732, %v1767
        %v1797 = vadd.f32 %v1733, %v1772
        %v1798 = vadd.f32 %v1734, %v1772
        %v1799 = vadd.f32 %v1735, %v1777
        %v1800 = vadd.f32 %v1736, %v1777
        %v1801 = vadd.f32 %v1737, %v1782
        %v1802 = vadd.f32 %v1738, %v1782
        %v1803 = vadd.f32 %v1739, %v1787
        %v1804 = vadd.f32 %v1740, %v1787
        %v1805 = vtanh.pop %v1789
        %v1806 = vtanh.pop %v1790
        %v1807 = vtanh.pop %v1791
        %v1808 = vtanh.pop %v1792
        %v1809 = vtanh.pop %v1793
        %v1810 = vtanh.pop %v1794
        %v1811 = vtanh.pop %v1795
        %v1812 = vtanh.pop %v1796
        %v1813 = vxor.u32 %v1797, 2147483648
        %v1814 = vxor.u32 %v1798, 2147483648
        %v1815 = vxor.u32 %v1799, 2147483648
        %v1816 = vxor.u32 %v1800, 2147483648
        %v1817 = vxor.u32 %v1801, 2147483648
        %v1818 = vxor.u32 %v1802, 2147483648
        %v1819 = vxor.u32 %v1803, 2147483648
        %v1820 = vxor.u32 %v1804, 2147483648
        %v1821 = vmul.f32 %v1813, 1.442695
        %v1822 = vpow.pop %v1821
        %v1823 = vmul.f32 %v1814, 1.442695
        %v1824 = vpow.pop %v1823
        %v1825 = vmul.f32 %v1815, 1.442695
        %v1826 = vpow.pop %v1825
        %v1827 = vmul.f32 %v1816, 1.442695
        %v1828 = vpow.pop %v1827
        %v1829 = vmul.f32 %v1817, 1.442695
        %v1830 = vpow.pop %v1829
        %v1831 = vmul.f32 %v1818, 1.442695
        %v1832 = vpow.pop %v1831
        %v1833 = vmul.f32 %v1819, 1.442695
        %v1834 = vpow.pop %v1833
        %v1835 = vmul.f32 %v1820, 1.442695
        %v1836 = vpow.pop %v1835
        %v1837 = vadd.f32 %v1822, 1.0
        %v1838 = vadd.f32 %v1824, 1.0
        %v1839 = vadd.f32 %v1826, 1.0
        %v1840 = vadd.f32 %v1828, 1.0
        %v1841 = vadd.f32 %v1830, 1.0
        %v1842 = vadd.f32 %v1832, 1.0
        %v1843 = vadd.f32 %v1834, 1.0
        %v1844 = vadd.f32 %v1836, 1.0
        %v1845 = vrcp.pop %v1837
        %v1846 = vmul.f32 1.0, %v1845
        %v1847 = vrcp.pop %v1838
        %v1848 = vmul.f32 1.0, %v1847
        %v1849 = vrcp.pop %v1839
        %v1850 = vmul.f32 1.0, %v1849
        %v1851 = vrcp.pop %v1840
        %v1852 = vmul.f32 1.0, %v1851
        %v1853 = vrcp.pop %v1841
        %v1854 = vmul.f32 1.0, %v1853
        %v1855 = vrcp.pop %v1842
        %v1856 = vmul.f32 1.0, %v1855
        %v1857 = vrcp.pop %v1843
        %v1858 = vmul.f32 1.0, %v1857
        %v1859 = vrcp.pop %v1844
        %v1860 = vmul.f32 1.0, %v1859
        %v1861 = vmul.f32 %v1805, %v1846
        %v1862 = vmul.f32 %v1806, %v1848
        %v1863 = vmul.f32 %v1807, %v1850
        %v1864 = vmul.f32 %v1808, %v1852
        %v1865 = vmul.f32 %v1809, %v1854
        %v1866 = vmul.f32 %v1810, %v1856
        %v1867 = vmul.f32 %v1811, %v1858
        %v1868 = vmul.f32 %v1812, %v1860
        %v1869 = vld [vmem:[#allocation20] sm:$0xf]
        %v1870 = vld [vmem:[#allocation20 + $0x4] sm:$0xf]
        %v1871 = vld [vmem:[#allocation20 + $0x8] sm:$0xf]
        %v1872 = vld [vmem:[#allocation20 + $0xc] sm:$0xf]
        %v1873 = vld [vmem:[#allocation20 + $0x10] sm:$0xf]
        %v1874 = vld [vmem:[#allocation20 + $0x14] sm:$0xf]
        %v1875 = vld [vmem:[#allocation20 + $0x18] sm:$0xf]
        %v1876 = vld [vmem:[#allocation20 + $0x1c] sm:$0xf]
        %v1877 = vpack.c.bf16 %v1863, %v1861
        %v1878 = vpack.c.bf16 %v1864, %v1862
        %v1879 = vpack.c.bf16 %v1867, %v1865
        %v1880 = vpack.c.bf16 %v1868, %v1866
        %v1881 = vld [vmem:[#allocation22] sm:$0xff]
        %v1882 = vld [vmem:[#allocation22 + $0x8] sm:$0xff]
        %v1883 = vld [vmem:[#allocation22 + $0x10] sm:$0xff]
        %v1884 = vld [vmem:[#allocation22 + $0x18] sm:$0xff]
        %v1885 = vld [vmem:[#allocation22 + $0x20] sm:$0xff]
        %v1886 = vld [vmem:[#allocation22 + $0x28] sm:$0xff]
        %v1887 = vld [vmem:[#allocation22 + $0x30] sm:$0xff]
        %v1888 = vld [vmem:[#allocation22 + $0x38] sm:$0xff]
        %1890 = vset.pattern.permute.xlu0 0
        %1891 = vperm.xlu0 %1890, %v1881
        %v1892 = vpop.permute.xlu0 %1891
        %1895 = vset.pattern.permute.xlu0 0
        %1896 = vperm.xlu0 %1895, %v1882
        %v1897 = vpop.permute.xlu0 %1896
        %1900 = vset.pattern.permute.xlu0 0
        %1901 = vperm.xlu0 %1900, %v1883
        %v1902 = vpop.permute.xlu0 %1901
        %1905 = vset.pattern.permute.xlu0 0
        %1906 = vperm.xlu0 %1905, %v1884
        %v1907 = vpop.permute.xlu0 %1906
        %1910 = vset.pattern.permute.xlu0 0
        %1911 = vperm.xlu0 %1910, %v1885
        %v1912 = vpop.permute.xlu0 %1911
        %1915 = vset.pattern.permute.xlu0 0
        %1916 = vperm.xlu0 %1915, %v1886
        %v1917 = vpop.permute.xlu0 %1916
        %1920 = vset.pattern.permute.xlu0 0
        %1921 = vperm.xlu0 %1920, %v1887
        %v1922 = vpop.permute.xlu0 %1921
        %1925 = vset.pattern.permute.xlu0 0
        %1926 = vperm.xlu0 %1925, %v1888
        %v1927 = vpop.permute.xlu0 %1926
        %v1937 = vunpack.c.l.b16 %v1869
        %v1938 = vunpack.c.l.b16 %v1870
        %v1939 = vunpack.c.l.b16 %v1871
        %v1940 = vunpack.c.l.b16 %v1872
        %v1941 = vunpack.c.l.b16 %v1873
        %v1942 = vunpack.c.l.b16 %v1874
        %v1943 = vunpack.c.l.b16 %v1875
        %v1944 = vunpack.c.l.b16 %v1876
        %v1945 = vpack.c.b16 %v1938, %v1937
        %v1946 = vpack.c.b16 %v1940, %v1939
        %v1947 = vpack.c.b16 %v1942, %v1941
        %v1948 = vpack.c.b16 %v1944, %v1943
        %v1950 = vsel %vm1115, %v1945, 0
        %v1953 = vsel %vm1115, %v1946, 0
        %v1956 = vsel %vm1115, %v1947, 0
        %v1959 = vsel %vm1115, %v1948, 0
        %1961 = vmatprep.subr.bf16.mxu0 %v1878
        %1962 = vmatpush1.bf16.msra.mxu0 %v1877
        %1963 = vmatprep.subr.bf16.mxu0 %v1880
        %1964 = vmatpush1.bf16.msra.mxu0 %v1879
        %1965 = vmatprep.subr.bf16.mxu0 0
        %1966 = vmatpush1.bf16.msra.mxu0 0
        %1967 = vmatprep.subr.bf16.mxu0 0
        %1968 = vmatpush1.bf16.msra.mxu0 0
        %1969 = vmatprep.subr.bf16.mxu0 0
        %1970 = vmatpush1.bf16.msra.mxu0 0
        %1971 = vmatprep.subr.bf16.mxu0 0
        %1972 = vmatpush1.bf16.msra.mxu0 0
        %1973 = vmatprep.subr.bf16.mxu0 0
        %1974 = vmatpush1.bf16.msra.mxu0 0
        %1975 = vmatprep.subr.bf16.mxu0 0
        %1976 = vmatpush1.bf16.msra.mxu0 0
        %1977 = vmatprep.subr.bf16.mxu0 0
        %1978 = vmatpush1.bf16.msra.mxu0 0
        %1979 = vmatprep.subr.bf16.mxu0 0
        %1980 = vmatpush1.bf16.msra.mxu0 0
        %1981 = vmatprep.subr.bf16.mxu0 0
        %1982 = vmatpush1.bf16.msra.mxu0 0
        %1983 = vmatprep.subr.bf16.mxu0 0
        %1984 = vmatpush1.bf16.msra.mxu0 0
        %1985 = vmatprep.subr.bf16.mxu0 0
        %1986 = vmatpush1.bf16.msra.mxu0 0
        %1987 = vmatprep.subr.bf16.mxu0 0
        %1988 = vmatpush1.bf16.msra.mxu0 0
        %1989 = vmatprep.subr.bf16.mxu0 0
        %1990 = vmatpush1.bf16.msra.mxu0 0
        %1991 = vmatprep.subr.bf16.mxu0 0
        %1992 = vmatpush1.bf16.msra.mxu0 0
        %1993 = vmatprep.mubr.bf16.mxu0 0
        %1994 = vmatmul.mubr.bf16.gmra.mrb[0].mxu0 %v1950
        %v1995 = vpop.f32.mrb[0].mxu0
        %v1996 = vadd.f32 %v1892, %v1995
        %v1997 = vpop.f32.mrb[0].mxu0
        %v1998 = vadd.f32 %v1892, %v1997
        %v1999 = vpop.f32.mrb[0].mxu0
        %v2000 = vadd.f32 %v1897, %v1999
        %v2001 = vpop.f32.mrb[0].mxu0
        %v2002 = vadd.f32 %v1897, %v2001
        %2003 = vmatprep.mubr.bf16.mxu0 0
        %2004 = vmatmul.mubr.bf16.gmra.mrb[0].mxu0 %v1953
        %v2005 = vpop.f32.mrb[0].mxu0
        %v2006 = vadd.f32 %v1902, %v2005
        %v2007 = vpop.f32.mrb[0].mxu0
        %v2008 = vadd.f32 %v1902, %v2007
        %v2009 = vpop.f32.mrb[0].mxu0
        %v2010 = vadd.f32 %v1907, %v2009
        %v2011 = vpop.f32.mrb[0].mxu0
        %v2012 = vadd.f32 %v1907, %v2011
        %2013 = vmatprep.mubr.bf16.mxu0 0
        %2014 = vmatmul.mubr.bf16.gmra.mrb[0].mxu0 %v1956
        %v2015 = vpop.f32.mrb[0].mxu0
        %v2016 = vadd.f32 %v1912, %v2015
        %v2017 = vpop.f32.mrb[0].mxu0
        %v2018 = vadd.f32 %v1912, %v2017
        %v2019 = vpop.f32.mrb[0].mxu0
        %v2020 = vadd.f32 %v1917, %v2019
        %v2021 = vpop.f32.mrb[0].mxu0
        %v2022 = vadd.f32 %v1917, %v2021
        %2023 = vmatprep.mubr.bf16.mxu0 0
        %2024 = vmatmul.mubr.bf16.gmra.mrb[0].mxu0 %v1959
        %v2025 = vpop.f32.mrb[0].mxu0
        %v2026 = vadd.f32 %v1922, %v2025
        %v2027 = vpop.f32.mrb[0].mxu0
        %v2028 = vadd.f32 %v1922, %v2027
        %v2029 = vpop.f32.mrb[0].mxu0
        %v2030 = vadd.f32 %v1927, %v2029
        %v2031 = vpop.f32.mrb[0].mxu0
        %v2032 = vadd.f32 %v1927, %v2031
        %2033 = vdwg.mxu0
        %2042 = vrot.lane.b32.xlu0 %v1996, 2
        %v2043 = vpop.permute.xlu0 %2042
        %2044 = vrot.lane.b32.xlu0 %v1998, 2
        %v2045 = vpop.permute.xlu0 %2044
        %2046 = vrot.lane.b32.xlu0 %v2000, 2
        %v2047 = vpop.permute.xlu0 %2046
        %2048 = vrot.lane.b32.xlu0 %v2002, 2
        %v2049 = vpop.permute.xlu0 %2048
        %2050 = vrot.lane.b32.xlu0 %v2006, 2
        %v2051 = vpop.permute.xlu0 %2050
        %2052 = vrot.lane.b32.xlu0 %v2008, 2
        %v2053 = vpop.permute.xlu0 %2052
        %2054 = vrot.lane.b32.xlu0 %v2010, 2
        %v2055 = vpop.permute.xlu0 %2054
        %2056 = vrot.lane.b32.xlu0 %v2012, 2
        %v2057 = vpop.permute.xlu0 %2056
        %vm2058 = vcmask 15360
        %v2059 = vsel %vm2058, %v2043, %v2045
        %v2060 = vsel %vm2058, %v2047, %v2049
        %v2061 = vsel %vm2058, %v2051, %v2053
        %v2062 = vsel %vm2058, %v2055, %v2057
        %v2071 = vadd.f32 %v1047, %v2043
        %v2072 = vadd.f32 %v1048, %v2059
        %v2073 = vadd.f32 %v1049, %v2047
        %v2074 = vadd.f32 %v1050, %v2060
        %v2075 = vadd.f32 %v1051, %v2051
        %v2076 = vadd.f32 %v1052, %v2061
        %v2077 = vadd.f32 %v1053, %v2055
        %v2078 = vadd.f32 %v1054, %v2062
        %v2079 = vmul.f32 %v2071, %v1042
        %v2080 = vmul.f32 %v2072, %v1046
        %v2081 = vmul.f32 %v2073, %v1042
        %v2082 = vmul.f32 %v2074, %v1046
        %v2083 = vmul.f32 %v2075, %v1042
        %v2084 = vmul.f32 %v2076, %v1046
        %v2085 = vmul.f32 %v2077, %v1042
        %v2086 = vmul.f32 %v2078, %v1046
        %v2087 = vadd.f32 %v2016, 0.0
        %v2088 = vadd.f32 %v2018, 0.0
        %v2089 = vadd.f32 %v2020, 0.0
        %v2090 = vadd.f32 %v2022, 0.0
        %v2091 = vadd.f32 %v2026, 0.0
        %v2092 = vadd.f32 %v2028, 0.0
        %v2093 = vadd.f32 %v2030, 0.0
        %v2094 = vadd.f32 %v2032, 0.0
        %v2095 = vpack.c.bf16 %v2081, %v2079
        %v2096 = vpack.c.bf16 %v2082, %v2080
        %v2097 = vpack.c.bf16 %v2085, %v2083
        %v2098 = vpack.c.bf16 %v2086, %v2084
        %s2099 = scalar_lea.vmem [#allocation17], 160
        %v2100 = vld [vmem:[%s2099] sm:$0xf]
        %v2101 = vld [vmem:[%s2099 + $0x4] sm:$0xf]
        %v2102 = vld [vmem:[%s2099 + $0x8] sm:$0xf]
        %v2103 = vld [vmem:[%s2099 + $0xc] sm:$0xf]
        %v2104 = vld [vmem:[%s2099 + $0x10] sm:$0xf]
        %v2105 = vld [vmem:[%s2099 + $0x14] sm:$0xf]
        %v2106 = vld [vmem:[%s2099 + $0x18] sm:$0xf]
        %v2107 = vld [vmem:[%s2099 + $0x1c] sm:$0xf]
        %s2108 = scalar_lea.vmem [#allocation17], 192
        %v2109 = vld [vmem:[%s2108] sm:$0xf]
        %v2110 = vld [vmem:[%s2108 + $0x4] sm:$0xf]
        %v2111 = vld [vmem:[%s2108 + $0x8] sm:$0xf]
        %v2112 = vld [vmem:[%s2108 + $0xc] sm:$0xf]
        %v2113 = vld [vmem:[%s2108 + $0x10] sm:$0xf]
        %v2114 = vld [vmem:[%s2108 + $0x14] sm:$0xf]
        %v2115 = vld [vmem:[%s2108 + $0x18] sm:$0xf]
        %v2116 = vld [vmem:[%s2108 + $0x1c] sm:$0xf]
        %v2125 = vunpack.c.l.b16 %v2109
        %v2126 = vunpack.c.l.b16 %v2110
        %v2127 = vunpack.c.l.b16 %v2111
        %v2128 = vunpack.c.l.b16 %v2112
        %v2129 = vunpack.c.l.b16 %v2113
        %v2130 = vunpack.c.l.b16 %v2114
        %v2131 = vunpack.c.l.b16 %v2115
        %v2132 = vunpack.c.l.b16 %v2116
        %v2133 = vpack.c.b16 %v2126, %v2125
        %v2134 = vpack.c.b16 %v2128, %v2127
        %v2135 = vpack.c.b16 %v2130, %v2129
        %v2136 = vpack.c.b16 %v2132, %v2131
        %2141 = vrot.lane.b32.xlu0 %v2095, 125
        %v2142 = vpop.permute.xlu0 %2141
        %2143 = vrot.lane.b32.xlu0 %v2096, 125
        %v2144 = vpop.permute.xlu0 %2143
        %2145 = vrot.lane.b32.xlu0 %v2097, 125
        %v2146 = vpop.permute.xlu0 %2145
        %2147 = vrot.lane.b32.xlu0 %v2098, 125
        %v2148 = vpop.permute.xlu0 %2147
        %v2149 = vsel %vm1488, %v2142, %v2144
        %v2150 = vsel %vm1488, %v2146, %v2148
        %v2156 = vsel %vm1115, %v2133, 0
        %v2159 = vsel %vm1115, %v2134, 0
        %v2162 = vsel %vm1115, %v2135, 0
        %v2165 = vsel %vm1115, %v2136, 0
        %2167 = vmatprep.subr.bf16.mxu0 %v2144
        %2168 = vmatpush1.bf16.msra.mxu0 %v2149
        %2169 = vmatprep.subr.bf16.mxu0 %v2148
        %2170 = vmatpush1.bf16.msra.mxu0 %v2150
        %2171 = vmatprep.subr.bf16.mxu0 0
        %2172 = vmatpush1.bf16.msra.mxu0 0
        %2173 = vmatprep.subr.bf16.mxu0 0
        %2174 = vmatpush1.bf16.msra.mxu0 0
        %2175 = vmatprep.subr.bf16.mxu0 0
        %2176 = vmatpush1.bf16.msra.mxu0 0
        %2177 = vmatprep.subr.bf16.mxu0 0
        %2178 = vmatpush1.bf16.msra.mxu0 0
        %2179 = vmatprep.subr.bf16.mxu0 0
        %2180 = vmatpush1.bf16.msra.mxu0 0
        %2181 = vmatprep.subr.bf16.mxu0 0
        %2182 = vmatpush1.bf16.msra.mxu0 0
        %2183 = vmatprep.subr.bf16.mxu0 0
        %2184 = vmatpush1.bf16.msra.mxu0 0
        %2185 = vmatprep.subr.bf16.mxu0 0
        %2186 = vmatpush1.bf16.msra.mxu0 0
        %2187 = vmatprep.subr.bf16.mxu0 0
        %2188 = vmatpush1.bf16.msra.mxu0 0
        %2189 = vmatprep.subr.bf16.mxu0 0
        %2190 = vmatpush1.bf16.msra.mxu0 0
        %2191 = vmatprep.subr.bf16.mxu0 0
        %2192 = vmatpush1.bf16.msra.mxu0 0
        %2193 = vmatprep.subr.bf16.mxu0 0
        %2194 = vmatpush1.bf16.msra.mxu0 0
        %2195 = vmatprep.subr.bf16.mxu0 0
        %2196 = vmatpush1.bf16.msra.mxu0 0
        %2197 = vmatprep.subr.bf16.mxu0 0
        %2198 = vmatpush1.bf16.msra.mxu0 0
        %2199 = vmatprep.mubr.bf16.mxu0 0
        %2200 = vmatmul.mubr.bf16.gmra.mrb[0].mxu0 %v2156
        %v2201 = vpop.f32.mrb[0].mxu0
        %v2202 = vadd.f32 0.0, %v2201
        %v2203 = vpop.f32.mrb[0].mxu0
        %v2204 = vadd.f32 0.0, %v2203
        %v2205 = vpop.f32.mrb[0].mxu0
        %v2206 = vadd.f32 0.0, %v2205
        %v2207 = vpop.f32.mrb[0].mxu0
        %v2208 = vadd.f32 0.0, %v2207
        %2209 = vmatprep.mubr.bf16.mxu0 0
        %2210 = vmatmul.mubr.bf16.gmra.mrb[0].mxu0 %v2159
        %v2211 = vpop.f32.mrb[0].mxu0
        %v2212 = vadd.f32 0.0, %v2211
        %v2213 = vpop.f32.mrb[0].mxu0
        %v2214 = vadd.f32 0.0, %v2213
        %v2215 = vpop.f32.mrb[0].mxu0
        %v2216 = vadd.f32 0.0, %v2215
        %v2217 = vpop.f32.mrb[0].mxu0
        %v2218 = vadd.f32 0.0, %v2217
        %2219 = vmatprep.mubr.bf16.mxu0 0
        %2220 = vmatmul.mubr.bf16.gmra.mrb[0].mxu0 %v2162
        %v2221 = vpop.f32.mrb[0].mxu0
        %v2222 = vadd.f32 0.0, %v2221
        %v2223 = vpop.f32.mrb[0].mxu0
        %v2224 = vadd.f32 0.0, %v2223
        %v2225 = vpop.f32.mrb[0].mxu0
        %v2226 = vadd.f32 0.0, %v2225
        %v2227 = vpop.f32.mrb[0].mxu0
        %v2228 = vadd.f32 0.0, %v2227
        %2229 = vmatprep.mubr.bf16.mxu0 0
        %2230 = vmatmul.mubr.bf16.gmra.mrb[0].mxu0 %v2165
        %v2231 = vpop.f32.mrb[0].mxu0
        %v2232 = vadd.f32 0.0, %v2231
        %v2233 = vpop.f32.mrb[0].mxu0
        %v2234 = vadd.f32 0.0, %v2233
        %v2235 = vpop.f32.mrb[0].mxu0
        %v2236 = vadd.f32 0.0, %v2235
        %v2237 = vpop.f32.mrb[0].mxu0
        %v2238 = vadd.f32 0.0, %v2237
        %2239 = vdwg.mxu0
        %v2248 = vunpack.c.l.b16 %v2100
        %v2249 = vunpack.c.l.b16 %v2101
        %v2250 = vunpack.c.l.b16 %v2102
        %v2251 = vunpack.c.l.b16 %v2103
        %v2252 = vunpack.c.l.b16 %v2104
        %v2253 = vunpack.c.l.b16 %v2105
        %v2254 = vunpack.c.l.b16 %v2106
        %v2255 = vunpack.c.l.b16 %v2107
        %v2256 = vpack.c.b16 %v2249, %v2248
        %v2257 = vpack.c.b16 %v2251, %v2250
        %v2258 = vpack.c.b16 %v2253, %v2252
        %v2259 = vpack.c.b16 %v2255, %v2254
        %2260 = vrot.lane.b32.xlu0 %v2095, 126
        %v2261 = vpop.permute.xlu0 %2260
        %2262 = vrot.lane.b32.xlu0 %v2096, 126
        %v2263 = vpop.permute.xlu0 %2262
        %2264 = vrot.lane.b32.xlu0 %v2097, 126
        %v2265 = vpop.permute.xlu0 %2264
        %2266 = vrot.lane.b32.xlu0 %v2098, 126
        %v2267 = vpop.permute.xlu0 %2266
        %v2268 = vsel %vm1343, %v2261, %v2263
        %v2269 = vsel %vm1343, %v2265, %v2267
        %v2275 = vsel %vm1115, %v2256, 0
        %v2278 = vsel %vm1115, %v2257, 0
        %v2281 = vsel %vm1115, %v2258, 0
        %v2284 = vsel %vm1115, %v2259, 0
        %2286 = vmatprep.subr.bf16.mxu0 %v2263
        %2287 = vmatpush1.bf16.msra.mxu0 %v2268
        %2288 = vmatprep.subr.bf16.mxu0 %v2267
        %2289 = vmatpush1.bf16.msra.mxu0 %v2269
        %2290 = vmatprep.subr.bf16.mxu0 0
        %2291 = vmatpush1.bf16.msra.mxu0 0
        %2292 = vmatprep.subr.bf16.mxu0 0
        %2293 = vmatpush1.bf16.msra.mxu0 0
        %2294 = vmatprep.subr.bf16.mxu0 0
        %2295 = vmatpush1.bf16.msra.mxu0 0
        %2296 = vmatprep.subr.bf16.mxu0 0
        %2297 = vmatpush1.bf16.msra.mxu0 0
        %2298 = vmatprep.subr.bf16.mxu0 0
        %2299 = vmatpush1.bf16.msra.mxu0 0
        %2300 = vmatprep.subr.bf16.mxu0 0
        %2301 = vmatpush1.bf16.msra.mxu0 0
        %2302 = vmatprep.subr.bf16.mxu0 0
        %2303 = vmatpush1.bf16.msra.mxu0 0
        %2304 = vmatprep.subr.bf16.mxu0 0
        %2305 = vmatpush1.bf16.msra.mxu0 0
        %2306 = vmatprep.subr.bf16.mxu0 0
        %2307 = vmatpush1.bf16.msra.mxu0 0
        %2308 = vmatprep.subr.bf16.mxu0 0
        %2309 = vmatpush1.bf16.msra.mxu0 0
        %2310 = vmatprep.subr.bf16.mxu0 0
        %2311 = vmatpush1.bf16.msra.mxu0 0
        %2312 = vmatprep.subr.bf16.mxu0 0
        %2313 = vmatpush1.bf16.msra.mxu0 0
        %2314 = vmatprep.subr.bf16.mxu0 0
        %2315 = vmatpush1.bf16.msra.mxu0 0
        %2316 = vmatprep.subr.bf16.mxu0 0
        %2317 = vmatpush1.bf16.msra.mxu0 0
        %2318 = vmatprep.mubr.bf16.mxu0 0
        %2319 = vmatmul.mubr.bf16.gmra.mrb[0].mxu0 %v2275
        %v2320 = vpop.f32.mrb[0].mxu0
        %v2321 = vadd.f32 %v2202, %v2320
        %v2322 = vpop.f32.mrb[0].mxu0
        %v2323 = vadd.f32 %v2204, %v2322
        %v2324 = vpop.f32.mrb[0].mxu0
        %v2325 = vadd.f32 %v2206, %v2324
        %v2326 = vpop.f32.mrb[0].mxu0
        %v2327 = vadd.f32 %v2208, %v2326
        %2328 = vmatprep.mubr.bf16.mxu0 0
        %2329 = vmatmul.mubr.bf16.gmra.mrb[0].mxu0 %v2278
        %v2330 = vpop.f32.mrb[0].mxu0
        %v2331 = vadd.f32 %v2212, %v2330
        %v2332 = vpop.f32.mrb[0].mxu0
        %v2333 = vadd.f32 %v2214, %v2332
        %v2334 = vpop.f32.mrb[0].mxu0
        %v2335 = vadd.f32 %v2216, %v2334
        %v2336 = vpop.f32.mrb[0].mxu0
        %v2337 = vadd.f32 %v2218, %v2336
        %2338 = vmatprep.mubr.bf16.mxu0 0
        %2339 = vmatmul.mubr.bf16.gmra.mrb[0].mxu0 %v2281
        %v2340 = vpop.f32.mrb[0].mxu0
        %v2341 = vadd.f32 %v2222, %v2340
        %v2342 = vpop.f32.mrb[0].mxu0
        %v2343 = vadd.f32 %v2224, %v2342
        %v2344 = vpop.f32.mrb[0].mxu0
        %v2345 = vadd.f32 %v2226, %v2344
        %v2346 = vpop.f32.mrb[0].mxu0
        %v2347 = vadd.f32 %v2228, %v2346
        %2348 = vmatprep.mubr.bf16.mxu0 0
        %2349 = vmatmul.mubr.bf16.gmra.mrb[0].mxu0 %v2284
        %v2350 = vpop.f32.mrb[0].mxu0
        %v2351 = vadd.f32 %v2232, %v2350
        %v2352 = vpop.f32.mrb[0].mxu0
        %v2353 = vadd.f32 %v2234, %v2352
        %v2354 = vpop.f32.mrb[0].mxu0
        %v2355 = vadd.f32 %v2236, %v2354
        %v2356 = vpop.f32.mrb[0].mxu0
        %v2357 = vadd.f32 %v2238, %v2356
        %2358 = vdwg.mxu0
        %s2359 = scalar_lea.vmem [#allocation17], 224
        %v2360 = vld [vmem:[%s2359] sm:$0xf]
        %v2361 = vld [vmem:[%s2359 + $0x4] sm:$0xf]
        %v2362 = vld [vmem:[%s2359 + $0x8] sm:$0xf]
        %v2363 = vld [vmem:[%s2359 + $0xc] sm:$0xf]
        %v2364 = vld [vmem:[%s2359 + $0x10] sm:$0xf]
        %v2365 = vld [vmem:[%s2359 + $0x14] sm:$0xf]
        %v2366 = vld [vmem:[%s2359 + $0x18] sm:$0xf]
        %v2367 = vld [vmem:[%s2359 + $0x1c] sm:$0xf]
        %v2376 = vunpack.c.l.b16 %v2360
        %v2377 = vunpack.c.l.b16 %v2361
        %v2378 = vunpack.c.l.b16 %v2362
        %v2379 = vunpack.c.l.b16 %v2363
        %v2380 = vunpack.c.l.b16 %v2364
        %v2381 = vunpack.c.l.b16 %v2365
        %v2382 = vunpack.c.l.b16 %v2366
        %v2383 = vunpack.c.l.b16 %v2367
        %v2384 = vpack.c.b16 %v2377, %v2376
        %v2385 = vpack.c.b16 %v2379, %v2378
        %v2386 = vpack.c.b16 %v2381, %v2380
        %v2387 = vpack.c.b16 %v2383, %v2382
        %2388 = vrot.lane.b32.xlu0 %v2095, 124
        %v2389 = vpop.permute.xlu0 %2388
        %2390 = vrot.lane.b32.xlu0 %v2096, 124
        %v2391 = vpop.permute.xlu0 %2390
        %2392 = vrot.lane.b32.xlu0 %v2097, 124
        %v2393 = vpop.permute.xlu0 %2392
        %2394 = vrot.lane.b32.xlu0 %v2098, 124
        %v2395 = vpop.permute.xlu0 %2394
        %v2396 = vsel %vm1633, %v2389, %v2391
        %v2397 = vsel %vm1633, %v2393, %v2395
        %v2403 = vsel %vm1115, %v2384, 0
        %v2406 = vsel %vm1115, %v2385, 0
        %v2409 = vsel %vm1115, %v2386, 0
        %v2412 = vsel %vm1115, %v2387, 0
        %2414 = vmatprep.subr.bf16.mxu0 %v2391
        %2415 = vmatpush1.bf16.msra.mxu0 %v2396
        %2416 = vmatprep.subr.bf16.mxu0 %v2395
        %2417 = vmatpush1.bf16.msra.mxu0 %v2397
        %2418 = vmatprep.subr.bf16.mxu0 0
        %2419 = vmatpush1.bf16.msra.mxu0 0
        %2420 = vmatprep.subr.bf16.mxu0 0
        %2421 = vmatpush1.bf16.msra.mxu0 0
        %2422 = vmatprep.subr.bf16.mxu0 0
        %2423 = vmatpush1.bf16.msra.mxu0 0
        %2424 = vmatprep.subr.bf16.mxu0 0
        %2425 = vmatpush1.bf16.msra.mxu0 0
        %2426 = vmatprep.subr.bf16.mxu0 0
        %2427 = vmatpush1.bf16.msra.mxu0 0
        %2428 = vmatprep.subr.bf16.mxu0 0
        %2429 = vmatpush1.bf16.msra.mxu0 0
        %2430 = vmatprep.subr.bf16.mxu0 0
        %2431 = vmatpush1.bf16.msra.mxu0 0
        %2432 = vmatprep.subr.bf16.mxu0 0
        %2433 = vmatpush1.bf16.msra.mxu0 0
        %2434 = vmatprep.subr.bf16.mxu0 0
        %2435 = vmatpush1.bf16.msra.mxu0 0
        %2436 = vmatprep.subr.bf16.mxu0 0
        %2437 = vmatpush1.bf16.msra.mxu0 0
        %2438 = vmatprep.subr.bf16.mxu0 0
        %2439 = vmatpush1.bf16.msra.mxu0 0
        %2440 = vmatprep.subr.bf16.mxu0 0
        %2441 = vmatpush1.bf16.msra.mxu0 0
        %2442 = vmatprep.subr.bf16.mxu0 0
        %2443 = vmatpush1.bf16.msra.mxu0 0
        %2444 = vmatprep.subr.bf16.mxu0 0
        %2445 = vmatpush1.bf16.msra.mxu0 0
        %2446 = vmatprep.mubr.bf16.mxu0 0
        %2447 = vmatmul.mubr.bf16.gmra.mrb[0].mxu0 %v2403
        %v2448 = vpop.f32.mrb[0].mxu0
        %v2449 = vadd.f32 0.0, %v2448
        %v2450 = vpop.f32.mrb[0].mxu0
        %v2451 = vadd.f32 0.0, %v2450
        %v2452 = vpop.f32.mrb[0].mxu0
        %v2453 = vadd.f32 0.0, %v2452
        %v2454 = vpop.f32.mrb[0].mxu0
        %v2455 = vadd.f32 0.0, %v2454
        %2456 = vmatprep.mubr.bf16.mxu0 0
        %2457 = vmatmul.mubr.bf16.gmra.mrb[0].mxu0 %v2406
        %v2458 = vpop.f32.mrb[0].mxu0
        %v2459 = vadd.f32 0.0, %v2458
        %v2460 = vpop.f32.mrb[0].mxu0
        %v2461 = vadd.f32 0.0, %v2460
        %v2462 = vpop.f32.mrb[0].mxu0
        %v2463 = vadd.f32 0.0, %v2462
        %v2464 = vpop.f32.mrb[0].mxu0
        %v2465 = vadd.f32 0.0, %v2464
        %2466 = vmatprep.mubr.bf16.mxu0 0
        %2467 = vmatmul.mubr.bf16.gmra.mrb[0].mxu0 %v2409
        %v2468 = vpop.f32.mrb[0].mxu0
        %v2469 = vadd.f32 0.0, %v2468
        %v2470 = vpop.f32.mrb[0].mxu0
        %v2471 = vadd.f32 0.0, %v2470
        %v2472 = vpop.f32.mrb[0].mxu0
        %v2473 = vadd.f32 0.0, %v2472
        %v2474 = vpop.f32.mrb[0].mxu0
        %v2475 = vadd.f32 0.0, %v2474
        %2476 = vmatprep.mubr.bf16.mxu0 0
        %2477 = vmatmul.mubr.bf16.gmra.mrb[0].mxu0 %v2412
        %v2478 = vpop.f32.mrb[0].mxu0
        %v2479 = vadd.f32 0.0, %v2478
        %v2480 = vpop.f32.mrb[0].mxu0
        %v2481 = vadd.f32 0.0, %v2480
        %v2482 = vpop.f32.mrb[0].mxu0
        %v2483 = vadd.f32 0.0, %v2482
        %v2484 = vpop.f32.mrb[0].mxu0
        %v2485 = vadd.f32 0.0, %v2484
        %2486 = vdwg.mxu0
        %v2487 = vadd.f32 %v2321, %v2449
        %v2488 = vadd.f32 %v2323, %v2451
        %v2489 = vadd.f32 %v2325, %v2453
        %v2490 = vadd.f32 %v2327, %v2455
        %v2491 = vadd.f32 %v2331, %v2459
        %v2492 = vadd.f32 %v2333, %v2461
        %v2493 = vadd.f32 %v2335, %v2463
        %v2494 = vadd.f32 %v2337, %v2465
        %v2495 = vadd.f32 %v2341, %v2469
        %v2496 = vadd.f32 %v2343, %v2471
        %v2497 = vadd.f32 %v2345, %v2473
        %v2498 = vadd.f32 %v2347, %v2475
        %v2499 = vadd.f32 %v2351, %v2479
        %v2500 = vadd.f32 %v2353, %v2481
        %v2501 = vadd.f32 %v2355, %v2483
        %v2502 = vadd.f32 %v2357, %v2485
        %s2503 = scalar_lea.vmem [#allocation17], 256
        %v2504 = vld [vmem:[%s2503] sm:$0xf]
        %v2505 = vld [vmem:[%s2503 + $0x4] sm:$0xf]
        %v2506 = vld [vmem:[%s2503 + $0x8] sm:$0xf]
        %v2507 = vld [vmem:[%s2503 + $0xc] sm:$0xf]
        %v2508 = vld [vmem:[%s2503 + $0x10] sm:$0xf]
        %v2509 = vld [vmem:[%s2503 + $0x14] sm:$0xf]
        %v2510 = vld [vmem:[%s2503 + $0x18] sm:$0xf]
        %v2511 = vld [vmem:[%s2503 + $0x1c] sm:$0xf]
        %v2520 = vunpack.c.l.b16 %v2504
        %v2521 = vunpack.c.l.b16 %v2505
        %v2522 = vunpack.c.l.b16 %v2506
        %v2523 = vunpack.c.l.b16 %v2507
        %v2524 = vunpack.c.l.b16 %v2508
        %v2525 = vunpack.c.l.b16 %v2509
        %v2526 = vunpack.c.l.b16 %v2510
        %v2527 = vunpack.c.l.b16 %v2511
        %v2528 = vpack.c.b16 %v2521, %v2520
        %v2529 = vpack.c.b16 %v2523, %v2522
        %v2530 = vpack.c.b16 %v2525, %v2524
        %v2531 = vpack.c.b16 %v2527, %v2526
        %2532 = vrot.lane.b32.xlu0 %v2095, 123
        %v2533 = vpop.permute.xlu0 %2532
        %2534 = vrot.lane.b32.xlu0 %v2096, 123
        %v2535 = vpop.permute.xlu0 %2534
        %2536 = vrot.lane.b32.xlu0 %v2097, 123
        %v2537 = vpop.permute.xlu0 %2536
        %2538 = vrot.lane.b32.xlu0 %v2098, 123
        %v2539 = vpop.permute.xlu0 %2538
        %vm2540 = vcmask 1006592
        %v2541 = vsel %vm2540, %v2533, %v2535
        %v2542 = vsel %vm2540, %v2537, %v2539
        %v2548 = vsel %vm1115, %v2528, 0
        %v2551 = vsel %vm1115, %v2529, 0
        %v2554 = vsel %vm1115, %v2530, 0
        %v2557 = vsel %vm1115, %v2531, 0
        %2559 = vmatprep.subr.bf16.mxu0 %v2535
        %2560 = vmatpush1.bf16.msra.mxu0 %v2541
        %2561 = vmatprep.subr.bf16.mxu0 %v2539
        %2562 = vmatpush1.bf16.msra.mxu0 %v2542
        %2563 = vmatprep.subr.bf16.mxu0 0
        %2564 = vmatpush1.bf16.msra.mxu0 0
        %2565 = vmatprep.subr.bf16.mxu0 0
        %2566 = vmatpush1.bf16.msra.mxu0 0
        %2567 = vmatprep.subr.bf16.mxu0 0
        %2568 = vmatpush1.bf16.msra.mxu0 0
        %2569 = vmatprep.subr.bf16.mxu0 0
        %2570 = vmatpush1.bf16.msra.mxu0 0
        %2571 = vmatprep.subr.bf16.mxu0 0
        %2572 = vmatpush1.bf16.msra.mxu0 0
        %2573 = vmatprep.subr.bf16.mxu0 0
        %2574 = vmatpush1.bf16.msra.mxu0 0
        %2575 = vmatprep.subr.bf16.mxu0 0
        %2576 = vmatpush1.bf16.msra.mxu0 0
        %2577 = vmatprep.subr.bf16.mxu0 0
        %2578 = vmatpush1.bf16.msra.mxu0 0
        %2579 = vmatprep.subr.bf16.mxu0 0
        %2580 = vmatpush1.bf16.msra.mxu0 0
        %2581 = vmatprep.subr.bf16.mxu0 0
        %2582 = vmatpush1.bf16.msra.mxu0 0
        %2583 = vmatprep.subr.bf16.mxu0 0
        %2584 = vmatpush1.bf16.msra.mxu0 0
        %2585 = vmatprep.subr.bf16.mxu0 0
        %2586 = vmatpush1.bf16.msra.mxu0 0
        %2587 = vmatprep.subr.bf16.mxu0 0
        %2588 = vmatpush1.bf16.msra.mxu0 0
        %2589 = vmatprep.subr.bf16.mxu0 0
        %2590 = vmatpush1.bf16.msra.mxu0 0
        %2591 = vmatprep.mubr.bf16.mxu0 0
        %2592 = vmatmul.mubr.bf16.gmra.mrb[0].mxu0 %v2548
        %v2593 = vpop.f32.mrb[0].mxu0
        %v2594 = vadd.f32 0.0, %v2593
        %v2595 = vpop.f32.mrb[0].mxu0
        %v2596 = vadd.f32 0.0, %v2595
        %v2597 = vpop.f32.mrb[0].mxu0
        %v2598 = vadd.f32 0.0, %v2597
        %v2599 = vpop.f32.mrb[0].mxu0
        %v2600 = vadd.f32 0.0, %v2599
        %2601 = vmatprep.mubr.bf16.mxu0 0
        %2602 = vmatmul.mubr.bf16.gmra.mrb[0].mxu0 %v2551
        %v2603 = vpop.f32.mrb[0].mxu0
        %v2604 = vadd.f32 0.0, %v2603
        %v2605 = vpop.f32.mrb[0].mxu0
        %v2606 = vadd.f32 0.0, %v2605
        %v2607 = vpop.f32.mrb[0].mxu0
        %v2608 = vadd.f32 0.0, %v2607
        %v2609 = vpop.f32.mrb[0].mxu0
        %v2610 = vadd.f32 0.0, %v2609
        %2611 = vmatprep.mubr.bf16.mxu0 0
        %2612 = vmatmul.mubr.bf16.gmra.mrb[0].mxu0 %v2554
        %v2613 = vpop.f32.mrb[0].mxu0
        %v2614 = vadd.f32 0.0, %v2613
        %v2615 = vpop.f32.mrb[0].mxu0
        %v2616 = vadd.f32 0.0, %v2615
        %v2617 = vpop.f32.mrb[0].mxu0
        %v2618 = vadd.f32 0.0, %v2617
        %v2619 = vpop.f32.mrb[0].mxu0
        %v2620 = vadd.f32 0.0, %v2619
        %2621 = vmatprep.mubr.bf16.mxu0 0
        %2622 = vmatmul.mubr.bf16.gmra.mrb[0].mxu0 %v2557
        %v2623 = vpop.f32.mrb[0].mxu0
        %v2624 = vadd.f32 0.0, %v2623
        %v2625 = vpop.f32.mrb[0].mxu0
        %v2626 = vadd.f32 0.0, %v2625
        %v2627 = vpop.f32.mrb[0].mxu0
        %v2628 = vadd.f32 0.0, %v2627
        %v2629 = vpop.f32.mrb[0].mxu0
        %v2630 = vadd.f32 0.0, %v2629
        %2631 = vdwg.mxu0
        %v2632 = vadd.f32 %v2487, %v2594
        %v2633 = vadd.f32 %v2488, %v2596
        %v2634 = vadd.f32 %v2489, %v2598
        %v2635 = vadd.f32 %v2490, %v2600
        %v2636 = vadd.f32 %v2491, %v2604
        %v2637 = vadd.f32 %v2492, %v2606
        %v2638 = vadd.f32 %v2493, %v2608
        %v2639 = vadd.f32 %v2494, %v2610
        %v2640 = vadd.f32 %v2495, %v2614
        %v2641 = vadd.f32 %v2496, %v2616
        %v2642 = vadd.f32 %v2497, %v2618
        %v2643 = vadd.f32 %v2498, %v2620
        %v2644 = vadd.f32 %v2499, %v2624
        %v2645 = vadd.f32 %v2500, %v2626
        %v2646 = vadd.f32 %v2501, %v2628
        %v2647 = vadd.f32 %v2502, %v2630
        %s2648 = scalar_lea.vmem [#allocation17], 288
        %v2649 = vld [vmem:[%s2648] sm:$0xf]
        %v2650 = vld [vmem:[%s2648 + $0x4] sm:$0xf]
        %v2651 = vld [vmem:[%s2648 + $0x8] sm:$0xf]
        %v2652 = vld [vmem:[%s2648 + $0xc] sm:$0xf]
        %v2653 = vld [vmem:[%s2648 + $0x10] sm:$0xf]
        %v2654 = vld [vmem:[%s2648 + $0x14] sm:$0xf]
        %v2655 = vld [vmem:[%s2648 + $0x18] sm:$0xf]
        %v2656 = vld [vmem:[%s2648 + $0x1c] sm:$0xf]
        %v2665 = vunpack.c.l.b16 %v2649
        %v2666 = vunpack.c.l.b16 %v2650
        %v2667 = vunpack.c.l.b16 %v2651
        %v2668 = vunpack.c.l.b16 %v2652
        %v2669 = vunpack.c.l.b16 %v2653
        %v2670 = vunpack.c.l.b16 %v2654
        %v2671 = vunpack.c.l.b16 %v2655
        %v2672 = vunpack.c.l.b16 %v2656
        %v2673 = vpack.c.b16 %v2666, %v2665
        %v2674 = vpack.c.b16 %v2668, %v2667
        %v2675 = vpack.c.b16 %v2670, %v2669
        %v2676 = vpack.c.b16 %v2672, %v2671
        %2677 = vrot.lane.b32.xlu0 %v2095, 122
        %v2678 = vpop.permute.xlu0 %2677
        %2679 = vrot.lane.b32.xlu0 %v2096, 122
        %v2680 = vpop.permute.xlu0 %2679
        %2681 = vrot.lane.b32.xlu0 %v2097, 122
        %v2682 = vpop.permute.xlu0 %2681
        %2683 = vrot.lane.b32.xlu0 %v2098, 122
        %v2684 = vpop.permute.xlu0 %2683
        %vm2685 = vcmask 998400
        %v2686 = vsel %vm2685, %v2678, %v2680
        %v2687 = vsel %vm2685, %v2682, %v2684
        %v2693 = vsel %vm1115, %v2673, 0
        %v2696 = vsel %vm1115, %v2674, 0
        %v2699 = vsel %vm1115, %v2675, 0
        %v2702 = vsel %vm1115, %v2676, 0
        %2704 = vmatprep.subr.bf16.mxu0 %v2680
        %2705 = vmatpush1.bf16.msra.mxu0 %v2686
        %2706 = vmatprep.subr.bf16.mxu0 %v2684
        %2707 = vmatpush1.bf16.msra.mxu0 %v2687
        %2708 = vmatprep.subr.bf16.mxu0 0
        %2709 = vmatpush1.bf16.msra.mxu0 0
        %2710 = vmatprep.subr.bf16.mxu0 0
        %2711 = vmatpush1.bf16.msra.mxu0 0
        %2712 = vmatprep.subr.bf16.mxu0 0
        %2713 = vmatpush1.bf16.msra.mxu0 0
        %2714 = vmatprep.subr.bf16.mxu0 0
        %2715 = vmatpush1.bf16.msra.mxu0 0
        %2716 = vmatprep.subr.bf16.mxu0 0
        %2717 = vmatpush1.bf16.msra.mxu0 0
        %2718 = vmatprep.subr.bf16.mxu0 0
        %2719 = vmatpush1.bf16.msra.mxu0 0
        %2720 = vmatprep.subr.bf16.mxu0 0
        %2721 = vmatpush1.bf16.msra.mxu0 0
        %2722 = vmatprep.subr.bf16.mxu0 0
        %2723 = vmatpush1.bf16.msra.mxu0 0
        %2724 = vmatprep.subr.bf16.mxu0 0
        %2725 = vmatpush1.bf16.msra.mxu0 0
        %2726 = vmatprep.subr.bf16.mxu0 0
        %2727 = vmatpush1.bf16.msra.mxu0 0
        %2728 = vmatprep.subr.bf16.mxu0 0
        %2729 = vmatpush1.bf16.msra.mxu0 0
        %2730 = vmatprep.subr.bf16.mxu0 0
        %2731 = vmatpush1.bf16.msra.mxu0 0
        %2732 = vmatprep.subr.bf16.mxu0 0
        %2733 = vmatpush1.bf16.msra.mxu0 0
        %2734 = vmatprep.subr.bf16.mxu0 0
        %2735 = vmatpush1.bf16.msra.mxu0 0
        %2736 = vmatprep.mubr.bf16.mxu0 0
        %2737 = vmatmul.mubr.bf16.gmra.mrb[0].mxu0 %v2693
        %v2738 = vpop.f32.mrb[0].mxu0
        %v2739 = vadd.f32 0.0, %v2738
        %v2740 = vpop.f32.mrb[0].mxu0
        %v2741 = vadd.f32 0.0, %v2740
        %v2742 = vpop.f32.mrb[0].mxu0
        %v2743 = vadd.f32 0.0, %v2742
        %v2744 = vpop.f32.mrb[0].mxu0
        %v2745 = vadd.f32 0.0, %v2744
        %2746 = vmatprep.mubr.bf16.mxu0 0
        %2747 = vmatmul.mubr.bf16.gmra.mrb[0].mxu0 %v2696
        %v2748 = vpop.f32.mrb[0].mxu0
        %v2749 = vadd.f32 0.0, %v2748
        %v2750 = vpop.f32.mrb[0].mxu0
        %v2751 = vadd.f32 0.0, %v2750
        %v2752 = vpop.f32.mrb[0].mxu0
        %v2753 = vadd.f32 0.0, %v2752
        %v2754 = vpop.f32.mrb[0].mxu0
        %v2755 = vadd.f32 0.0, %v2754
        %2756 = vmatprep.mubr.bf16.mxu0 0
        %2757 = vmatmul.mubr.bf16.gmra.mrb[0].mxu0 %v2699
        %v2758 = vpop.f32.mrb[0].mxu0
        %v2759 = vadd.f32 0.0, %v2758
        %v2760 = vpop.f32.mrb[0].mxu0
        %v2761 = vadd.f32 0.0, %v2760
        %v2762 = vpop.f32.mrb[0].mxu0
        %v2763 = vadd.f32 0.0, %v2762
        %v2764 = vpop.f32.mrb[0].mxu0
        %v2765 = vadd.f32 0.0, %v2764
        %2766 = vmatprep.mubr.bf16.mxu0 0
        %2767 = vmatmul.mubr.bf16.gmra.mrb[0].mxu0 %v2702
        %v2768 = vpop.f32.mrb[0].mxu0
        %v2769 = vadd.f32 0.0, %v2768
        %v2770 = vpop.f32.mrb[0].mxu0
        %v2771 = vadd.f32 0.0, %v2770
        %v2772 = vpop.f32.mrb[0].mxu0
        %v2773 = vadd.f32 0.0, %v2772
        %v2774 = vpop.f32.mrb[0].mxu0
        %v2775 = vadd.f32 0.0, %v2774
        %2776 = vdwg.mxu0
        %v2777 = vadd.f32 %v2632, %v2739
        %v2778 = vadd.f32 %v2633, %v2741
        %v2779 = vadd.f32 %v2634, %v2743
        %v2780 = vadd.f32 %v2635, %v2745
        %v2781 = vadd.f32 %v2636, %v2749
        %v2782 = vadd.f32 %v2637, %v2751
        %v2783 = vadd.f32 %v2638, %v2753
        %v2784 = vadd.f32 %v2639, %v2755
        %v2785 = vadd.f32 %v2640, %v2759
        %v2786 = vadd.f32 %v2641, %v2761
        %v2787 = vadd.f32 %v2642, %v2763
        %v2788 = vadd.f32 %v2643, %v2765
        %v2789 = vadd.f32 %v2644, %v2769
        %v2790 = vadd.f32 %v2645, %v2771
        %v2791 = vadd.f32 %v2646, %v2773
        %v2792 = vadd.f32 %v2647, %v2775
        %s2793 = scalar_lea.vmem [#allocation19], 64
        %v2794 = vld [vmem:[%s2793] sm:$0xff]
        %v2795 = vld [vmem:[%s2793 + $0x8] sm:$0xff]
        %v2796 = vld [vmem:[%s2793 + $0x10] sm:$0xff]
        %v2797 = vld [vmem:[%s2793 + $0x18] sm:$0xff]
        %v2798 = vld [vmem:[%s2793 + $0x20] sm:$0xff]
        %v2799 = vld [vmem:[%s2793 + $0x28] sm:$0xff]
        %v2800 = vld [vmem:[%s2793 + $0x30] sm:$0xff]
        %v2801 = vld [vmem:[%s2793 + $0x38] sm:$0xff]
        %2803 = vset.pattern.permute.xlu0 0
        %2804 = vperm.xlu0 %2803, %v2794
        %v2805 = vpop.permute.xlu0 %2804
        %2808 = vset.pattern.permute.xlu0 0
        %2809 = vperm.xlu0 %2808, %v2795
        %v2810 = vpop.permute.xlu0 %2809
        %2813 = vset.pattern.permute.xlu0 0
        %2814 = vperm.xlu0 %2813, %v2796
        %v2815 = vpop.permute.xlu0 %2814
        %2818 = vset.pattern.permute.xlu0 0
        %2819 = vperm.xlu0 %2818, %v2797
        %v2820 = vpop.permute.xlu0 %2819
        %2823 = vset.pattern.permute.xlu0 0
        %2824 = vperm.xlu0 %2823, %v2798
        %v2825 = vpop.permute.xlu0 %2824
        %2828 = vset.pattern.permute.xlu0 0
        %2829 = vperm.xlu0 %2828, %v2799
        %v2830 = vpop.permute.xlu0 %2829
        %2833 = vset.pattern.permute.xlu0 0
        %2834 = vperm.xlu0 %2833, %v2800
        %v2835 = vpop.permute.xlu0 %2834
        %2838 = vset.pattern.permute.xlu0 0
        %2839 = vperm.xlu0 %2838, %v2801
        %v2840 = vpop.permute.xlu0 %2839
        %v2842 = vadd.f32 %v2777, %v2805
        %v2843 = vadd.f32 %v2778, %v2805
        %v2844 = vadd.f32 %v2779, %v2810
        %v2845 = vadd.f32 %v2780, %v2810
        %v2846 = vadd.f32 %v2781, %v2815
        %v2847 = vadd.f32 %v2782, %v2815
        %v2848 = vadd.f32 %v2783, %v2820
        %v2849 = vadd.f32 %v2784, %v2820
        %v2850 = vadd.f32 %v2785, %v2825
        %v2851 = vadd.f32 %v2786, %v2825
        %v2852 = vadd.f32 %v2787, %v2830
        %v2853 = vadd.f32 %v2788, %v2830
        %v2854 = vadd.f32 %v2789, %v2835
        %v2855 = vadd.f32 %v2790, %v2835
        %v2856 = vadd.f32 %v2791, %v2840
        %v2857 = vadd.f32 %v2792, %v2840
        %v2858 = vtanh.pop %v2842
        %v2859 = vtanh.pop %v2843
        %v2860 = vtanh.pop %v2844
        %v2861 = vtanh.pop %v2845
        %v2862 = vtanh.pop %v2846
        %v2863 = vtanh.pop %v2847
        %v2864 = vtanh.pop %v2848
        %v2865 = vtanh.pop %v2849
        %v2866 = vxor.u32 %v2850, 2147483648
        %v2867 = vxor.u32 %v2851, 2147483648
        %v2868 = vxor.u32 %v2852, 2147483648
        %v2869 = vxor.u32 %v2853, 2147483648
        %v2870 = vxor.u32 %v2854, 2147483648
        %v2871 = vxor.u32 %v2855, 2147483648
        %v2872 = vxor.u32 %v2856, 2147483648
        %v2873 = vxor.u32 %v2857, 2147483648
        %v2874 = vmul.f32 %v2866, 1.442695
        %v2875 = vpow.pop %v2874
        %v2876 = vmul.f32 %v2867, 1.442695
        %v2877 = vpow.pop %v2876
        %v2878 = vmul.f32 %v2868, 1.442695
        %v2879 = vpow.pop %v2878
        %v2880 = vmul.f32 %v2869, 1.442695
        %v2881 = vpow.pop %v2880
        %v2882 = vmul.f32 %v2870, 1.442695
        %v2883 = vpow.pop %v2882
        %v2884 = vmul.f32 %v2871, 1.442695
        %v2885 = vpow.pop %v2884
        %v2886 = vmul.f32 %v2872, 1.442695
        %v2887 = vpow.pop %v2886
        %v2888 = vmul.f32 %v2873, 1.442695
        %v2889 = vpow.pop %v2888
        %v2890 = vadd.f32 %v2875, 1.0
        %v2891 = vadd.f32 %v2877, 1.0
        %v2892 = vadd.f32 %v2879, 1.0
        %v2893 = vadd.f32 %v2881, 1.0
        %v2894 = vadd.f32 %v2883, 1.0
        %v2895 = vadd.f32 %v2885, 1.0
        %v2896 = vadd.f32 %v2887, 1.0
        %v2897 = vadd.f32 %v2889, 1.0
        %v2898 = vrcp.pop %v2890
        %v2899 = vmul.f32 1.0, %v2898
        %v2900 = vrcp.pop %v2891
        %v2901 = vmul.f32 1.0, %v2900
        %v2902 = vrcp.pop %v2892
        %v2903 = vmul.f32 1.0, %v2902
        %v2904 = vrcp.pop %v2893
        %v2905 = vmul.f32 1.0, %v2904
        %v2906 = vrcp.pop %v2894
        %v2907 = vmul.f32 1.0, %v2906
        %v2908 = vrcp.pop %v2895
        %v2909 = vmul.f32 1.0, %v2908
        %v2910 = vrcp.pop %v2896
        %v2911 = vmul.f32 1.0, %v2910
        %v2912 = vrcp.pop %v2897
        %v2913 = vmul.f32 1.0, %v2912
        %v2914 = vmul.f32 %v2858, %v2899
        %v2915 = vmul.f32 %v2859, %v2901
        %v2916 = vmul.f32 %v2860, %v2903
        %v2917 = vmul.f32 %v2861, %v2905
        %v2918 = vmul.f32 %v2862, %v2907
        %v2919 = vmul.f32 %v2863, %v2909
        %v2920 = vmul.f32 %v2864, %v2911
        %v2921 = vmul.f32 %v2865, %v2913
        %s2922 = scalar_lea.vmem [#allocation20], 32
        %v2923 = vld [vmem:[%s2922] sm:$0xf]
        %v2924 = vld [vmem:[%s2922 + $0x4] sm:$0xf]
        %v2925 = vld [vmem:[%s2922 + $0x8] sm:$0xf]
        %v2926 = vld [vmem:[%s2922 + $0xc] sm:$0xf]
        %v2927 = vld [vmem:[%s2922 + $0x10] sm:$0xf]
        %v2928 = vld [vmem:[%s2922 + $0x14] sm:$0xf]
        %v2929 = vld [vmem:[%s2922 + $0x18] sm:$0xf]
        %v2930 = vld [vmem:[%s2922 + $0x1c] sm:$0xf]
        %v2931 = vpack.c.bf16 %v2916, %v2914
        %v2932 = vpack.c.bf16 %v2917, %v2915
        %v2933 = vpack.c.bf16 %v2920, %v2918
        %v2934 = vpack.c.bf16 %v2921, %v2919
        %s2935 = scalar_lea.vmem [#allocation22], 64
        %v2936 = vld [vmem:[%s2935] sm:$0xff]
        %v2937 = vld [vmem:[%s2935 + $0x8] sm:$0xff]
        %v2938 = vld [vmem:[%s2935 + $0x10] sm:$0xff]
        %v2939 = vld [vmem:[%s2935 + $0x18] sm:$0xff]
        %v2940 = vld [vmem:[%s2935 + $0x20] sm:$0xff]
        %v2941 = vld [vmem:[%s2935 + $0x28] sm:$0xff]
        %v2942 = vld [vmem:[%s2935 + $0x30] sm:$0xff]
        %v2943 = vld [vmem:[%s2935 + $0x38] sm:$0xff]
        %2945 = vset.pattern.permute.xlu0 0
        %2946 = vperm.xlu0 %2945, %v2936
        %v2947 = vpop.permute.xlu0 %2946
        %2950 = vset.pattern.permute.xlu0 0
        %2951 = vperm.xlu0 %2950, %v2937
        %v2952 = vpop.permute.xlu0 %2951
        %2955 = vset.pattern.permute.xlu0 0
        %2956 = vperm.xlu0 %2955, %v2938
        %v2957 = vpop.permute.xlu0 %2956
        %2960 = vset.pattern.permute.xlu0 0
        %2961 = vperm.xlu0 %2960, %v2939
        %v2962 = vpop.permute.xlu0 %2961
        %2965 = vset.pattern.permute.xlu0 0
        %2966 = vperm.xlu0 %2965, %v2940
        %v2967 = vpop.permute.xlu0 %2966
        %2970 = vset.pattern.permute.xlu0 0
        %2971 = vperm.xlu0 %2970, %v2941
        %v2972 = vpop.permute.xlu0 %2971
        %2975 = vset.pattern.permute.xlu0 0
        %2976 = vperm.xlu0 %2975, %v2942
        %v2977 = vpop.permute.xlu0 %2976
        %2980 = vset.pattern.permute.xlu0 0
        %2981 = vperm.xlu0 %2980, %v2943
        %v2982 = vpop.permute.xlu0 %2981
        %v2992 = vunpack.c.l.b16 %v2923
        %v2993 = vunpack.c.l.b16 %v2924
        %v2994 = vunpack.c.l.b16 %v2925
        %v2995 = vunpack.c.l.b16 %v2926
        %v2996 = vunpack.c.l.b16 %v2927
        %v2997 = vunpack.c.l.b16 %v2928
        %v2998 = vunpack.c.l.b16 %v2929
        %v2999 = vunpack.c.l.b16 %v2930
        %v3000 = vpack.c.b16 %v2993, %v2992
        %v3001 = vpack.c.b16 %v2995, %v2994
        %v3002 = vpack.c.b16 %v2997, %v2996
        %v3003 = vpack.c.b16 %v2999, %v2998
        %v3005 = vsel %vm1115, %v3000, 0
        %v3008 = vsel %vm1115, %v3001, 0
        %v3011 = vsel %vm1115, %v3002, 0
        %v3014 = vsel %vm1115, %v3003, 0
        %3016 = vmatprep.subr.bf16.mxu0 %v2932
        %3017 = vmatpush1.bf16.msra.mxu0 %v2931
        %3018 = vmatprep.subr.bf16.mxu0 %v2934
        %3019 = vmatpush1.bf16.msra.mxu0 %v2933
        %3020 = vmatprep.subr.bf16.mxu0 0
        %3021 = vmatpush1.bf16.msra.mxu0 0
        %3022 = vmatprep.subr.bf16.mxu0 0
        %3023 = vmatpush1.bf16.msra.mxu0 0
        %3024 = vmatprep.subr.bf16.mxu0 0
        %3025 = vmatpush1.bf16.msra.mxu0 0
        %3026 = vmatprep.subr.bf16.mxu0 0
        %3027 = vmatpush1.bf16.msra.mxu0 0
        %3028 = vmatprep.subr.bf16.mxu0 0
        %3029 = vmatpush1.bf16.msra.mxu0 0
        %3030 = vmatprep.subr.bf16.mxu0 0
        %3031 = vmatpush1.bf16.msra.mxu0 0
        %3032 = vmatprep.subr.bf16.mxu0 0
        %3033 = vmatpush1.bf16.msra.mxu0 0
        %3034 = vmatprep.subr.bf16.mxu0 0
        %3035 = vmatpush1.bf16.msra.mxu0 0
        %3036 = vmatprep.subr.bf16.mxu0 0
        %3037 = vmatpush1.bf16.msra.mxu0 0
        %3038 = vmatprep.subr.bf16.mxu0 0
        %3039 = vmatpush1.bf16.msra.mxu0 0
        %3040 = vmatprep.subr.bf16.mxu0 0
        %3041 = vmatpush1.bf16.msra.mxu0 0
        %3042 = vmatprep.subr.bf16.mxu0 0
        %3043 = vmatpush1.bf16.msra.mxu0 0
        %3044 = vmatprep.subr.bf16.mxu0 0
        %3045 = vmatpush1.bf16.msra.mxu0 0
        %3046 = vmatprep.subr.bf16.mxu0 0
        %3047 = vmatpush1.bf16.msra.mxu0 0
        %3048 = vmatprep.mubr.bf16.mxu0 0
        %3049 = vmatmul.mubr.bf16.gmra.mrb[0].mxu0 %v3005
        %v3050 = vpop.f32.mrb[0].mxu0
        %v3051 = vadd.f32 %v2947, %v3050
        %v3052 = vpop.f32.mrb[0].mxu0
        %v3053 = vadd.f32 %v2947, %v3052
        %v3054 = vpop.f32.mrb[0].mxu0
        %v3055 = vadd.f32 %v2952, %v3054
        %v3056 = vpop.f32.mrb[0].mxu0
        %v3057 = vadd.f32 %v2952, %v3056
        %3058 = vmatprep.mubr.bf16.mxu0 0
        %3059 = vmatmul.mubr.bf16.gmra.mrb[0].mxu0 %v3008
        %v3060 = vpop.f32.mrb[0].mxu0
        %v3061 = vadd.f32 %v2957, %v3060
        %v3062 = vpop.f32.mrb[0].mxu0
        %v3063 = vadd.f32 %v2957, %v3062
        %v3064 = vpop.f32.mrb[0].mxu0
        %v3065 = vadd.f32 %v2962, %v3064
        %v3066 = vpop.f32.mrb[0].mxu0
        %v3067 = vadd.f32 %v2962, %v3066
        %3068 = vmatprep.mubr.bf16.mxu0 0
        %3069 = vmatmul.mubr.bf16.gmra.mrb[0].mxu0 %v3011
        %v3070 = vpop.f32.mrb[0].mxu0
        %v3071 = vadd.f32 %v2967, %v3070
        %v3072 = vpop.f32.mrb[0].mxu0
        %v3073 = vadd.f32 %v2967, %v3072
        %v3074 = vpop.f32.mrb[0].mxu0
        %v3075 = vadd.f32 %v2972, %v3074
        %v3076 = vpop.f32.mrb[0].mxu0
        %v3077 = vadd.f32 %v2972, %v3076
        %3078 = vmatprep.mubr.bf16.mxu0 0
        %3079 = vmatmul.mubr.bf16.gmra.mrb[0].mxu0 %v3014
        %v3080 = vpop.f32.mrb[0].mxu0
        %v3081 = vadd.f32 %v2977, %v3080
        %v3082 = vpop.f32.mrb[0].mxu0
        %v3083 = vadd.f32 %v2977, %v3082
        %v3084 = vpop.f32.mrb[0].mxu0
        %v3085 = vadd.f32 %v2982, %v3084
        %v3086 = vpop.f32.mrb[0].mxu0
        %v3087 = vadd.f32 %v2982, %v3086
        %3088 = vdwg.mxu0
        %3097 = vrot.lane.b32.xlu0 %v3051, 4
        %v3098 = vpop.permute.xlu0 %3097
        %3099 = vrot.lane.b32.xlu0 %v3053, 4
        %v3100 = vpop.permute.xlu0 %3099
        %3101 = vrot.lane.b32.xlu0 %v3055, 4
        %v3102 = vpop.permute.xlu0 %3101
        %3103 = vrot.lane.b32.xlu0 %v3057, 4
        %v3104 = vpop.permute.xlu0 %3103
        %3105 = vrot.lane.b32.xlu0 %v3061, 4
        %v3106 = vpop.permute.xlu0 %3105
        %3107 = vrot.lane.b32.xlu0 %v3063, 4
        %v3108 = vpop.permute.xlu0 %3107
        %3109 = vrot.lane.b32.xlu0 %v3065, 4
        %v3110 = vpop.permute.xlu0 %3109
        %3111 = vrot.lane.b32.xlu0 %v3067, 4
        %v3112 = vpop.permute.xlu0 %3111
        %v3113 = vsel %vm972, %v3098, %v3100
        %v3114 = vsel %vm972, %v3102, %v3104
        %v3115 = vsel %vm972, %v3106, %v3108
        %v3116 = vsel %vm972, %v3110, %v3112
        %v3125 = vadd.f32 %v2079, %v3098
        %v3126 = vadd.f32 %v2080, %v3113
        %v3127 = vadd.f32 %v2081, %v3102
        %v3128 = vadd.f32 %v2082, %v3114
        %v3129 = vadd.f32 %v2083, %v3106
        %v3130 = vadd.f32 %v2084, %v3115
        %v3131 = vadd.f32 %v2085, %v3110
        %v3132 = vadd.f32 %v2086, %v3116
        %v3133 = vmul.f32 %v3125, %v1042
        %v3134 = vmul.f32 %v3126, %v1046
        %v3135 = vmul.f32 %v3127, %v1042
        %v3136 = vmul.f32 %v3128, %v1046
        %v3137 = vmul.f32 %v3129, %v1042
        %v3138 = vmul.f32 %v3130, %v1046
        %v3139 = vmul.f32 %v3131, %v1042
        %v3140 = vmul.f32 %v3132, %v1046
        %3149 = vrot.lane.b32.xlu0 %v3071, 2
        %v3150 = vpop.permute.xlu0 %3149
        %3151 = vrot.lane.b32.xlu0 %v3073, 2
        %v3152 = vpop.permute.xlu0 %3151
        %3153 = vrot.lane.b32.xlu0 %v3075, 2
        %v3154 = vpop.permute.xlu0 %3153
        %3155 = vrot.lane.b32.xlu0 %v3077, 2
        %v3156 = vpop.permute.xlu0 %3155
        %3157 = vrot.lane.b32.xlu0 %v3081, 2
        %v3158 = vpop.permute.xlu0 %3157
        %3159 = vrot.lane.b32.xlu0 %v3083, 2
        %v3160 = vpop.permute.xlu0 %3159
        %3161 = vrot.lane.b32.xlu0 %v3085, 2
        %v3162 = vpop.permute.xlu0 %3161
        %3163 = vrot.lane.b32.xlu0 %v3087, 2
        %v3164 = vpop.permute.xlu0 %3163
        %v3165 = vsel %vm2058, %v3150, %v3152
        %v3166 = vsel %vm2058, %v3154, %v3156
        %v3167 = vsel %vm2058, %v3158, %v3160
        %v3168 = vsel %vm2058, %v3162, %v3164
        %v3177 = vadd.f32 %v2087, %v3150
        %v3178 = vadd.f32 %v2088, %v3165
        %v3179 = vadd.f32 %v2089, %v3154
        %v3180 = vadd.f32 %v2090, %v3166
        %v3181 = vadd.f32 %v2091, %v3158
        %v3182 = vadd.f32 %v2092, %v3167
        %v3183 = vadd.f32 %v2093, %v3162
        %v3184 = vadd.f32 %v2094, %v3168
        %v3185 = vpack.c.bf16 %v3135, %v3133
        %v3186 = vpack.c.bf16 %v3136, %v3134
        %v3187 = vpack.c.bf16 %v3139, %v3137
        %v3188 = vpack.c.bf16 %v3140, %v3138
        %s3189 = scalar_lea.vmem [#allocation17], 320
        %v3190 = vld [vmem:[%s3189] sm:$0xf]
        %v3191 = vld [vmem:[%s3189 + $0x4] sm:$0xf]
        %v3192 = vld [vmem:[%s3189 + $0x8] sm:$0xf]
        %v3193 = vld [vmem:[%s3189 + $0xc] sm:$0xf]
        %v3194 = vld [vmem:[%s3189 + $0x10] sm:$0xf]
        %v3195 = vld [vmem:[%s3189 + $0x14] sm:$0xf]
        %v3196 = vld [vmem:[%s3189 + $0x18] sm:$0xf]
        %v3197 = vld [vmem:[%s3189 + $0x1c] sm:$0xf]
        %s3198 = scalar_lea.vmem [#allocation17], 352
        %v3199 = vld [vmem:[%s3198] sm:$0xf]
        %v3200 = vld [vmem:[%s3198 + $0x4] sm:$0xf]
        %v3201 = vld [vmem:[%s3198 + $0x8] sm:$0xf]
        %v3202 = vld [vmem:[%s3198 + $0xc] sm:$0xf]
        %v3203 = vld [vmem:[%s3198 + $0x10] sm:$0xf]
        %v3204 = vld [vmem:[%s3198 + $0x14] sm:$0xf]
        %v3205 = vld [vmem:[%s3198 + $0x18] sm:$0xf]
        %v3206 = vld [vmem:[%s3198 + $0x1c] sm:$0xf]
        %v3215 = vunpack.c.l.b16 %v3199
        %v3216 = vunpack.c.l.b16 %v3200
        %v3217 = vunpack.c.l.b16 %v3201
        %v3218 = vunpack.c.l.b16 %v3202
        %v3219 = vunpack.c.l.b16 %v3203
        %v3220 = vunpack.c.l.b16 %v3204
        %v3221 = vunpack.c.l.b16 %v3205
        %v3222 = vunpack.c.l.b16 %v3206
        %v3223 = vpack.c.b16 %v3216, %v3215
        %v3224 = vpack.c.b16 %v3218, %v3217
        %v3225 = vpack.c.b16 %v3220, %v3219
        %v3226 = vpack.c.b16 %v3222, %v3221
        %3231 = vrot.lane.b32.xlu0 %v3185, 123
        %v3232 = vpop.permute.xlu0 %3231
        %3233 = vrot.lane.b32.xlu0 %v3186, 123
        %v3234 = vpop.permute.xlu0 %3233
        %3235 = vrot.lane.b32.xlu0 %v3187, 123
        %v3236 = vpop.permute.xlu0 %3235
        %3237 = vrot.lane.b32.xlu0 %v3188, 123
        %v3238 = vpop.permute.xlu0 %3237
        %v3239 = vsel %vm2540, %v3232, %v3234
        %v3240 = vsel %vm2540, %v3236, %v3238
        %v3246 = vsel %vm1115, %v3223, 0
        %v3249 = vsel %vm1115, %v3224, 0
        %v3252 = vsel %vm1115, %v3225, 0
        %v3255 = vsel %vm1115, %v3226, 0
        %3257 = vmatprep.subr.bf16.mxu0 %v3234
        %3258 = vmatpush1.bf16.msra.mxu0 %v3239
        %3259 = vmatprep.subr.bf16.mxu0 %v3238
        %3260 = vmatpush1.bf16.msra.mxu0 %v3240
        %3261 = vmatprep.subr.bf16.mxu0 0
        %3262 = vmatpush1.bf16.msra.mxu0 0
        %3263 = vmatprep.subr.bf16.mxu0 0
        %3264 = vmatpush1.bf16.msra.mxu0 0
        %3265 = vmatprep.subr.bf16.mxu0 0
        %3266 = vmatpush1.bf16.msra.mxu0 0
        %3267 = vmatprep.subr.bf16.mxu0 0
        %3268 = vmatpush1.bf16.msra.mxu0 0
        %3269 = vmatprep.subr.bf16.mxu0 0
        %3270 = vmatpush1.bf16.msra.mxu0 0
        %3271 = vmatprep.subr.bf16.mxu0 0
        %3272 = vmatpush1.bf16.msra.mxu0 0
        %3273 = vmatprep.subr.bf16.mxu0 0
        %3274 = vmatpush1.bf16.msra.mxu0 0
        %3275 = vmatprep.subr.bf16.mxu0 0
        %3276 = vmatpush1.bf16.msra.mxu0 0
        %3277 = vmatprep.subr.bf16.mxu0 0
        %3278 = vmatpush1.bf16.msra.mxu0 0
        %3279 = vmatprep.subr.bf16.mxu0 0
        %3280 = vmatpush1.bf16.msra.mxu0 0
        %3281 = vmatprep.subr.bf16.mxu0 0
        %3282 = vmatpush1.bf16.msra.mxu0 0
        %3283 = vmatprep.subr.bf16.mxu0 0
        %3284 = vmatpush1.bf16.msra.mxu0 0
        %3285 = vmatprep.subr.bf16.mxu0 0
        %3286 = vmatpush1.bf16.msra.mxu0 0
        %3287 = vmatprep.subr.bf16.mxu0 0
        %3288 = vmatpush1.bf16.msra.mxu0 0
        %3289 = vmatprep.mubr.bf16.mxu0 0
        %3290 = vmatmul.mubr.bf16.gmra.mrb[0].mxu0 %v3246
        %v3291 = vpop.f32.mrb[0].mxu0
        %v3292 = vadd.f32 0.0, %v3291
        %v3293 = vpop.f32.mrb[0].mxu0
        %v3294 = vadd.f32 0.0, %v3293
        %v3295 = vpop.f32.mrb[0].mxu0
        %v3296 = vadd.f32 0.0, %v3295
        %v3297 = vpop.f32.mrb[0].mxu0
        %v3298 = vadd.f32 0.0, %v3297
        %3299 = vmatprep.mubr.bf16.mxu0 0
        %3300 = vmatmul.mubr.bf16.gmra.mrb[0].mxu0 %v3249
        %v3301 = vpop.f32.mrb[0].mxu0
        %v3302 = vadd.f32 0.0, %v3301
        %v3303 = vpop.f32.mrb[0].mxu0
        %v3304 = vadd.f32 0.0, %v3303
        %v3305 = vpop.f32.mrb[0].mxu0
        %v3306 = vadd.f32 0.0, %v3305
        %v3307 = vpop.f32.mrb[0].mxu0
        %v3308 = vadd.f32 0.0, %v3307
        %3309 = vmatprep.mubr.bf16.mxu0 0
        %3310 = vmatmul.mubr.bf16.gmra.mrb[0].mxu0 %v3252
        %v3311 = vpop.f32.mrb[0].mxu0
        %v3312 = vadd.f32 0.0, %v3311
        %v3313 = vpop.f32.mrb[0].mxu0
        %v3314 = vadd.f32 0.0, %v3313
        %v3315 = vpop.f32.mrb[0].mxu0
        %v3316 = vadd.f32 0.0, %v3315
        %v3317 = vpop.f32.mrb[0].mxu0
        %v3318 = vadd.f32 0.0, %v3317
        %3319 = vmatprep.mubr.bf16.mxu0 0
        %3320 = vmatmul.mubr.bf16.gmra.mrb[0].mxu0 %v3255
        %v3321 = vpop.f32.mrb[0].mxu0
        %v3322 = vadd.f32 0.0, %v3321
        %v3323 = vpop.f32.mrb[0].mxu0
        %v3324 = vadd.f32 0.0, %v3323
        %v3325 = vpop.f32.mrb[0].mxu0
        %v3326 = vadd.f32 0.0, %v3325
        %v3327 = vpop.f32.mrb[0].mxu0
        %v3328 = vadd.f32 0.0, %v3327
        %3329 = vdwg.mxu0
        %v3338 = vunpack.c.l.b16 %v3190
        %v3339 = vunpack.c.l.b16 %v3191
        %v3340 = vunpack.c.l.b16 %v3192
        %v3341 = vunpack.c.l.b16 %v3193
        %v3342 = vunpack.c.l.b16 %v3194
        %v3343 = vunpack.c.l.b16 %v3195
        %v3344 = vunpack.c.l.b16 %v3196
        %v3345 = vunpack.c.l.b16 %v3197
        %v3346 = vpack.c.b16 %v3339, %v3338
        %v3347 = vpack.c.b16 %v3341, %v3340
        %v3348 = vpack.c.b16 %v3343, %v3342
        %v3349 = vpack.c.b16 %v3345, %v3344
        %3350 = vrot.lane.b32.xlu0 %v3185, 124
        %v3351 = vpop.permute.xlu0 %3350
        %3352 = vrot.lane.b32.xlu0 %v3186, 124
        %v3353 = vpop.permute.xlu0 %3352
        %3354 = vrot.lane.b32.xlu0 %v3187, 124
        %v3355 = vpop.permute.xlu0 %3354
        %3356 = vrot.lane.b32.xlu0 %v3188, 124
        %v3357 = vpop.permute.xlu0 %3356
        %v3358 = vsel %vm1633, %v3351, %v3353
        %v3359 = vsel %vm1633, %v3355, %v3357
        %v3365 = vsel %vm1115, %v3346, 0
        %v3368 = vsel %vm1115, %v3347, 0
        %v3371 = vsel %vm1115, %v3348, 0
        %v3374 = vsel %vm1115, %v3349, 0
        %3376 = vmatprep.subr.bf16.mxu0 %v3353
        %3377 = vmatpush1.bf16.msra.mxu0 %v3358
        %3378 = vmatprep.subr.bf16.mxu0 %v3357
        %3379 = vmatpush1.bf16.msra.mxu0 %v3359
        %3380 = vmatprep.subr.bf16.mxu0 0
        %3381 = vmatpush1.bf16.msra.mxu0 0
        %3382 = vmatprep.subr.bf16.mxu0 0
        %3383 = vmatpush1.bf16.msra.mxu0 0
        %3384 = vmatprep.subr.bf16.mxu0 0
        %3385 = vmatpush1.bf16.msra.mxu0 0
        %3386 = vmatprep.subr.bf16.mxu0 0
        %3387 = vmatpush1.bf16.msra.mxu0 0
        %3388 = vmatprep.subr.bf16.mxu0 0
        %3389 = vmatpush1.bf16.msra.mxu0 0
        %3390 = vmatprep.subr.bf16.mxu0 0
        %3391 = vmatpush1.bf16.msra.mxu0 0
        %3392 = vmatprep.subr.bf16.mxu0 0
        %3393 = vmatpush1.bf16.msra.mxu0 0
        %3394 = vmatprep.subr.bf16.mxu0 0
        %3395 = vmatpush1.bf16.msra.mxu0 0
        %3396 = vmatprep.subr.bf16.mxu0 0
        %3397 = vmatpush1.bf16.msra.mxu0 0
        %3398 = vmatprep.subr.bf16.mxu0 0
        %3399 = vmatpush1.bf16.msra.mxu0 0
        %3400 = vmatprep.subr.bf16.mxu0 0
        %3401 = vmatpush1.bf16.msra.mxu0 0
        %3402 = vmatprep.subr.bf16.mxu0 0
        %3403 = vmatpush1.bf16.msra.mxu0 0
        %3404 = vmatprep.subr.bf16.mxu0 0
        %3405 = vmatpush1.bf16.msra.mxu0 0
        %3406 = vmatprep.subr.bf16.mxu0 0
        %3407 = vmatpush1.bf16.msra.mxu0 0
        %3408 = vmatprep.mubr.bf16.mxu0 0
        %3409 = vmatmul.mubr.bf16.gmra.mrb[0].mxu0 %v3365
        %v3410 = vpop.f32.mrb[0].mxu0
        %v3411 = vadd.f32 %v3292, %v3410
        %v3412 = vpop.f32.mrb[0].mxu0
        %v3413 = vadd.f32 %v3294, %v3412
        %v3414 = vpop.f32.mrb[0].mxu0
        %v3415 = vadd.f32 %v3296, %v3414
        %v3416 = vpop.f32.mrb[0].mxu0
        %v3417 = vadd.f32 %v3298, %v3416
        %3418 = vmatprep.mubr.bf16.mxu0 0
        %3419 = vmatmul.mubr.bf16.gmra.mrb[0].mxu0 %v3368
        %v3420 = vpop.f32.mrb[0].mxu0
        %v3421 = vadd.f32 %v3302, %v3420
        %v3422 = vpop.f32.mrb[0].mxu0
        %v3423 = vadd.f32 %v3304, %v3422
        %v3424 = vpop.f32.mrb[0].mxu0
        %v3425 = vadd.f32 %v3306, %v3424
        %v3426 = vpop.f32.mrb[0].mxu0
        %v3427 = vadd.f32 %v3308, %v3426
        %3428 = vmatprep.mubr.bf16.mxu0 0
        %3429 = vmatmul.mubr.bf16.gmra.mrb[0].mxu0 %v3371
        %v3430 = vpop.f32.mrb[0].mxu0
        %v3431 = vadd.f32 %v3312, %v3430
        %v3432 = vpop.f32.mrb[0].mxu0
        %v3433 = vadd.f32 %v3314, %v3432
        %v3434 = vpop.f32.mrb[0].mxu0
        %v3435 = vadd.f32 %v3316, %v3434
        %v3436 = vpop.f32.mrb[0].mxu0
        %v3437 = vadd.f32 %v3318, %v3436
        %3438 = vmatprep.mubr.bf16.mxu0 0
        %3439 = vmatmul.mubr.bf16.gmra.mrb[0].mxu0 %v3374
        %v3440 = vpop.f32.mrb[0].mxu0
        %v3441 = vadd.f32 %v3322, %v3440
        %v3442 = vpop.f32.mrb[0].mxu0
        %v3443 = vadd.f32 %v3324, %v3442
        %v3444 = vpop.f32.mrb[0].mxu0
        %v3445 = vadd.f32 %v3326, %v3444
        %v3446 = vpop.f32.mrb[0].mxu0
        %v3447 = vadd.f32 %v3328, %v3446
        %3448 = vdwg.mxu0
        %s3449 = scalar_lea.vmem [#allocation17], 384
        %v3450 = vld [vmem:[%s3449] sm:$0xf]
        %v3451 = vld [vmem:[%s3449 + $0x4] sm:$0xf]
        %v3452 = vld [vmem:[%s3449 + $0x8] sm:$0xf]
        %v3453 = vld [vmem:[%s3449 + $0xc] sm:$0xf]
        %v3454 = vld [vmem:[%s3449 + $0x10] sm:$0xf]
        %v3455 = vld [vmem:[%s3449 + $0x14] sm:$0xf]
        %v3456 = vld [vmem:[%s3449 + $0x18] sm:$0xf]
        %v3457 = vld [vmem:[%s3449 + $0x1c] sm:$0xf]
        %v3466 = vunpack.c.l.b16 %v3450
        %v3467 = vunpack.c.l.b16 %v3451
        %v3468 = vunpack.c.l.b16 %v3452
        %v3469 = vunpack.c.l.b16 %v3453
        %v3470 = vunpack.c.l.b16 %v3454
        %v3471 = vunpack.c.l.b16 %v3455
        %v3472 = vunpack.c.l.b16 %v3456
        %v3473 = vunpack.c.l.b16 %v3457
        %v3474 = vpack.c.b16 %v3467, %v3466
        %v3475 = vpack.c.b16 %v3469, %v3468
        %v3476 = vpack.c.b16 %v3471, %v3470
        %v3477 = vpack.c.b16 %v3473, %v3472
        %3478 = vrot.lane.b32.xlu0 %v3185, 122
        %v3479 = vpop.permute.xlu0 %3478
        %3480 = vrot.lane.b32.xlu0 %v3186, 122
        %v3481 = vpop.permute.xlu0 %3480
        %3482 = vrot.lane.b32.xlu0 %v3187, 122
        %v3483 = vpop.permute.xlu0 %3482
        %3484 = vrot.lane.b32.xlu0 %v3188, 122
        %v3485 = vpop.permute.xlu0 %3484
        %v3486 = vsel %vm2685, %v3479, %v3481
        %v3487 = vsel %vm2685, %v3483, %v3485
        %v3493 = vsel %vm1115, %v3474, 0
        %v3496 = vsel %vm1115, %v3475, 0
        %v3499 = vsel %vm1115, %v3476, 0
        %v3502 = vsel %vm1115, %v3477, 0
        %3504 = vmatprep.subr.bf16.mxu0 %v3481
        %3505 = vmatpush1.bf16.msra.mxu0 %v3486
        %3506 = vmatprep.subr.bf16.mxu0 %v3485
        %3507 = vmatpush1.bf16.msra.mxu0 %v3487
        %3508 = vmatprep.subr.bf16.mxu0 0
        %3509 = vmatpush1.bf16.msra.mxu0 0
        %3510 = vmatprep.subr.bf16.mxu0 0
        %3511 = vmatpush1.bf16.msra.mxu0 0
        %3512 = vmatprep.subr.bf16.mxu0 0
        %3513 = vmatpush1.bf16.msra.mxu0 0
        %3514 = vmatprep.subr.bf16.mxu0 0
        %3515 = vmatpush1.bf16.msra.mxu0 0
        %3516 = vmatprep.subr.bf16.mxu0 0
        %3517 = vmatpush1.bf16.msra.mxu0 0
        %3518 = vmatprep.subr.bf16.mxu0 0
        %3519 = vmatpush1.bf16.msra.mxu0 0
        %3520 = vmatprep.subr.bf16.mxu0 0
        %3521 = vmatpush1.bf16.msra.mxu0 0
        %3522 = vmatprep.subr.bf16.mxu0 0
        %3523 = vmatpush1.bf16.msra.mxu0 0
        %3524 = vmatprep.subr.bf16.mxu0 0
        %3525 = vmatpush1.bf16.msra.mxu0 0
        %3526 = vmatprep.subr.bf16.mxu0 0
        %3527 = vmatpush1.bf16.msra.mxu0 0
        %3528 = vmatprep.subr.bf16.mxu0 0
        %3529 = vmatpush1.bf16.msra.mxu0 0
        %3530 = vmatprep.subr.bf16.mxu0 0
        %3531 = vmatpush1.bf16.msra.mxu0 0
        %3532 = vmatprep.subr.bf16.mxu0 0
        %3533 = vmatpush1.bf16.msra.mxu0 0
        %3534 = vmatprep.subr.bf16.mxu0 0
        %3535 = vmatpush1.bf16.msra.mxu0 0
        %3536 = vmatprep.mubr.bf16.mxu0 0
        %3537 = vmatmul.mubr.bf16.gmra.mrb[0].mxu0 %v3493
        %v3538 = vpop.f32.mrb[0].mxu0
        %v3539 = vadd.f32 0.0, %v3538
        %v3540 = vpop.f32.mrb[0].mxu0
        %v3541 = vadd.f32 0.0, %v3540
        %v3542 = vpop.f32.mrb[0].mxu0
        %v3543 = vadd.f32 0.0, %v3542
        %v3544 = vpop.f32.mrb[0].mxu0
        %v3545 = vadd.f32 0.0, %v3544
        %3546 = vmatprep.mubr.bf16.mxu0 0
        %3547 = vmatmul.mubr.bf16.gmra.mrb[0].mxu0 %v3496
        %v3548 = vpop.f32.mrb[0].mxu0
        %v3549 = vadd.f32 0.0, %v3548
        %v3550 = vpop.f32.mrb[0].mxu0
        %v3551 = vadd.f32 0.0, %v3550
        %v3552 = vpop.f32.mrb[0].mxu0
        %v3553 = vadd.f32 0.0, %v3552
        %v3554 = vpop.f32.mrb[0].mxu0
        %v3555 = vadd.f32 0.0, %v3554
        %3556 = vmatprep.mubr.bf16.mxu0 0
        %3557 = vmatmul.mubr.bf16.gmra.mrb[0].mxu0 %v3499
        %v3558 = vpop.f32.mrb[0].mxu0
        %v3559 = vadd.f32 0.0, %v3558
        %v3560 = vpop.f32.mrb[0].mxu0
        %v3561 = vadd.f32 0.0, %v3560
        %v3562 = vpop.f32.mrb[0].mxu0
        %v3563 = vadd.f32 0.0, %v3562
        %v3564 = vpop.f32.mrb[0].mxu0
        %v3565 = vadd.f32 0.0, %v3564
        %3566 = vmatprep.mubr.bf16.mxu0 0
        %3567 = vmatmul.mubr.bf16.gmra.mrb[0].mxu0 %v3502
        %v3568 = vpop.f32.mrb[0].mxu0
        %v3569 = vadd.f32 0.0, %v3568
        %v3570 = vpop.f32.mrb[0].mxu0
        %v3571 = vadd.f32 0.0, %v3570
        %v3572 = vpop.f32.mrb[0].mxu0
        %v3573 = vadd.f32 0.0, %v3572
        %v3574 = vpop.f32.mrb[0].mxu0
        %v3575 = vadd.f32 0.0, %v3574
        %3576 = vdwg.mxu0
        %v3577 = vadd.f32 %v3411, %v3539
        %v3578 = vadd.f32 %v3413, %v3541
        %v3579 = vadd.f32 %v3415, %v3543
        %v3580 = vadd.f32 %v3417, %v3545
        %v3581 = vadd.f32 %v3421, %v3549
        %v3582 = vadd.f32 %v3423, %v3551
        %v3583 = vadd.f32 %v3425, %v3553
        %v3584 = vadd.f32 %v3427, %v3555
        %v3585 = vadd.f32 %v3431, %v3559
        %v3586 = vadd.f32 %v3433, %v3561
        %v3587 = vadd.f32 %v3435, %v3563
        %v3588 = vadd.f32 %v3437, %v3565
        %v3589 = vadd.f32 %v3441, %v3569
        %v3590 = vadd.f32 %v3443, %v3571
        %v3591 = vadd.f32 %v3445, %v3573
        %v3592 = vadd.f32 %v3447, %v3575
        %s3593 = scalar_lea.vmem [#allocation17], 416
        %v3594 = vld [vmem:[%s3593] sm:$0xf]
        %v3595 = vld [vmem:[%s3593 + $0x4] sm:$0xf]
        %v3596 = vld [vmem:[%s3593 + $0x8] sm:$0xf]
        %v3597 = vld [vmem:[%s3593 + $0xc] sm:$0xf]
        %v3598 = vld [vmem:[%s3593 + $0x10] sm:$0xf]
        %v3599 = vld [vmem:[%s3593 + $0x14] sm:$0xf]
        %v3600 = vld [vmem:[%s3593 + $0x18] sm:$0xf]
        %v3601 = vld [vmem:[%s3593 + $0x1c] sm:$0xf]
        %v3610 = vunpack.c.l.b16 %v3594
        %v3611 = vunpack.c.l.b16 %v3595
        %v3612 = vunpack.c.l.b16 %v3596
        %v3613 = vunpack.c.l.b16 %v3597
        %v3614 = vunpack.c.l.b16 %v3598
        %v3615 = vunpack.c.l.b16 %v3599
        %v3616 = vunpack.c.l.b16 %v3600
        %v3617 = vunpack.c.l.b16 %v3601
        %v3618 = vpack.c.b16 %v3611, %v3610
        %v3619 = vpack.c.b16 %v3613, %v3612
        %v3620 = vpack.c.b16 %v3615, %v3614
        %v3621 = vpack.c.b16 %v3617, %v3616
        %3622 = vrot.lane.b32.xlu0 %v3185, 121
        %v3623 = vpop.permute.xlu0 %3622
        %3624 = vrot.lane.b32.xlu0 %v3186, 121
        %v3625 = vpop.permute.xlu0 %3624
        %3626 = vrot.lane.b32.xlu0 %v3187, 121
        %v3627 = vpop.permute.xlu0 %3626
        %3628 = vrot.lane.b32.xlu0 %v3188, 121
        %v3629 = vpop.permute.xlu0 %3628
        %vm3630 = vcmask 990208
        %v3631 = vsel %vm3630, %v3623, %v3625
        %v3632 = vsel %vm3630, %v3627, %v3629
        %v3638 = vsel %vm1115, %v3618, 0
        %v3641 = vsel %vm1115, %v3619, 0
        %v3644 = vsel %vm1115, %v3620, 0
        %v3647 = vsel %vm1115, %v3621, 0
        %3649 = vmatprep.subr.bf16.mxu0 %v3625
        %3650 = vmatpush1.bf16.msra.mxu0 %v3631
        %3651 = vmatprep.subr.bf16.mxu0 %v3629
        %3652 = vmatpush1.bf16.msra.mxu0 %v3632
        %3653 = vmatprep.subr.bf16.mxu0 0
        %3654 = vmatpush1.bf16.msra.mxu0 0
        %3655 = vmatprep.subr.bf16.mxu0 0
        %3656 = vmatpush1.bf16.msra.mxu0 0
        %3657 = vmatprep.subr.bf16.mxu0 0
        %3658 = vmatpush1.bf16.msra.mxu0 0
        %3659 = vmatprep.subr.bf16.mxu0 0
        %3660 = vmatpush1.bf16.msra.mxu0 0
        %3661 = vmatprep.subr.bf16.mxu0 0
        %3662 = vmatpush1.bf16.msra.mxu0 0
        %3663 = vmatprep.subr.bf16.mxu0 0
        %3664 = vmatpush1.bf16.msra.mxu0 0
        %3665 = vmatprep.subr.bf16.mxu0 0
        %3666 = vmatpush1.bf16.msra.mxu0 0
        %3667 = vmatprep.subr.bf16.mxu0 0
        %3668 = vmatpush1.bf16.msra.mxu0 0
        %3669 = vmatprep.subr.bf16.mxu0 0
        %3670 = vmatpush1.bf16.msra.mxu0 0
        %3671 = vmatprep.subr.bf16.mxu0 0
        %3672 = vmatpush1.bf16.msra.mxu0 0
        %3673 = vmatprep.subr.bf16.mxu0 0
        %3674 = vmatpush1.bf16.msra.mxu0 0
        %3675 = vmatprep.subr.bf16.mxu0 0
        %3676 = vmatpush1.bf16.msra.mxu0 0
        %3677 = vmatprep.subr.bf16.mxu0 0
        %3678 = vmatpush1.bf16.msra.mxu0 0
        %3679 = vmatprep.subr.bf16.mxu0 0
        %3680 = vmatpush1.bf16.msra.mxu0 0
        %3681 = vmatprep.mubr.bf16.mxu0 0
        %3682 = vmatmul.mubr.bf16.gmra.mrb[0].mxu0 %v3638
        %v3683 = vpop.f32.mrb[0].mxu0
        %v3684 = vadd.f32 0.0, %v3683
        %v3685 = vpop.f32.mrb[0].mxu0
        %v3686 = vadd.f32 0.0, %v3685
        %v3687 = vpop.f32.mrb[0].mxu0
        %v3688 = vadd.f32 0.0, %v3687
        %v3689 = vpop.f32.mrb[0].mxu0
        %v3690 = vadd.f32 0.0, %v3689
        %3691 = vmatprep.mubr.bf16.mxu0 0
        %3692 = vmatmul.mubr.bf16.gmra.mrb[0].mxu0 %v3641
        %v3693 = vpop.f32.mrb[0].mxu0
        %v3694 = vadd.f32 0.0, %v3693
        %v3695 = vpop.f32.mrb[0].mxu0
        %v3696 = vadd.f32 0.0, %v3695
        %v3697 = vpop.f32.mrb[0].mxu0
        %v3698 = vadd.f32 0.0, %v3697
        %v3699 = vpop.f32.mrb[0].mxu0
        %v3700 = vadd.f32 0.0, %v3699
        %3701 = vmatprep.mubr.bf16.mxu0 0
        %3702 = vmatmul.mubr.bf16.gmra.mrb[0].mxu0 %v3644
        %v3703 = vpop.f32.mrb[0].mxu0
        %v3704 = vadd.f32 0.0, %v3703
        %v3705 = vpop.f32.mrb[0].mxu0
        %v3706 = vadd.f32 0.0, %v3705
        %v3707 = vpop.f32.mrb[0].mxu0
        %v3708 = vadd.f32 0.0, %v3707
        %v3709 = vpop.f32.mrb[0].mxu0
        %v3710 = vadd.f32 0.0, %v3709
        %3711 = vmatprep.mubr.bf16.mxu0 0
        %3712 = vmatmul.mubr.bf16.gmra.mrb[0].mxu0 %v3647
        %v3713 = vpop.f32.mrb[0].mxu0
        %v3714 = vadd.f32 0.0, %v3713
        %v3715 = vpop.f32.mrb[0].mxu0
        %v3716 = vadd.f32 0.0, %v3715
        %v3717 = vpop.f32.mrb[0].mxu0
        %v3718 = vadd.f32 0.0, %v3717
        %v3719 = vpop.f32.mrb[0].mxu0
        %v3720 = vadd.f32 0.0, %v3719
        %3721 = vdwg.mxu0
        %v3722 = vadd.f32 %v3577, %v3684
        %v3723 = vadd.f32 %v3578, %v3686
        %v3724 = vadd.f32 %v3579, %v3688
        %v3725 = vadd.f32 %v3580, %v3690
        %v3726 = vadd.f32 %v3581, %v3694
        %v3727 = vadd.f32 %v3582, %v3696
        %v3728 = vadd.f32 %v3583, %v3698
        %v3729 = vadd.f32 %v3584, %v3700
        %v3730 = vadd.f32 %v3585, %v3704
        %v3731 = vadd.f32 %v3586, %v3706
        %v3732 = vadd.f32 %v3587, %v3708
        %v3733 = vadd.f32 %v3588, %v3710
        %v3734 = vadd.f32 %v3589, %v3714
        %v3735 = vadd.f32 %v3590, %v3716
        %v3736 = vadd.f32 %v3591, %v3718
        %v3737 = vadd.f32 %v3592, %v3720
        %s3738 = scalar_lea.vmem [#allocation17], 448
        %v3739 = vld [vmem:[%s3738] sm:$0xf]
        %v3740 = vld [vmem:[%s3738 + $0x4] sm:$0xf]
        %v3741 = vld [vmem:[%s3738 + $0x8] sm:$0xf]
        %v3742 = vld [vmem:[%s3738 + $0xc] sm:$0xf]
        %v3743 = vld [vmem:[%s3738 + $0x10] sm:$0xf]
        %v3744 = vld [vmem:[%s3738 + $0x14] sm:$0xf]
        %v3745 = vld [vmem:[%s3738 + $0x18] sm:$0xf]
        %v3746 = vld [vmem:[%s3738 + $0x1c] sm:$0xf]
        %v3755 = vunpack.c.l.b16 %v3739
        %v3756 = vunpack.c.l.b16 %v3740
        %v3757 = vunpack.c.l.b16 %v3741
        %v3758 = vunpack.c.l.b16 %v3742
        %v3759 = vunpack.c.l.b16 %v3743
        %v3760 = vunpack.c.l.b16 %v3744
        %v3761 = vunpack.c.l.b16 %v3745
        %v3762 = vunpack.c.l.b16 %v3746
        %v3763 = vpack.c.b16 %v3756, %v3755
        %v3764 = vpack.c.b16 %v3758, %v3757
        %v3765 = vpack.c.b16 %v3760, %v3759
        %v3766 = vpack.c.b16 %v3762, %v3761
        %3767 = vrot.lane.b32.xlu0 %v3185, 120
        %v3768 = vpop.permute.xlu0 %3767
        %3769 = vrot.lane.b32.xlu0 %v3186, 120
        %v3770 = vpop.permute.xlu0 %3769
        %3771 = vrot.lane.b32.xlu0 %v3187, 120
        %v3772 = vpop.permute.xlu0 %3771
        %3773 = vrot.lane.b32.xlu0 %v3188, 120
        %v3774 = vpop.permute.xlu0 %3773
        %vm3775 = vcmask 982016
        %v3776 = vsel %vm3775, %v3768, %v3770
        %v3777 = vsel %vm3775, %v3772, %v3774
        %v3783 = vsel %vm1115, %v3763, 0
        %v3786 = vsel %vm1115, %v3764, 0
        %v3789 = vsel %vm1115, %v3765, 0
        %v3792 = vsel %vm1115, %v3766, 0
        %3794 = vmatprep.subr.bf16.mxu0 %v3770
        %3795 = vmatpush1.bf16.msra.mxu0 %v3776
        %3796 = vmatprep.subr.bf16.mxu0 %v3774
        %3797 = vmatpush1.bf16.msra.mxu0 %v3777
        %3798 = vmatprep.subr.bf16.mxu0 0
        %3799 = vmatpush1.bf16.msra.mxu0 0
        %3800 = vmatprep.subr.bf16.mxu0 0
        %3801 = vmatpush1.bf16.msra.mxu0 0
        %3802 = vmatprep.subr.bf16.mxu0 0
        %3803 = vmatpush1.bf16.msra.mxu0 0
        %3804 = vmatprep.subr.bf16.mxu0 0
        %3805 = vmatpush1.bf16.msra.mxu0 0
        %3806 = vmatprep.subr.bf16.mxu0 0
        %3807 = vmatpush1.bf16.msra.mxu0 0
        %3808 = vmatprep.subr.bf16.mxu0 0
        %3809 = vmatpush1.bf16.msra.mxu0 0
        %3810 = vmatprep.subr.bf16.mxu0 0
        %3811 = vmatpush1.bf16.msra.mxu0 0
        %3812 = vmatprep.subr.bf16.mxu0 0
        %3813 = vmatpush1.bf16.msra.mxu0 0
        %3814 = vmatprep.subr.bf16.mxu0 0
        %3815 = vmatpush1.bf16.msra.mxu0 0
        %3816 = vmatprep.subr.bf16.mxu0 0
        %3817 = vmatpush1.bf16.msra.mxu0 0
        %3818 = vmatprep.subr.bf16.mxu0 0
        %3819 = vmatpush1.bf16.msra.mxu0 0
        %3820 = vmatprep.subr.bf16.mxu0 0
        %3821 = vmatpush1.bf16.msra.mxu0 0
        %3822 = vmatprep.subr.bf16.mxu0 0
        %3823 = vmatpush1.bf16.msra.mxu0 0
        %3824 = vmatprep.subr.bf16.mxu0 0
        %3825 = vmatpush1.bf16.msra.mxu0 0
        %3826 = vmatprep.mubr.bf16.mxu0 0
        %3827 = vmatmul.mubr.bf16.gmra.mrb[0].mxu0 %v3783
        %v3828 = vpop.f32.mrb[0].mxu0
        %v3829 = vadd.f32 0.0, %v3828
        %v3830 = vpop.f32.mrb[0].mxu0
        %v3831 = vadd.f32 0.0, %v3830
        %v3832 = vpop.f32.mrb[0].mxu0
        %v3833 = vadd.f32 0.0, %v3832
        %v3834 = vpop.f32.mrb[0].mxu0
        %v3835 = vadd.f32 0.0, %v3834
        %3836 = vmatprep.mubr.bf16.mxu0 0
        %3837 = vmatmul.mubr.bf16.gmra.mrb[0].mxu0 %v3786
        %v3838 = vpop.f32.mrb[0].mxu0
        %v3839 = vadd.f32 0.0, %v3838
        %v3840 = vpop.f32.mrb[0].mxu0
        %v3841 = vadd.f32 0.0, %v3840
        %v3842 = vpop.f32.mrb[0].mxu0
        %v3843 = vadd.f32 0.0, %v3842
        %v3844 = vpop.f32.mrb[0].mxu0
        %v3845 = vadd.f32 0.0, %v3844
        %3846 = vmatprep.mubr.bf16.mxu0 0
        %3847 = vmatmul.mubr.bf16.gmra.mrb[0].mxu0 %v3789
        %v3848 = vpop.f32.mrb[0].mxu0
        %v3849 = vadd.f32 0.0, %v3848
        %v3850 = vpop.f32.mrb[0].mxu0
        %v3851 = vadd.f32 0.0, %v3850
        %v3852 = vpop.f32.mrb[0].mxu0
        %v3853 = vadd.f32 0.0, %v3852
        %v3854 = vpop.f32.mrb[0].mxu0
        %v3855 = vadd.f32 0.0, %v3854
        %3856 = vmatprep.mubr.bf16.mxu0 0
        %3857 = vmatmul.mubr.bf16.gmra.mrb[0].mxu0 %v3792
        %v3858 = vpop.f32.mrb[0].mxu0
        %v3859 = vadd.f32 0.0, %v3858
        %v3860 = vpop.f32.mrb[0].mxu0
        %v3861 = vadd.f32 0.0, %v3860
        %v3862 = vpop.f32.mrb[0].mxu0
        %v3863 = vadd.f32 0.0, %v3862
        %v3864 = vpop.f32.mrb[0].mxu0
        %v3865 = vadd.f32 0.0, %v3864
        %3866 = vdwg.mxu0
        %v3867 = vadd.f32 %v3722, %v3829
        %v3868 = vadd.f32 %v3723, %v3831
        %v3869 = vadd.f32 %v3724, %v3833
        %v3870 = vadd.f32 %v3725, %v3835
        %v3871 = vadd.f32 %v3726, %v3839
        %v3872 = vadd.f32 %v3727, %v3841
        %v3873 = vadd.f32 %v3728, %v3843
        %v3874 = vadd.f32 %v3729, %v3845
        %v3875 = vadd.f32 %v3730, %v3849
        %v3876 = vadd.f32 %v3731, %v3851
        %v3877 = vadd.f32 %v3732, %v3853
        %v3878 = vadd.f32 %v3733, %v3855
        %v3879 = vadd.f32 %v3734, %v3859
        %v3880 = vadd.f32 %v3735, %v3861
        %v3881 = vadd.f32 %v3736, %v3863
        %v3882 = vadd.f32 %v3737, %v3865
        %s3883 = scalar_lea.vmem [#allocation19], 128
        %v3884 = vld [vmem:[%s3883] sm:$0xff]
        %v3885 = vld [vmem:[%s3883 + $0x8] sm:$0xff]
        %v3886 = vld [vmem:[%s3883 + $0x10] sm:$0xff]
        %v3887 = vld [vmem:[%s3883 + $0x18] sm:$0xff]
        %v3888 = vld [vmem:[%s3883 + $0x20] sm:$0xff]
        %v3889 = vld [vmem:[%s3883 + $0x28] sm:$0xff]
        %v3890 = vld [vmem:[%s3883 + $0x30] sm:$0xff]
        %v3891 = vld [vmem:[%s3883 + $0x38] sm:$0xff]
        %3893 = vset.pattern.permute.xlu0 0
        %3894 = vperm.xlu0 %3893, %v3884
        %v3895 = vpop.permute.xlu0 %3894
        %3898 = vset.pattern.permute.xlu0 0
        %3899 = vperm.xlu0 %3898, %v3885
        %v3900 = vpop.permute.xlu0 %3899
        %3903 = vset.pattern.permute.xlu0 0
        %3904 = vperm.xlu0 %3903, %v3886
        %v3905 = vpop.permute.xlu0 %3904
        %3908 = vset.pattern.permute.xlu0 0
        %3909 = vperm.xlu0 %3908, %v3887
        %v3910 = vpop.permute.xlu0 %3909
        %3913 = vset.pattern.permute.xlu0 0
        %3914 = vperm.xlu0 %3913, %v3888
        %v3915 = vpop.permute.xlu0 %3914
        %3918 = vset.pattern.permute.xlu0 0
        %3919 = vperm.xlu0 %3918, %v3889
        %v3920 = vpop.permute.xlu0 %3919
        %3923 = vset.pattern.permute.xlu0 0
        %3924 = vperm.xlu0 %3923, %v3890
        %v3925 = vpop.permute.xlu0 %3924
        %3928 = vset.pattern.permute.xlu0 0
        %3929 = vperm.xlu0 %3928, %v3891
        %v3930 = vpop.permute.xlu0 %3929
        %v3932 = vadd.f32 %v3867, %v3895
        %v3933 = vadd.f32 %v3868, %v3895
        %v3934 = vadd.f32 %v3869, %v3900
        %v3935 = vadd.f32 %v3870, %v3900
        %v3936 = vadd.f32 %v3871, %v3905
        %v3937 = vadd.f32 %v3872, %v3905
        %v3938 = vadd.f32 %v3873, %v3910
        %v3939 = vadd.f32 %v3874, %v3910
        %v3940 = vadd.f32 %v3875, %v3915
        %v3941 = vadd.f32 %v3876, %v3915
        %v3942 = vadd.f32 %v3877, %v3920
        %v3943 = vadd.f32 %v3878, %v3920
        %v3944 = vadd.f32 %v3879, %v3925
        %v3945 = vadd.f32 %v3880, %v3925
        %v3946 = vadd.f32 %v3881, %v3930
        %v3947 = vadd.f32 %v3882, %v3930
        %v3948 = vtanh.pop %v3932
        %v3949 = vtanh.pop %v3933
        %v3950 = vtanh.pop %v3934
        %v3951 = vtanh.pop %v3935
        %v3952 = vtanh.pop %v3936
        %v3953 = vtanh.pop %v3937
        %v3954 = vtanh.pop %v3938
        %v3955 = vtanh.pop %v3939
        %v3956 = vxor.u32 %v3940, 2147483648
        %v3957 = vxor.u32 %v3941, 2147483648
        %v3958 = vxor.u32 %v3942, 2147483648
        %v3959 = vxor.u32 %v3943, 2147483648
        %v3960 = vxor.u32 %v3944, 2147483648
        %v3961 = vxor.u32 %v3945, 2147483648
        %v3962 = vxor.u32 %v3946, 2147483648
        %v3963 = vxor.u32 %v3947, 2147483648
        %v3964 = vmul.f32 %v3956, 1.442695
        %v3965 = vpow.pop %v3964
        %v3966 = vmul.f32 %v3957, 1.442695
        %v3967 = vpow.pop %v3966
        %v3968 = vmul.f32 %v3958, 1.442695
        %v3969 = vpow.pop %v3968
        %v3970 = vmul.f32 %v3959, 1.442695
        %v3971 = vpow.pop %v3970
        %v3972 = vmul.f32 %v3960, 1.442695
        %v3973 = vpow.pop %v3972
        %v3974 = vmul.f32 %v3961, 1.442695
        %v3975 = vpow.pop %v3974
        %v3976 = vmul.f32 %v3962, 1.442695
        %v3977 = vpow.pop %v3976
        %v3978 = vmul.f32 %v3963, 1.442695
        %v3979 = vpow.pop %v3978
        %v3980 = vadd.f32 %v3965, 1.0
        %v3981 = vadd.f32 %v3967, 1.0
        %v3982 = vadd.f32 %v3969, 1.0
        %v3983 = vadd.f32 %v3971, 1.0
        %v3984 = vadd.f32 %v3973, 1.0
        %v3985 = vadd.f32 %v3975, 1.0
        %v3986 = vadd.f32 %v3977, 1.0
        %v3987 = vadd.f32 %v3979, 1.0
        %v3988 = vrcp.pop %v3980
        %v3989 = vmul.f32 1.0, %v3988
        %v3990 = vrcp.pop %v3981
        %v3991 = vmul.f32 1.0, %v3990
        %v3992 = vrcp.pop %v3982
        %v3993 = vmul.f32 1.0, %v3992
        %v3994 = vrcp.pop %v3983
        %v3995 = vmul.f32 1.0, %v3994
        %v3996 = vrcp.pop %v3984
        %v3997 = vmul.f32 1.0, %v3996
        %v3998 = vrcp.pop %v3985
        %v3999 = vmul.f32 1.0, %v3998
        %v4000 = vrcp.pop %v3986
        %v4001 = vmul.f32 1.0, %v4000
        %v4002 = vrcp.pop %v3987
        %v4003 = vmul.f32 1.0, %v4002
        %v4004 = vmul.f32 %v3948, %v3989
        %v4005 = vmul.f32 %v3949, %v3991
        %v4006 = vmul.f32 %v3950, %v3993
        %v4007 = vmul.f32 %v3951, %v3995
        %v4008 = vmul.f32 %v3952, %v3997
        %v4009 = vmul.f32 %v3953, %v3999
        %v4010 = vmul.f32 %v3954, %v4001
        %v4011 = vmul.f32 %v3955, %v4003
        %s4012 = scalar_lea.vmem [#allocation20], 64
        %v4013 = vld [vmem:[%s4012] sm:$0xf]
        %v4014 = vld [vmem:[%s4012 + $0x4] sm:$0xf]
        %v4015 = vld [vmem:[%s4012 + $0x8] sm:$0xf]
        %v4016 = vld [vmem:[%s4012 + $0xc] sm:$0xf]
        %v4017 = vld [vmem:[%s4012 + $0x10] sm:$0xf]
        %v4018 = vld [vmem:[%s4012 + $0x14] sm:$0xf]
        %v4019 = vld [vmem:[%s4012 + $0x18] sm:$0xf]
        %v4020 = vld [vmem:[%s4012 + $0x1c] sm:$0xf]
        %v4021 = vpack.c.bf16 %v4006, %v4004
        %v4022 = vpack.c.bf16 %v4007, %v4005
        %v4023 = vpack.c.bf16 %v4010, %v4008
        %v4024 = vpack.c.bf16 %v4011, %v4009
        %s4025 = scalar_lea.vmem [#allocation22], 128
        %v4026 = vld [vmem:[%s4025] sm:$0xff]
        %v4027 = vld [vmem:[%s4025 + $0x8] sm:$0xff]
        %v4028 = vld [vmem:[%s4025 + $0x10] sm:$0xff]
        %v4029 = vld [vmem:[%s4025 + $0x18] sm:$0xff]
        %v4030 = vld [vmem:[%s4025 + $0x20] sm:$0xff]
        %v4031 = vld [vmem:[%s4025 + $0x28] sm:$0xff]
        %v4032 = vld [vmem:[%s4025 + $0x30] sm:$0xff]
        %v4033 = vld [vmem:[%s4025 + $0x38] sm:$0xff]
        %4035 = vset.pattern.permute.xlu0 0
        %4036 = vperm.xlu0 %4035, %v4026
        %v4037 = vpop.permute.xlu0 %4036
        %4040 = vset.pattern.permute.xlu0 0
        %4041 = vperm.xlu0 %4040, %v4027
        %v4042 = vpop.permute.xlu0 %4041
        %4045 = vset.pattern.permute.xlu0 0
        %4046 = vperm.xlu0 %4045, %v4028
        %v4047 = vpop.permute.xlu0 %4046
        %4050 = vset.pattern.permute.xlu0 0
        %4051 = vperm.xlu0 %4050, %v4029
        %v4052 = vpop.permute.xlu0 %4051
        %4055 = vset.pattern.permute.xlu0 0
        %4056 = vperm.xlu0 %4055, %v4030
        %v4057 = vpop.permute.xlu0 %4056
        %4060 = vset.pattern.permute.xlu0 0
        %4061 = vperm.xlu0 %4060, %v4031
        %v4062 = vpop.permute.xlu0 %4061
        %4065 = vset.pattern.permute.xlu0 0
        %4066 = vperm.xlu0 %4065, %v4032
        %v4067 = vpop.permute.xlu0 %4066
        %4070 = vset.pattern.permute.xlu0 0
        %4071 = vperm.xlu0 %4070, %v4033
        %v4072 = vpop.permute.xlu0 %4071
        %v4082 = vunpack.c.l.b16 %v4013
        %v4083 = vunpack.c.l.b16 %v4014
        %v4084 = vunpack.c.l.b16 %v4015
        %v4085 = vunpack.c.l.b16 %v4016
        %v4086 = vunpack.c.l.b16 %v4017
        %v4087 = vunpack.c.l.b16 %v4018
        %v4088 = vunpack.c.l.b16 %v4019
        %v4089 = vunpack.c.l.b16 %v4020
        %v4090 = vpack.c.b16 %v4083, %v4082
        %v4091 = vpack.c.b16 %v4085, %v4084
        %v4092 = vpack.c.b16 %v4087, %v4086
        %v4093 = vpack.c.b16 %v4089, %v4088
        %v4095 = vsel %vm1115, %v4090, 0
        %v4098 = vsel %vm1115, %v4091, 0
        %v4101 = vsel %vm1115, %v4092, 0
        %v4104 = vsel %vm1115, %v4093, 0
        %4106 = vmatprep.subr.bf16.mxu0 %v4022
        %4107 = vmatpush1.bf16.msra.mxu0 %v4021
        %4108 = vmatprep.subr.bf16.mxu0 %v4024
        %4109 = vmatpush1.bf16.msra.mxu0 %v4023
        %4110 = vmatprep.subr.bf16.mxu0 0
        %4111 = vmatpush1.bf16.msra.mxu0 0
        %4112 = vmatprep.subr.bf16.mxu0 0
        %4113 = vmatpush1.bf16.msra.mxu0 0
        %4114 = vmatprep.subr.bf16.mxu0 0
        %4115 = vmatpush1.bf16.msra.mxu0 0
        %4116 = vmatprep.subr.bf16.mxu0 0
        %4117 = vmatpush1.bf16.msra.mxu0 0
        %4118 = vmatprep.subr.bf16.mxu0 0
        %4119 = vmatpush1.bf16.msra.mxu0 0
        %4120 = vmatprep.subr.bf16.mxu0 0
        %4121 = vmatpush1.bf16.msra.mxu0 0
        %4122 = vmatprep.subr.bf16.mxu0 0
        %4123 = vmatpush1.bf16.msra.mxu0 0
        %4124 = vmatprep.subr.bf16.mxu0 0
        %4125 = vmatpush1.bf16.msra.mxu0 0
        %4126 = vmatprep.subr.bf16.mxu0 0
        %4127 = vmatpush1.bf16.msra.mxu0 0
        %4128 = vmatprep.subr.bf16.mxu0 0
        %4129 = vmatpush1.bf16.msra.mxu0 0
        %4130 = vmatprep.subr.bf16.mxu0 0
        %4131 = vmatpush1.bf16.msra.mxu0 0
        %4132 = vmatprep.subr.bf16.mxu0 0
        %4133 = vmatpush1.bf16.msra.mxu0 0
        %4134 = vmatprep.subr.bf16.mxu0 0
        %4135 = vmatpush1.bf16.msra.mxu0 0
        %4136 = vmatprep.subr.bf16.mxu0 0
        %4137 = vmatpush1.bf16.msra.mxu0 0
        %4138 = vmatprep.mubr.bf16.mxu0 0
        %4139 = vmatmul.mubr.bf16.gmra.mrb[0].mxu0 %v4095
        %v4140 = vpop.f32.mrb[0].mxu0
        %v4141 = vadd.f32 %v4037, %v4140
        %v4142 = vpop.f32.mrb[0].mxu0
        %v4143 = vadd.f32 %v4037, %v4142
        %v4144 = vpop.f32.mrb[0].mxu0
        %v4145 = vadd.f32 %v4042, %v4144
        %v4146 = vpop.f32.mrb[0].mxu0
        %v4147 = vadd.f32 %v4042, %v4146
        %4148 = vmatprep.mubr.bf16.mxu0 0
        %4149 = vmatmul.mubr.bf16.gmra.mrb[0].mxu0 %v4098
        %v4150 = vpop.f32.mrb[0].mxu0
        %v4151 = vadd.f32 %v4047, %v4150
        %v4152 = vpop.f32.mrb[0].mxu0
        %v4153 = vadd.f32 %v4047, %v4152
        %v4154 = vpop.f32.mrb[0].mxu0
        %v4155 = vadd.f32 %v4052, %v4154
        %v4156 = vpop.f32.mrb[0].mxu0
        %v4157 = vadd.f32 %v4052, %v4156
        %4158 = vmatprep.mubr.bf16.mxu0 0
        %4159 = vmatmul.mubr.bf16.gmra.mrb[0].mxu0 %v4101
        %v4160 = vpop.f32.mrb[0].mxu0
        %v4161 = vadd.f32 %v4057, %v4160
        %v4162 = vpop.f32.mrb[0].mxu0
        %v4163 = vadd.f32 %v4057, %v4162
        %v4164 = vpop.f32.mrb[0].mxu0
        %v4165 = vadd.f32 %v4062, %v4164
        %v4166 = vpop.f32.mrb[0].mxu0
        %v4167 = vadd.f32 %v4062, %v4166
        %4168 = vmatprep.mubr.bf16.mxu0 0
        %4169 = vmatmul.mubr.bf16.gmra.mrb[0].mxu0 %v4104
        %v4170 = vpop.f32.mrb[0].mxu0
        %v4171 = vadd.f32 %v4067, %v4170
        %v4172 = vpop.f32.mrb[0].mxu0
        %v4173 = vadd.f32 %v4067, %v4172
        %v4174 = vpop.f32.mrb[0].mxu0
        %v4175 = vadd.f32 %v4072, %v4174
        %v4176 = vpop.f32.mrb[0].mxu0
        %v4177 = vadd.f32 %v4072, %v4176
        %4178 = vdwg.mxu0
        %4187 = vrot.lane.b32.xlu0 %v4141, 6
        %v4188 = vpop.permute.xlu0 %4187
        %4189 = vrot.lane.b32.xlu0 %v4143, 6
        %v4190 = vpop.permute.xlu0 %4189
        %4191 = vrot.lane.b32.xlu0 %v4145, 6
        %v4192 = vpop.permute.xlu0 %4191
        %4193 = vrot.lane.b32.xlu0 %v4147, 6
        %v4194 = vpop.permute.xlu0 %4193
        %4195 = vrot.lane.b32.xlu0 %v4151, 6
        %v4196 = vpop.permute.xlu0 %4195
        %4197 = vrot.lane.b32.xlu0 %v4153, 6
        %v4198 = vpop.permute.xlu0 %4197
        %4199 = vrot.lane.b32.xlu0 %v4155, 6
        %v4200 = vpop.permute.xlu0 %4199
        %4201 = vrot.lane.b32.xlu0 %v4157, 6
        %v4202 = vpop.permute.xlu0 %4201
        %vm4203 = vcmask 48128
        %v4204 = vsel %vm4203, %v4188, %v4190
        %v4205 = vsel %vm4203, %v4192, %v4194
        %v4206 = vsel %vm4203, %v4196, %v4198
        %v4207 = vsel %vm4203, %v4200, %v4202
        %v4216 = vadd.f32 %v3133, %v4188
        %v4217 = vadd.f32 %v3134, %v4204
        %v4218 = vadd.f32 %v3135, %v4192
        %v4219 = vadd.f32 %v3136, %v4205
        %v4220 = vadd.f32 %v3137, %v4196
        %v4221 = vadd.f32 %v3138, %v4206
        %v4222 = vadd.f32 %v3139, %v4200
        %v4223 = vadd.f32 %v3140, %v4207
        %v4224 = vmul.f32 %v4216, %v1042
        %v4225 = vmul.f32 %v4217, %v1046
        %v4226 = vmul.f32 %v4218, %v1042
        %v4227 = vmul.f32 %v4219, %v1046
        %v4228 = vmul.f32 %v4220, %v1042
        %v4229 = vmul.f32 %v4221, %v1046
        %v4230 = vmul.f32 %v4222, %v1042
        %v4231 = vmul.f32 %v4223, %v1046
        %4240 = vrot.lane.b32.xlu0 %v4161, 4
        %v4241 = vpop.permute.xlu0 %4240
        %4242 = vrot.lane.b32.xlu0 %v4163, 4
        %v4243 = vpop.permute.xlu0 %4242
        %4244 = vrot.lane.b32.xlu0 %v4165, 4
        %v4245 = vpop.permute.xlu0 %4244
        %4246 = vrot.lane.b32.xlu0 %v4167, 4
        %v4247 = vpop.permute.xlu0 %4246
        %4248 = vrot.lane.b32.xlu0 %v4171, 4
        %v4249 = vpop.permute.xlu0 %4248
        %4250 = vrot.lane.b32.xlu0 %v4173, 4
        %v4251 = vpop.permute.xlu0 %4250
        %4252 = vrot.lane.b32.xlu0 %v4175, 4
        %v4253 = vpop.permute.xlu0 %4252
        %4254 = vrot.lane.b32.xlu0 %v4177, 4
        %v4255 = vpop.permute.xlu0 %4254
        %v4256 = vsel %vm972, %v4241, %v4243
        %v4257 = vsel %vm972, %v4245, %v4247
        %v4258 = vsel %vm972, %v4249, %v4251
        %v4259 = vsel %vm972, %v4253, %v4255
        %v4268 = vadd.f32 %v3177, %v4241
        %v4269 = vadd.f32 %v3178, %v4256
        %v4270 = vadd.f32 %v3179, %v4245
        %v4271 = vadd.f32 %v3180, %v4257
        %v4272 = vadd.f32 %v3181, %v4249
        %v4273 = vadd.f32 %v3182, %v4258
        %v4274 = vadd.f32 %v3183, %v4253
        %v4275 = vadd.f32 %v3184, %v4259
        %v4276 = vpack.c.bf16 %v4226, %v4224
        %v4277 = vpack.c.bf16 %v4227, %v4225
        %v4278 = vpack.c.bf16 %v4230, %v4228
        %v4279 = vpack.c.bf16 %v4231, %v4229
        %s4280 = scalar_lea.vmem [#allocation17], 480
        %v4281 = vld [vmem:[%s4280] sm:$0xf]
        %v4282 = vld [vmem:[%s4280 + $0x4] sm:$0xf]
        %v4283 = vld [vmem:[%s4280 + $0x8] sm:$0xf]
        %v4284 = vld [vmem:[%s4280 + $0xc] sm:$0xf]
        %v4285 = vld [vmem:[%s4280 + $0x10] sm:$0xf]
        %v4286 = vld [vmem:[%s4280 + $0x14] sm:$0xf]
        %v4287 = vld [vmem:[%s4280 + $0x18] sm:$0xf]
        %v4288 = vld [vmem:[%s4280 + $0x1c] sm:$0xf]
        %s4289 = scalar_lea.vmem [#allocation17], 512
        %v4290 = vld [vmem:[%s4289] sm:$0xf]
        %v4291 = vld [vmem:[%s4289 + $0x4] sm:$0xf]
        %v4292 = vld [vmem:[%s4289 + $0x8] sm:$0xf]
        %v4293 = vld [vmem:[%s4289 + $0xc] sm:$0xf]
        %v4294 = vld [vmem:[%s4289 + $0x10] sm:$0xf]
        %v4295 = vld [vmem:[%s4289 + $0x14] sm:$0xf]
        %v4296 = vld [vmem:[%s4289 + $0x18] sm:$0xf]
        %v4297 = vld [vmem:[%s4289 + $0x1c] sm:$0xf]
        %v4306 = vunpack.c.l.b16 %v4290
        %v4307 = vunpack.c.l.b16 %v4291
        %v4308 = vunpack.c.l.b16 %v4292
        %v4309 = vunpack.c.l.b16 %v4293
        %v4310 = vunpack.c.l.b16 %v4294
        %v4311 = vunpack.c.l.b16 %v4295
        %v4312 = vunpack.c.l.b16 %v4296
        %v4313 = vunpack.c.l.b16 %v4297
        %v4314 = vpack.c.b16 %v4307, %v4306
        %v4315 = vpack.c.b16 %v4309, %v4308
        %v4316 = vpack.c.b16 %v4311, %v4310
        %v4317 = vpack.c.b16 %v4313, %v4312
        %4322 = vrot.lane.b32.xlu0 %v4276, 121
        %v4323 = vpop.permute.xlu0 %4322
        %4324 = vrot.lane.b32.xlu0 %v4277, 121
        %v4325 = vpop.permute.xlu0 %4324
        %4326 = vrot.lane.b32.xlu0 %v4278, 121
        %v4327 = vpop.permute.xlu0 %4326
        %4328 = vrot.lane.b32.xlu0 %v4279, 121
        %v4329 = vpop.permute.xlu0 %4328
        %v4330 = vsel %vm3630, %v4323, %v4325
        %v4331 = vsel %vm3630, %v4327, %v4329
        %v4335 = vsel %vm1115, %v4314, 0
        %v4338 = vsel %vm1115, %v4315, 0
        %v4341 = vsel %vm1115, %v4316, 0
        %v4344 = vsel %vm1115, %v4317, 0
        %4346 = vmatprep.subr.bf16.mxu0 0
        %4347 = vmatpush1.bf16.msra.mxu0 %v4330
        %4348 = vmatprep.subr.bf16.mxu0 0
        %4349 = vmatpush1.bf16.msra.mxu0 %v4331
        %4350 = vmatprep.subr.bf16.mxu0 0
        %4351 = vmatpush1.bf16.msra.mxu0 0
        %4352 = vmatprep.subr.bf16.mxu0 0
        %4353 = vmatpush1.bf16.msra.mxu0 0
        %4354 = vmatprep.subr.bf16.mxu0 0
        %4355 = vmatpush1.bf16.msra.mxu0 0
        %4356 = vmatprep.subr.bf16.mxu0 0
        %4357 = vmatpush1.bf16.msra.mxu0 0
        %4358 = vmatprep.subr.bf16.mxu0 0
        %4359 = vmatpush1.bf16.msra.mxu0 0
        %4360 = vmatprep.subr.bf16.mxu0 0
        %4361 = vmatpush1.bf16.msra.mxu0 0
        %4362 = vmatprep.subr.bf16.mxu0 0
        %4363 = vmatpush1.bf16.msra.mxu0 0
        %4364 = vmatprep.subr.bf16.mxu0 0
        %4365 = vmatpush1.bf16.msra.mxu0 0
        %4366 = vmatprep.subr.bf16.mxu0 0
        %4367 = vmatpush1.bf16.msra.mxu0 0
        %4368 = vmatprep.subr.bf16.mxu0 0
        %4369 = vmatpush1.bf16.msra.mxu0 0
        %4370 = vmatprep.subr.bf16.mxu0 0
        %4371 = vmatpush1.bf16.msra.mxu0 0
        %4372 = vmatprep.subr.bf16.mxu0 0
        %4373 = vmatpush1.bf16.msra.mxu0 0
        %4374 = vmatprep.subr.bf16.mxu0 0
        %4375 = vmatpush1.bf16.msra.mxu0 0
        %4376 = vmatprep.subr.bf16.mxu0 0
        %4377 = vmatpush1.bf16.msra.mxu0 0
        %4378 = vmatprep.mubr.bf16.mxu0 0
        %4379 = vmatmul.mubr.bf16.gmra.mrb[0].mxu0 %v4335
        %v4380 = vpop.f32.mrb[0].mxu0
        %v4381 = vadd.f32 0.0, %v4380
        %v4382 = vpop.f32.mrb[0].mxu0
        %v4383 = vpop.f32.mrb[0].mxu0
        %v4384 = vadd.f32 0.0, %v4383
        %v4385 = vpop.f32.mrb[0].mxu0
        %4386 = vmatprep.mubr.bf16.mxu0 0
        %4387 = vmatmul.mubr.bf16.gmra.mrb[0].mxu0 %v4338
        %v4388 = vpop.f32.mrb[0].mxu0
        %v4389 = vadd.f32 0.0, %v4388
        %v4390 = vpop.f32.mrb[0].mxu0
        %v4391 = vpop.f32.mrb[0].mxu0
        %v4392 = vadd.f32 0.0, %v4391
        %v4393 = vpop.f32.mrb[0].mxu0
        %4394 = vmatprep.mubr.bf16.mxu0 0
        %4395 = vmatmul.mubr.bf16.gmra.mrb[0].mxu0 %v4341
        %v4396 = vpop.f32.mrb[0].mxu0
        %v4397 = vadd.f32 0.0, %v4396
        %v4398 = vpop.f32.mrb[0].mxu0
        %v4399 = vpop.f32.mrb[0].mxu0
        %v4400 = vadd.f32 0.0, %v4399
        %v4401 = vpop.f32.mrb[0].mxu0
        %4402 = vmatprep.mubr.bf16.mxu0 0
        %4403 = vmatmul.mubr.bf16.gmra.mrb[0].mxu0 %v4344
        %v4404 = vpop.f32.mrb[0].mxu0
        %v4405 = vadd.f32 0.0, %v4404
        %v4406 = vpop.f32.mrb[0].mxu0
        %v4407 = vpop.f32.mrb[0].mxu0
        %v4408 = vadd.f32 0.0, %v4407
        %v4409 = vpop.f32.mrb[0].mxu0
        %4410 = vdwg.mxu0
        %v4419 = vunpack.c.l.b16 %v4281
        %v4420 = vunpack.c.l.b16 %v4282
        %v4421 = vunpack.c.l.b16 %v4283
        %v4422 = vunpack.c.l.b16 %v4284
        %v4423 = vunpack.c.l.b16 %v4285
        %v4424 = vunpack.c.l.b16 %v4286
        %v4425 = vunpack.c.l.b16 %v4287
        %v4426 = vunpack.c.l.b16 %v4288
        %v4427 = vpack.c.b16 %v4420, %v4419
        %v4428 = vpack.c.b16 %v4422, %v4421
        %v4429 = vpack.c.b16 %v4424, %v4423
        %v4430 = vpack.c.b16 %v4426, %v4425
        %4431 = vrot.lane.b32.xlu0 %v4276, 122
        %v4432 = vpop.permute.xlu0 %4431
        %4433 = vrot.lane.b32.xlu0 %v4277, 122
        %v4434 = vpop.permute.xlu0 %4433
        %4435 = vrot.lane.b32.xlu0 %v4278, 122
        %v4436 = vpop.permute.xlu0 %4435
        %4437 = vrot.lane.b32.xlu0 %v4279, 122
        %v4438 = vpop.permute.xlu0 %4437
        %v4439 = vsel %vm2685, %v4432, %v4434
        %v4440 = vsel %vm2685, %v4436, %v4438
        %v4444 = vsel %vm1115, %v4427, 0
        %v4447 = vsel %vm1115, %v4428, 0
        %v4450 = vsel %vm1115, %v4429, 0
        %v4453 = vsel %vm1115, %v4430, 0
        %4455 = vmatprep.subr.bf16.mxu0 0
        %4456 = vmatpush1.bf16.msra.mxu0 %v4439
        %4457 = vmatprep.subr.bf16.mxu0 0
        %4458 = vmatpush1.bf16.msra.mxu0 %v4440
        %4459 = vmatprep.subr.bf16.mxu0 0
        %4460 = vmatpush1.bf16.msra.mxu0 0
        %4461 = vmatprep.subr.bf16.mxu0 0
        %4462 = vmatpush1.bf16.msra.mxu0 0
        %4463 = vmatprep.subr.bf16.mxu0 0
        %4464 = vmatpush1.bf16.msra.mxu0 0
        %4465 = vmatprep.subr.bf16.mxu0 0
        %4466 = vmatpush1.bf16.msra.mxu0 0
        %4467 = vmatprep.subr.bf16.mxu0 0
        %4468 = vmatpush1.bf16.msra.mxu0 0
        %4469 = vmatprep.subr.bf16.mxu0 0
        %4470 = vmatpush1.bf16.msra.mxu0 0
        %4471 = vmatprep.subr.bf16.mxu0 0
        %4472 = vmatpush1.bf16.msra.mxu0 0
        %4473 = vmatprep.subr.bf16.mxu0 0
        %4474 = vmatpush1.bf16.msra.mxu0 0
        %4475 = vmatprep.subr.bf16.mxu0 0
        %4476 = vmatpush1.bf16.msra.mxu0 0
        %4477 = vmatprep.subr.bf16.mxu0 0
        %4478 = vmatpush1.bf16.msra.mxu0 0
        %4479 = vmatprep.subr.bf16.mxu0 0
        %4480 = vmatpush1.bf16.msra.mxu0 0
        %4481 = vmatprep.subr.bf16.mxu0 0
        %4482 = vmatpush1.bf16.msra.mxu0 0
        %4483 = vmatprep.subr.bf16.mxu0 0
        %4484 = vmatpush1.bf16.msra.mxu0 0
        %4485 = vmatprep.subr.bf16.mxu0 0
        %4486 = vmatpush1.bf16.msra.mxu0 0
        %4487 = vmatprep.mubr.bf16.mxu0 0
        %4488 = vmatmul.mubr.bf16.gmra.mrb[0].mxu0 %v4444
        %v4489 = vpop.f32.mrb[0].mxu0
        %v4490 = vadd.f32 %v4381, %v4489
        %v4491 = vpop.f32.mrb[0].mxu0
        %v4492 = vpop.f32.mrb[0].mxu0
        %v4493 = vadd.f32 %v4384, %v4492
        %v4494 = vpop.f32.mrb[0].mxu0
        %4495 = vmatprep.mubr.bf16.mxu0 0
        %4496 = vmatmul.mubr.bf16.gmra.mrb[0].mxu0 %v4447
        %v4497 = vpop.f32.mrb[0].mxu0
        %v4498 = vadd.f32 %v4389, %v4497
        %v4499 = vpop.f32.mrb[0].mxu0
        %v4500 = vpop.f32.mrb[0].mxu0
        %v4501 = vadd.f32 %v4392, %v4500
        %v4502 = vpop.f32.mrb[0].mxu0
        %4503 = vmatprep.mubr.bf16.mxu0 0
        %4504 = vmatmul.mubr.bf16.gmra.mrb[0].mxu0 %v4450
        %v4505 = vpop.f32.mrb[0].mxu0
        %v4506 = vadd.f32 %v4397, %v4505
        %v4507 = vpop.f32.mrb[0].mxu0
        %v4508 = vpop.f32.mrb[0].mxu0
        %v4509 = vadd.f32 %v4400, %v4508
        %v4510 = vpop.f32.mrb[0].mxu0
        %4511 = vmatprep.mubr.bf16.mxu0 0
        %4512 = vmatmul.mubr.bf16.gmra.mrb[0].mxu0 %v4453
        %v4513 = vpop.f32.mrb[0].mxu0
        %v4514 = vadd.f32 %v4405, %v4513
        %v4515 = vpop.f32.mrb[0].mxu0
        %v4516 = vpop.f32.mrb[0].mxu0
        %v4517 = vadd.f32 %v4408, %v4516
        %v4518 = vpop.f32.mrb[0].mxu0
        %4519 = vdwg.mxu0
        %s4520 = scalar_lea.vmem [#allocation17], 544
        %v4521 = vld [vmem:[%s4520] sm:$0xf]
        %v4522 = vld [vmem:[%s4520 + $0x4] sm:$0xf]
        %v4523 = vld [vmem:[%s4520 + $0x8] sm:$0xf]
        %v4524 = vld [vmem:[%s4520 + $0xc] sm:$0xf]
        %v4525 = vld [vmem:[%s4520 + $0x10] sm:$0xf]
        %v4526 = vld [vmem:[%s4520 + $0x14] sm:$0xf]
        %v4527 = vld [vmem:[%s4520 + $0x18] sm:$0xf]
        %v4528 = vld [vmem:[%s4520 + $0x1c] sm:$0xf]
        %v4537 = vunpack.c.l.b16 %v4521
        %v4538 = vunpack.c.l.b16 %v4522
        %v4539 = vunpack.c.l.b16 %v4523
        %v4540 = vunpack.c.l.b16 %v4524
        %v4541 = vunpack.c.l.b16 %v4525
        %v4542 = vunpack.c.l.b16 %v4526
        %v4543 = vunpack.c.l.b16 %v4527
        %v4544 = vunpack.c.l.b16 %v4528
        %v4545 = vpack.c.b16 %v4538, %v4537
        %v4546 = vpack.c.b16 %v4540, %v4539
        %v4547 = vpack.c.b16 %v4542, %v4541
        %v4548 = vpack.c.b16 %v4544, %v4543
        %4549 = vrot.lane.b32.xlu0 %v4276, 120
        %v4550 = vpop.permute.xlu0 %4549
        %4551 = vrot.lane.b32.xlu0 %v4277, 120
        %v4552 = vpop.permute.xlu0 %4551
        %4553 = vrot.lane.b32.xlu0 %v4278, 120
        %v4554 = vpop.permute.xlu0 %4553
        %4555 = vrot.lane.b32.xlu0 %v4279, 120
        %v4556 = vpop.permute.xlu0 %4555
        %v4557 = vsel %vm3775, %v4550, %v4552
        %v4558 = vsel %vm3775, %v4554, %v4556
        %v4562 = vsel %vm1115, %v4545, 0
        %v4565 = vsel %vm1115, %v4546, 0
        %v4568 = vsel %vm1115, %v4547, 0
        %v4571 = vsel %vm1115, %v4548, 0
        %4573 = vmatprep.subr.bf16.mxu0 0
        %4574 = vmatpush1.bf16.msra.mxu0 %v4557
        %4575 = vmatprep.subr.bf16.mxu0 0
        %4576 = vmatpush1.bf16.msra.mxu0 %v4558
        %4577 = vmatprep.subr.bf16.mxu0 0
        %4578 = vmatpush1.bf16.msra.mxu0 0
        %4579 = vmatprep.subr.bf16.mxu0 0
        %4580 = vmatpush1.bf16.msra.mxu0 0
        %4581 = vmatprep.subr.bf16.mxu0 0
        %4582 = vmatpush1.bf16.msra.mxu0 0
        %4583 = vmatprep.subr.bf16.mxu0 0
        %4584 = vmatpush1.bf16.msra.mxu0 0
        %4585 = vmatprep.subr.bf16.mxu0 0
        %4586 = vmatpush1.bf16.msra.mxu0 0
        %4587 = vmatprep.subr.bf16.mxu0 0
        %4588 = vmatpush1.bf16.msra.mxu0 0
        %4589 = vmatprep.subr.bf16.mxu0 0
        %4590 = vmatpush1.bf16.msra.mxu0 0
        %4591 = vmatprep.subr.bf16.mxu0 0
        %4592 = vmatpush1.bf16.msra.mxu0 0
        %4593 = vmatprep.subr.bf16.mxu0 0
        %4594 = vmatpush1.bf16.msra.mxu0 0
        %4595 = vmatprep.subr.bf16.mxu0 0
        %4596 = vmatpush1.bf16.msra.mxu0 0
        %4597 = vmatprep.subr.bf16.mxu0 0
        %4598 = vmatpush1.bf16.msra.mxu0 0
        %4599 = vmatprep.subr.bf16.mxu0 0
        %4600 = vmatpush1.bf16.msra.mxu0 0
        %4601 = vmatprep.subr.bf16.mxu0 0
        %4602 = vmatpush1.bf16.msra.mxu0 0
        %4603 = vmatprep.subr.bf16.mxu0 0
        %4604 = vmatpush1.bf16.msra.mxu0 0
        %4605 = vmatprep.mubr.bf16.mxu0 0
        %4606 = vmatmul.mubr.bf16.gmra.mrb[0].mxu0 %v4562
        %v4607 = vpop.f32.mrb[0].mxu0
        %v4608 = vadd.f32 0.0, %v4607
        %v4609 = vpop.f32.mrb[0].mxu0
        %v4610 = vpop.f32.mrb[0].mxu0
        %v4611 = vadd.f32 0.0, %v4610
        %v4612 = vpop.f32.mrb[0].mxu0
        %4613 = vmatprep.mubr.bf16.mxu0 0
        %4614 = vmatmul.mubr.bf16.gmra.mrb[0].mxu0 %v4565
        %v4615 = vpop.f32.mrb[0].mxu0
        %v4616 = vadd.f32 0.0, %v4615
        %v4617 = vpop.f32.mrb[0].mxu0
        %v4618 = vpop.f32.mrb[0].mxu0
        %v4619 = vadd.f32 0.0, %v4618
        %v4620 = vpop.f32.mrb[0].mxu0
        %4621 = vmatprep.mubr.bf16.mxu0 0
        %4622 = vmatmul.mubr.bf16.gmra.mrb[0].mxu0 %v4568
        %v4623 = vpop.f32.mrb[0].mxu0
        %v4624 = vadd.f32 0.0, %v4623
        %v4625 = vpop.f32.mrb[0].mxu0
        %v4626 = vpop.f32.mrb[0].mxu0
        %v4627 = vadd.f32 0.0, %v4626
        %v4628 = vpop.f32.mrb[0].mxu0
        %4629 = vmatprep.mubr.bf16.mxu0 0
        %4630 = vmatmul.mubr.bf16.gmra.mrb[0].mxu0 %v4571
        %v4631 = vpop.f32.mrb[0].mxu0
        %v4632 = vadd.f32 0.0, %v4631
        %v4633 = vpop.f32.mrb[0].mxu0
        %v4634 = vpop.f32.mrb[0].mxu0
        %v4635 = vadd.f32 0.0, %v4634
        %v4636 = vpop.f32.mrb[0].mxu0
        %4637 = vdwg.mxu0
        %v4638 = vadd.f32 %v4490, %v4608
        %v4639 = vadd.f32 %v4493, %v4611
        %v4640 = vadd.f32 %v4498, %v4616
        %v4641 = vadd.f32 %v4501, %v4619
        %v4642 = vadd.f32 %v4506, %v4624
        %v4643 = vadd.f32 %v4509, %v4627
        %v4644 = vadd.f32 %v4514, %v4632
        %v4645 = vadd.f32 %v4517, %v4635
        %s4646 = scalar_lea.vmem [#allocation17], 576
        %v4647 = vld [vmem:[%s4646] sm:$0xf]
        %v4648 = vld [vmem:[%s4646 + $0x4] sm:$0xf]
        %v4649 = vld [vmem:[%s4646 + $0x8] sm:$0xf]
        %v4650 = vld [vmem:[%s4646 + $0xc] sm:$0xf]
        %v4651 = vld [vmem:[%s4646 + $0x10] sm:$0xf]
        %v4652 = vld [vmem:[%s4646 + $0x14] sm:$0xf]
        %v4653 = vld [vmem:[%s4646 + $0x18] sm:$0xf]
        %v4654 = vld [vmem:[%s4646 + $0x1c] sm:$0xf]
        %v4663 = vunpack.c.l.b16 %v4647
        %v4664 = vunpack.c.l.b16 %v4648
        %v4665 = vunpack.c.l.b16 %v4649
        %v4666 = vunpack.c.l.b16 %v4650
        %v4667 = vunpack.c.l.b16 %v4651
        %v4668 = vunpack.c.l.b16 %v4652
        %v4669 = vunpack.c.l.b16 %v4653
        %v4670 = vunpack.c.l.b16 %v4654
        %v4671 = vpack.c.b16 %v4664, %v4663
        %v4672 = vpack.c.b16 %v4666, %v4665
        %v4673 = vpack.c.b16 %v4668, %v4667
        %v4674 = vpack.c.b16 %v4670, %v4669
        %4675 = vrot.lane.b32.xlu0 %v4276, 119
        %v4676 = vpop.permute.xlu0 %4675
        %4677 = vrot.lane.b32.xlu0 %v4277, 119
        %v4678 = vpop.permute.xlu0 %4677
        %4679 = vrot.lane.b32.xlu0 %v4278, 119
        %v4680 = vpop.permute.xlu0 %4679
        %4681 = vrot.lane.b32.xlu0 %v4279, 119
        %v4682 = vpop.permute.xlu0 %4681
        %vm4683 = vcmask 973824
        %v4684 = vsel %vm4683, %v4676, %v4678
        %v4685 = vsel %vm4683, %v4680, %v4682
        %v4689 = vsel %vm1115, %v4671, 0
        %v4692 = vsel %vm1115, %v4672, 0
        %v4695 = vsel %vm1115, %v4673, 0
        %v4698 = vsel %vm1115, %v4674, 0
        %4700 = vmatprep.subr.bf16.mxu0 0
        %4701 = vmatpush1.bf16.msra.mxu0 %v4684
        %4702 = vmatprep.subr.bf16.mxu0 0
        %4703 = vmatpush1.bf16.msra.mxu0 %v4685
        %4704 = vmatprep.subr.bf16.mxu0 0
        %4705 = vmatpush1.bf16.msra.mxu0 0
        %4706 = vmatprep.subr.bf16.mxu0 0
        %4707 = vmatpush1.bf16.msra.mxu0 0
        %4708 = vmatprep.subr.bf16.mxu0 0
        %4709 = vmatpush1.bf16.msra.mxu0 0
        %4710 = vmatprep.subr.bf16.mxu0 0
        %4711 = vmatpush1.bf16.msra.mxu0 0
        %4712 = vmatprep.subr.bf16.mxu0 0
        %4713 = vmatpush1.bf16.msra.mxu0 0
        %4714 = vmatprep.subr.bf16.mxu0 0
        %4715 = vmatpush1.bf16.msra.mxu0 0
        %4716 = vmatprep.subr.bf16.mxu0 0
        %4717 = vmatpush1.bf16.msra.mxu0 0
        %4718 = vmatprep.subr.bf16.mxu0 0
        %4719 = vmatpush1.bf16.msra.mxu0 0
        %4720 = vmatprep.subr.bf16.mxu0 0
        %4721 = vmatpush1.bf16.msra.mxu0 0
        %4722 = vmatprep.subr.bf16.mxu0 0
        %4723 = vmatpush1.bf16.msra.mxu0 0
        %4724 = vmatprep.subr.bf16.mxu0 0
        %4725 = vmatpush1.bf16.msra.mxu0 0
        %4726 = vmatprep.subr.bf16.mxu0 0
        %4727 = vmatpush1.bf16.msra.mxu0 0
        %4728 = vmatprep.subr.bf16.mxu0 0
        %4729 = vmatpush1.bf16.msra.mxu0 0
        %4730 = vmatprep.subr.bf16.mxu0 0
        %4731 = vmatpush1.bf16.msra.mxu0 0
        %4732 = vmatprep.mubr.bf16.mxu0 0
        %4733 = vmatmul.mubr.bf16.gmra.mrb[0].mxu0 %v4689
        %v4734 = vpop.f32.mrb[0].mxu0
        %v4735 = vadd.f32 0.0, %v4734
        %v4736 = vpop.f32.mrb[0].mxu0
        %v4737 = vpop.f32.mrb[0].mxu0
        %v4738 = vadd.f32 0.0, %v4737
        %v4739 = vpop.f32.mrb[0].mxu0
        %4740 = vmatprep.mubr.bf16.mxu0 0
        %4741 = vmatmul.mubr.bf16.gmra.mrb[0].mxu0 %v4692
        %v4742 = vpop.f32.mrb[0].mxu0
        %v4743 = vadd.f32 0.0, %v4742
        %v4744 = vpop.f32.mrb[0].mxu0
        %v4745 = vpop.f32.mrb[0].mxu0
        %v4746 = vadd.f32 0.0, %v4745
        %v4747 = vpop.f32.mrb[0].mxu0
        %4748 = vmatprep.mubr.bf16.mxu0 0
        %4749 = vmatmul.mubr.bf16.gmra.mrb[0].mxu0 %v4695
        %v4750 = vpop.f32.mrb[0].mxu0
        %v4751 = vadd.f32 0.0, %v4750
        %v4752 = vpop.f32.mrb[0].mxu0
        %v4753 = vpop.f32.mrb[0].mxu0
        %v4754 = vadd.f32 0.0, %v4753
        %v4755 = vpop.f32.mrb[0].mxu0
        %4756 = vmatprep.mubr.bf16.mxu0 0
        %4757 = vmatmul.mubr.bf16.gmra.mrb[0].mxu0 %v4698
        %v4758 = vpop.f32.mrb[0].mxu0
        %v4759 = vadd.f32 0.0, %v4758
        %v4760 = vpop.f32.mrb[0].mxu0
        %v4761 = vpop.f32.mrb[0].mxu0
        %v4762 = vadd.f32 0.0, %v4761
        %v4763 = vpop.f32.mrb[0].mxu0
        %4764 = vdwg.mxu0
        %v4765 = vadd.f32 %v4638, %v4735
        %v4766 = vadd.f32 %v4639, %v4738
        %v4767 = vadd.f32 %v4640, %v4743
        %v4768 = vadd.f32 %v4641, %v4746
        %v4769 = vadd.f32 %v4642, %v4751
        %v4770 = vadd.f32 %v4643, %v4754
        %v4771 = vadd.f32 %v4644, %v4759
        %v4772 = vadd.f32 %v4645, %v4762
        %s4773 = scalar_lea.vmem [#allocation17], 608
        %v4774 = vld [vmem:[%s4773] sm:$0xf]
        %v4775 = vld [vmem:[%s4773 + $0x4] sm:$0xf]
        %v4776 = vld [vmem:[%s4773 + $0x8] sm:$0xf]
        %v4777 = vld [vmem:[%s4773 + $0xc] sm:$0xf]
        %v4778 = vld [vmem:[%s4773 + $0x10] sm:$0xf]
        %v4779 = vld [vmem:[%s4773 + $0x14] sm:$0xf]
        %v4780 = vld [vmem:[%s4773 + $0x18] sm:$0xf]
        %v4781 = vld [vmem:[%s4773 + $0x1c] sm:$0xf]
        %v4790 = vunpack.c.l.b16 %v4774
        %v4791 = vunpack.c.l.b16 %v4775
        %v4792 = vunpack.c.l.b16 %v4776
        %v4793 = vunpack.c.l.b16 %v4777
        %v4794 = vunpack.c.l.b16 %v4778
        %v4795 = vunpack.c.l.b16 %v4779
        %v4796 = vunpack.c.l.b16 %v4780
        %v4797 = vunpack.c.l.b16 %v4781
        %v4798 = vpack.c.b16 %v4791, %v4790
        %v4799 = vpack.c.b16 %v4793, %v4792
        %v4800 = vpack.c.b16 %v4795, %v4794
        %v4801 = vpack.c.b16 %v4797, %v4796
        %4802 = vrot.lane.b32.xlu0 %v4276, 118
        %v4803 = vpop.permute.xlu0 %4802
        %4804 = vrot.lane.b32.xlu0 %v4277, 118
        %v4805 = vpop.permute.xlu0 %4804
        %4806 = vrot.lane.b32.xlu0 %v4278, 118
        %v4807 = vpop.permute.xlu0 %4806
        %4808 = vrot.lane.b32.xlu0 %v4279, 118
        %v4809 = vpop.permute.xlu0 %4808
        %vm4810 = vcmask 965632
        %v4811 = vsel %vm4810, %v4803, %v4805
        %v4812 = vsel %vm4810, %v4807, %v4809
        %v4816 = vsel %vm1115, %v4798, 0
        %v4819 = vsel %vm1115, %v4799, 0
        %v4822 = vsel %vm1115, %v4800, 0
        %v4825 = vsel %vm1115, %v4801, 0
        %4827 = vmatprep.subr.bf16.mxu0 0
        %4828 = vmatpush1.bf16.msra.mxu0 %v4811
        %4829 = vmatprep.subr.bf16.mxu0 0
        %4830 = vmatpush1.bf16.msra.mxu0 %v4812
        %4831 = vmatprep.subr.bf16.mxu0 0
        %4832 = vmatpush1.bf16.msra.mxu0 0
        %4833 = vmatprep.subr.bf16.mxu0 0
        %4834 = vmatpush1.bf16.msra.mxu0 0
        %4835 = vmatprep.subr.bf16.mxu0 0
        %4836 = vmatpush1.bf16.msra.mxu0 0
        %4837 = vmatprep.subr.bf16.mxu0 0
        %4838 = vmatpush1.bf16.msra.mxu0 0
        %4839 = vmatprep.subr.bf16.mxu0 0
        %4840 = vmatpush1.bf16.msra.mxu0 0
        %4841 = vmatprep.subr.bf16.mxu0 0
        %4842 = vmatpush1.bf16.msra.mxu0 0
        %4843 = vmatprep.subr.bf16.mxu0 0
        %4844 = vmatpush1.bf16.msra.mxu0 0
        %4845 = vmatprep.subr.bf16.mxu0 0
        %4846 = vmatpush1.bf16.msra.mxu0 0
        %4847 = vmatprep.subr.bf16.mxu0 0
        %4848 = vmatpush1.bf16.msra.mxu0 0
        %4849 = vmatprep.subr.bf16.mxu0 0
        %4850 = vmatpush1.bf16.msra.mxu0 0
        %4851 = vmatprep.subr.bf16.mxu0 0
        %4852 = vmatpush1.bf16.msra.mxu0 0
        %4853 = vmatprep.subr.bf16.mxu0 0
        %4854 = vmatpush1.bf16.msra.mxu0 0
        %4855 = vmatprep.subr.bf16.mxu0 0
        %4856 = vmatpush1.bf16.msra.mxu0 0
        %4857 = vmatprep.subr.bf16.mxu0 0
        %4858 = vmatpush1.bf16.msra.mxu0 0
        %4859 = vmatprep.mubr.bf16.mxu0 0
        %4860 = vmatmul.mubr.bf16.gmra.mrb[0].mxu0 %v4816
        %v4861 = vpop.f32.mrb[0].mxu0
        %v4862 = vadd.f32 0.0, %v4861
        %v4863 = vpop.f32.mrb[0].mxu0
        %v4864 = vpop.f32.mrb[0].mxu0
        %v4865 = vadd.f32 0.0, %v4864
        %v4866 = vpop.f32.mrb[0].mxu0
        %4867 = vmatprep.mubr.bf16.mxu0 0
        %4868 = vmatmul.mubr.bf16.gmra.mrb[0].mxu0 %v4819
        %v4869 = vpop.f32.mrb[0].mxu0
        %v4870 = vadd.f32 0.0, %v4869
        %v4871 = vpop.f32.mrb[0].mxu0
        %v4872 = vpop.f32.mrb[0].mxu0
        %v4873 = vadd.f32 0.0, %v4872
        %v4874 = vpop.f32.mrb[0].mxu0
        %4875 = vmatprep.mubr.bf16.mxu0 0
        %4876 = vmatmul.mubr.bf16.gmra.mrb[0].mxu0 %v4822
        %v4877 = vpop.f32.mrb[0].mxu0
        %v4878 = vadd.f32 0.0, %v4877
        %v4879 = vpop.f32.mrb[0].mxu0
        %v4880 = vpop.f32.mrb[0].mxu0
        %v4881 = vadd.f32 0.0, %v4880
        %v4882 = vpop.f32.mrb[0].mxu0
        %4883 = vmatprep.mubr.bf16.mxu0 0
        %4884 = vmatmul.mubr.bf16.gmra.mrb[0].mxu0 %v4825
        %v4885 = vpop.f32.mrb[0].mxu0
        %v4886 = vadd.f32 0.0, %v4885
        %v4887 = vpop.f32.mrb[0].mxu0
        %v4888 = vpop.f32.mrb[0].mxu0
        %v4889 = vadd.f32 0.0, %v4888
        %v4890 = vpop.f32.mrb[0].mxu0
        %4891 = vdwg.mxu0
        %v4892 = vadd.f32 %v4765, %v4862
        %v4893 = vadd.f32 %v4766, %v4865
        %v4894 = vadd.f32 %v4767, %v4870
        %v4895 = vadd.f32 %v4768, %v4873
        %v4896 = vadd.f32 %v4769, %v4878
        %v4897 = vadd.f32 %v4770, %v4881
        %v4898 = vadd.f32 %v4771, %v4886
        %v4899 = vadd.f32 %v4772, %v4889
        %s4900 = scalar_lea.vmem [#allocation19], 192
        %v4901 = vld [vmem:[%s4900] sm:$0xff]
        %v4902 = vld [vmem:[%s4900 + $0x8] sm:$0xff]
        %v4903 = vld [vmem:[%s4900 + $0x10] sm:$0xff]
        %v4904 = vld [vmem:[%s4900 + $0x18] sm:$0xff]
        %v4905 = vld [vmem:[%s4900 + $0x20] sm:$0xff]
        %v4906 = vld [vmem:[%s4900 + $0x28] sm:$0xff]
        %v4907 = vld [vmem:[%s4900 + $0x30] sm:$0xff]
        %v4908 = vld [vmem:[%s4900 + $0x38] sm:$0xff]
        %4910 = vset.pattern.permute.xlu0 0
        %4911 = vperm.xlu0 %4910, %v4901
        %v4912 = vpop.permute.xlu0 %4911
        %4915 = vset.pattern.permute.xlu0 0
        %4916 = vperm.xlu0 %4915, %v4902
        %v4917 = vpop.permute.xlu0 %4916
        %4920 = vset.pattern.permute.xlu0 0
        %4921 = vperm.xlu0 %4920, %v4903
        %v4922 = vpop.permute.xlu0 %4921
        %4925 = vset.pattern.permute.xlu0 0
        %4926 = vperm.xlu0 %4925, %v4904
        %v4927 = vpop.permute.xlu0 %4926
        %4930 = vset.pattern.permute.xlu0 0
        %4931 = vperm.xlu0 %4930, %v4905
        %v4932 = vpop.permute.xlu0 %4931
        %4935 = vset.pattern.permute.xlu0 0
        %4936 = vperm.xlu0 %4935, %v4906
        %v4937 = vpop.permute.xlu0 %4936
        %4940 = vset.pattern.permute.xlu0 0
        %4941 = vperm.xlu0 %4940, %v4907
        %v4942 = vpop.permute.xlu0 %4941
        %4945 = vset.pattern.permute.xlu0 0
        %4946 = vperm.xlu0 %4945, %v4908
        %v4947 = vpop.permute.xlu0 %4946
        %v4949 = vadd.f32 %v4892, %v4912
        %v4950 = vadd.f32 %v4893, %v4917
        %v4951 = vadd.f32 %v4894, %v4922
        %v4952 = vadd.f32 %v4895, %v4927
        %v4953 = vadd.f32 %v4896, %v4932
        %v4954 = vadd.f32 %v4897, %v4937
        %v4955 = vadd.f32 %v4898, %v4942
        %v4956 = vadd.f32 %v4899, %v4947
        %v4957 = vtanh.pop %v4949
        %v4958 = vtanh.pop %v4950
        %v4959 = vtanh.pop %v4951
        %v4960 = vtanh.pop %v4952
        %v4961 = vxor.u32 %v4953, 2147483648
        %v4962 = vxor.u32 %v4954, 2147483648
        %v4963 = vxor.u32 %v4955, 2147483648
        %v4964 = vxor.u32 %v4956, 2147483648
        %v4965 = vmul.f32 %v4961, 1.442695
        %v4966 = vpow.pop %v4965
        %v4967 = vmul.f32 %v4962, 1.442695
        %v4968 = vpow.pop %v4967
        %v4969 = vmul.f32 %v4963, 1.442695
        %v4970 = vpow.pop %v4969
        %v4971 = vmul.f32 %v4964, 1.442695
        %v4972 = vpow.pop %v4971
        %v4973 = vadd.f32 %v4966, 1.0
        %v4974 = vadd.f32 %v4968, 1.0
        %v4975 = vadd.f32 %v4970, 1.0
        %v4976 = vadd.f32 %v4972, 1.0
        %v4977 = vrcp.pop %v4973
        %v4978 = vmul.f32 1.0, %v4977
        %v4979 = vrcp.pop %v4974
        %v4980 = vmul.f32 1.0, %v4979
        %v4981 = vrcp.pop %v4975
        %v4982 = vmul.f32 1.0, %v4981
        %v4983 = vrcp.pop %v4976
        %v4984 = vmul.f32 1.0, %v4983
        %v4985 = vmul.f32 %v4957, %v4978
        %v4986 = vmul.f32 %v4958, %v4980
        %v4987 = vmul.f32 %v4959, %v4982
        %v4988 = vmul.f32 %v4960, %v4984
        %s4989 = scalar_lea.vmem [#allocation20], 96
        %v4990 = vld [vmem:[%s4989] sm:$0xf]
        %v4991 = vld [vmem:[%s4989 + $0x4] sm:$0xf]
        %v4992 = vld [vmem:[%s4989 + $0x8] sm:$0xf]
        %v4993 = vld [vmem:[%s4989 + $0xc] sm:$0xf]
        %v4994 = vld [vmem:[%s4989 + $0x10] sm:$0xf]
        %v4995 = vld [vmem:[%s4989 + $0x14] sm:$0xf]
        %v4996 = vld [vmem:[%s4989 + $0x18] sm:$0xf]
        %v4997 = vld [vmem:[%s4989 + $0x1c] sm:$0xf]
        %v4998 = vpack.c.bf16 %v4986, %v4985
        %v4999 = vpack.c.bf16 %v4988, %v4987
        %s5000 = scalar_lea.vmem [#allocation22], 192
        %v5001 = vld [vmem:[%s5000] sm:$0xff]
        %v5002 = vld [vmem:[%s5000 + $0x8] sm:$0xff]
        %v5003 = vld [vmem:[%s5000 + $0x10] sm:$0xff]
        %v5004 = vld [vmem:[%s5000 + $0x18] sm:$0xff]
        %v5005 = vld [vmem:[%s5000 + $0x20] sm:$0xff]
        %v5006 = vld [vmem:[%s5000 + $0x28] sm:$0xff]
        %v5007 = vld [vmem:[%s5000 + $0x30] sm:$0xff]
        %v5008 = vld [vmem:[%s5000 + $0x38] sm:$0xff]
        %5010 = vset.pattern.permute.xlu0 0
        %5011 = vperm.xlu0 %5010, %v5001
        %v5012 = vpop.permute.xlu0 %5011
        %5014 = vset.pattern.permute.xlu0 0
        %5015 = vperm.xlu0 %5014, %v5002
        %v5016 = vpop.permute.xlu0 %5015
        %5018 = vset.pattern.permute.xlu0 0
        %5019 = vperm.xlu0 %5018, %v5003
        %v5020 = vpop.permute.xlu0 %5019
        %5022 = vset.pattern.permute.xlu0 0
        %5023 = vperm.xlu0 %5022, %v5004
        %v5024 = vpop.permute.xlu0 %5023
        %5026 = vset.pattern.permute.xlu0 0
        %5027 = vperm.xlu0 %5026, %v5005
        %v5028 = vpop.permute.xlu0 %5027
        %5031 = vset.pattern.permute.xlu0 0
        %5032 = vperm.xlu0 %5031, %v5006
        %v5033 = vpop.permute.xlu0 %5032
        %5036 = vset.pattern.permute.xlu0 0
        %5037 = vperm.xlu0 %5036, %v5007
        %v5038 = vpop.permute.xlu0 %5037
        %5041 = vset.pattern.permute.xlu0 0
        %5042 = vperm.xlu0 %5041, %v5008
        %v5043 = vpop.permute.xlu0 %5042
        %v5053 = vunpack.c.l.b16 %v4990
        %v5054 = vunpack.c.l.b16 %v4991
        %v5055 = vunpack.c.l.b16 %v4992
        %v5056 = vunpack.c.l.b16 %v4993
        %v5057 = vunpack.c.l.b16 %v4994
        %v5058 = vunpack.c.l.b16 %v4995
        %v5059 = vunpack.c.l.b16 %v4996
        %v5060 = vunpack.c.l.b16 %v4997
        %v5061 = vpack.c.b16 %v5054, %v5053
        %v5062 = vpack.c.b16 %v5056, %v5055
        %v5063 = vpack.c.b16 %v5058, %v5057
        %v5064 = vpack.c.b16 %v5060, %v5059
        %v5066 = vsel %vm1115, %v5061, 0
        %v5069 = vsel %vm1115, %v5062, 0
        %v5072 = vsel %vm1115, %v5063, 0
        %v5075 = vsel %vm1115, %v5064, 0
        %5077 = vmatprep.subr.bf16.mxu0 0
        %5078 = vmatpush1.bf16.msra.mxu0 %v4998
        %5079 = vmatprep.subr.bf16.mxu0 0
        %5080 = vmatpush1.bf16.msra.mxu0 %v4999
        %5081 = vmatprep.subr.bf16.mxu0 0
        %5082 = vmatpush1.bf16.msra.mxu0 0
        %5083 = vmatprep.subr.bf16.mxu0 0
        %5084 = vmatpush1.bf16.msra.mxu0 0
        %5085 = vmatprep.subr.bf16.mxu0 0
        %5086 = vmatpush1.bf16.msra.mxu0 0
        %5087 = vmatprep.subr.bf16.mxu0 0
        %5088 = vmatpush1.bf16.msra.mxu0 0
        %5089 = vmatprep.subr.bf16.mxu0 0
        %5090 = vmatpush1.bf16.msra.mxu0 0
        %5091 = vmatprep.subr.bf16.mxu0 0
        %5092 = vmatpush1.bf16.msra.mxu0 0
        %5093 = vmatprep.subr.bf16.mxu0 0
        %5094 = vmatpush1.bf16.msra.mxu0 0
        %5095 = vmatprep.subr.bf16.mxu0 0
        %5096 = vmatpush1.bf16.msra.mxu0 0
        %5097 = vmatprep.subr.bf16.mxu0 0
        %5098 = vmatpush1.bf16.msra.mxu0 0
        %5099 = vmatprep.subr.bf16.mxu0 0
        %5100 = vmatpush1.bf16.msra.mxu0 0
        %5101 = vmatprep.subr.bf16.mxu0 0
        %5102 = vmatpush1.bf16.msra.mxu0 0
        %5103 = vmatprep.subr.bf16.mxu0 0
        %5104 = vmatpush1.bf16.msra.mxu0 0
        %5105 = vmatprep.subr.bf16.mxu0 0
        %5106 = vmatpush1.bf16.msra.mxu0 0
        %5107 = vmatprep.subr.bf16.mxu0 0
        %5108 = vmatpush1.bf16.msra.mxu0 0
        %5109 = vmatprep.mubr.bf16.mxu0 0
        %5110 = vmatmul.mubr.bf16.gmra.mrb[0].mxu0 %v5066
        %v5111 = vpop.f32.mrb[0].mxu0
        %v5112 = vpop.f32.mrb[0].mxu0
        %v5113 = vpop.f32.mrb[0].mxu0
        %v5114 = vpop.f32.mrb[0].mxu0
        %5115 = vmatprep.mubr.bf16.mxu0 0
        %5116 = vmatmul.mubr.bf16.gmra.mrb[0].mxu0 %v5069
        %v5117 = vpop.f32.mrb[0].mxu0
        %v5118 = vpop.f32.mrb[0].mxu0
        %v5119 = vpop.f32.mrb[0].mxu0
        %v5120 = vpop.f32.mrb[0].mxu0
        %5121 = vmatprep.mubr.bf16.mxu0 0
        %5122 = vmatmul.mubr.bf16.gmra.mrb[0].mxu0 %v5072
        %v5123 = vpop.f32.mrb[0].mxu0
        %v5124 = vadd.f32 %v5028, %v5123
        %v5125 = vpop.f32.mrb[0].mxu0
        %v5126 = vpop.f32.mrb[0].mxu0
        %v5127 = vadd.f32 %v5033, %v5126
        %v5128 = vpop.f32.mrb[0].mxu0
        %5129 = vmatprep.mubr.bf16.mxu0 0
        %5130 = vmatmul.mubr.bf16.gmra.mrb[0].mxu0 %v5075
        %v5131 = vpop.f32.mrb[0].mxu0
        %v5132 = vadd.f32 %v5038, %v5131
        %v5133 = vpop.f32.mrb[0].mxu0
        %v5134 = vpop.f32.mrb[0].mxu0
        %v5135 = vadd.f32 %v5043, %v5134
        %v5136 = vpop.f32.mrb[0].mxu0
        %5137 = vdwg.mxu0
        %5142 = vrot.lane.b32.xlu0 %v5124, 6
        %v5143 = vpop.permute.xlu0 %5142
        %5144 = vrot.lane.b32.xlu0 %v5127, 6
        %v5145 = vpop.permute.xlu0 %5144
        %5146 = vrot.lane.b32.xlu0 %v5132, 6
        %v5147 = vpop.permute.xlu0 %5146
        %5148 = vrot.lane.b32.xlu0 %v5135, 6
        %v5149 = vpop.permute.xlu0 %5148
        %v5154 = vadd.f32 %v4268, %v5143
        %v5155 = vadd.f32 %v4269, %v5143
        %v5156 = vadd.f32 %v4270, %v5145
        %v5157 = vadd.f32 %v4271, %v5145
        %v5158 = vadd.f32 %v4272, %v5147
        %v5159 = vadd.f32 %v4273, %v5147
        %v5160 = vadd.f32 %v4274, %v5149
        %v5161 = vadd.f32 %v4275, %v5149
        %5162 = vrot.lane.b32.xlu0 %v918, 6
        %v5163 = vpop.permute.xlu0 %5162
        %v5165 = vmul.f32 %v5154, %v5163
        %v5166 = vmul.f32 %v5155, %v5163
        %v5167 = vmul.f32 %v5156, %v5163
        %v5168 = vmul.f32 %v5157, %v5163
        %v5169 = vmul.f32 %v5158, %v5163
        %v5170 = vmul.f32 %v5159, %v5163
        %v5171 = vmul.f32 %v5160, %v5163
        %v5172 = vmul.f32 %v5161, %v5163
        %v5173 = vld [vmem:[#allocation23] sm:$0x3]
        %v5174 = vpack.c.bf16 %v5167, %v5165
        %v5175 = vpack.c.bf16 %v5168, %v5166
        %v5176 = vpack.c.bf16 %v5171, %v5169
        %v5177 = vpack.c.bf16 %v5172, %v5170
        %v5178 = vld [vmem:[#allocation25] sm:$0xf]
        %5180 = vset.pattern.permute.xlu0 0
        %5181 = vperm.xlu0 %5180, %v5178
        %v5182 = vpop.permute.xlu0 %5181
        %5188 = vrot.lane.b32.xlu0 %v5174, 122
        %v5189 = vpop.permute.xlu0 %5188
        %5190 = vrot.lane.b32.xlu0 %v5175, 122
        %v5191 = vpop.permute.xlu0 %5190
        %5192 = vrot.lane.b32.xlu0 %v5176, 122
        %v5193 = vpop.permute.xlu0 %5192
        %5194 = vrot.lane.b32.xlu0 %v5177, 122
        %v5195 = vpop.permute.xlu0 %5194
        %v5196 = vsel %vm2685, %v5189, %v5191
        %v5197 = vsel %vm2685, %v5193, %v5195
        %v5201 = vsel %vm1115, %v5173, 0
        %5203 = vmatprep.subr.bf16.mxu0 0
        %5204 = vmatpush1.bf16.msra.mxu0 %v5196
        %5205 = vmatprep.subr.bf16.mxu0 0
        %5206 = vmatpush1.bf16.msra.mxu0 %v5197
        %5207 = vmatprep.subr.bf16.mxu0 0
        %5208 = vmatpush1.bf16.msra.mxu0 0
        %5209 = vmatprep.subr.bf16.mxu0 0
        %5210 = vmatpush1.bf16.msra.mxu0 0
        %5211 = vmatprep.subr.bf16.mxu0 0
        %5212 = vmatpush1.bf16.msra.mxu0 0
        %5213 = vmatprep.subr.bf16.mxu0 0
        %5214 = vmatpush1.bf16.msra.mxu0 0
        %5215 = vmatprep.subr.bf16.mxu0 0
        %5216 = vmatpush1.bf16.msra.mxu0 0
        %5217 = vmatprep.subr.bf16.mxu0 0
        %5218 = vmatpush1.bf16.msra.mxu0 0
        %5219 = vmatprep.subr.bf16.mxu0 0
        %5220 = vmatpush1.bf16.msra.mxu0 0
        %5221 = vmatprep.subr.bf16.mxu0 0
        %5222 = vmatpush1.bf16.msra.mxu0 0
        %5223 = vmatprep.subr.bf16.mxu0 0
        %5224 = vmatpush1.bf16.msra.mxu0 0
        %5225 = vmatprep.subr.bf16.mxu0 0
        %5226 = vmatpush1.bf16.msra.mxu0 0
        %5227 = vmatprep.subr.bf16.mxu0 0
        %5228 = vmatpush1.bf16.msra.mxu0 0
        %5229 = vmatprep.subr.bf16.mxu0 0
        %5230 = vmatpush1.bf16.msra.mxu0 0
        %5231 = vmatprep.subr.bf16.mxu0 0
        %5232 = vmatpush1.bf16.msra.mxu0 0
        %5233 = vmatprep.subr.bf16.mxu0 0
        %5234 = vmatpush1.bf16.msra.mxu0 0
        %5235 = vmatprep.mubr.bf16.mxu0 0
        %5236 = vmatmul.mubr.bf16.gmra.mrb[0].mxu0 %v5201
        %v5237 = vpop.f32.mrb[0].mxu0
        %v5238 = vadd.f32 %v5182, %v5237
        %v5239 = vpop.f32.mrb[0].mxu0
        %v5240 = vpop.f32.mrb[0].mxu0
        %v5241 = vpop.f32.mrb[0].mxu0
        %5242 = vdwg.mxu0
        %v5244 = vmul.f32 %v5238, %v918
        %v5245 = vld [vmem:[%s774] sm:$0xf]
        %v5246 = vmul.f32 %v5245, %v918
        %v5247 = vadd.f32 %v5244, %v5246
        %5248 = vst [vmem:[%s879] sm:$0xf] %v5247
        %s5249 = sand.u32 %s439, 1
        %s5250 = scalar_lea.sflag [#allocation4], %s5249
        %s5251 = sand.u32 %s439, 1
        %s5252 = smul.addr %s5251, 4
        %s5253 = scalar_lea.vmem [#allocation26], %s5252
        // Predicated region
        $region141: #{residual_coupling_block_forward.4} parent=79 // pred_check
          %p5254 = pneg %p449
        $region142: #{residual_coupling_block_forward.4} parent=79 // pred_check_branch
          %5256 = sbr.rel (%p5254) target = $region144
        $region143: #{residual_coupling_block_forward.4} parent=79 // pred_region
          %s5258 = ssub.s32 64, 64
          %5259 = vsyncadd %s5250, %s5258
          %s5260 = smul.addr %s49, 2
          %s5261 = sadd.s32 %s50, %s5260
          %s5262 = smul.addr %s5261, 64
          %s5263 = scalar_lea.hbm %s15, %s5262
          %s5265 = sshll.u32 %s5253, 4
          %s5266 = int_to_ptr.vmem [resolvable:$true] %s5265
          %5268 = dma.vmem_to_hbm [thread:$0]  %s5266, 64, %s5263, %s5250
        $region144: #{residual_coupling_block_forward.4} parent=79 // pred_fallthru
          _
      $region80: #{residual_coupling_block_forward.4} parent=5 // pred_fallthru
        _
      %p5269 = scmp.le.s32.totalorder 2, %s40
      // Predicated region
      $region145: #{residual_coupling_block_forward.4} parent=5 // pred_check
        %p5270 = pneg %p5269
      $region146: #{residual_coupling_block_forward.4} parent=5 // pred_check_branch
        %5272 = sbr.rel (%p5270) target = $region148
      $region147: #{residual_coupling_block_forward.4} parent=5 // pred_region
        %s5273 = ssub.s32 %s40, 2
        // Predicated region
        $region149: #{residual_coupling_block_forward.4} parent=147 // pred_check
          %p5274 = pneg %p455
        $region150: #{residual_coupling_block_forward.4} parent=147 // pred_check_branch
          %5276 = sbr.rel (%p5274) target = $region152
        $region151: #{residual_coupling_block_forward.4} parent=147 // pred_region
          %s5277 = sand.u32 %s440, 1
          %s5278 = scalar_lea.sflag [#allocation4], %s5277
          %s5279 = sand.u32 %s440, 1
          %s5280 = smul.addr %s5279, 4
          %s5281 = scalar_lea.vmem [#allocation26], %s5280
          %5282 = dma.done %s5278, 64
        $region152: #{residual_coupling_block_forward.4} parent=147 // pred_fallthru
          _
      $region148: #{residual_coupling_block_forward.4} parent=5 // pred_fallthru
        _
    $region6: #{residual_coupling_block_forward.4} parent=1 // loop_footer
      %s44 = sadd.s32 1, %s40
    $region7: #{residual_coupling_block_forward.4} parent=1 // loop_footer_branch
      %39 = sbr.rel target = $region3
    $region8: #{residual_coupling_block_forward.4} parent=1 // loop_exit
      _
    %5283 = vsyncpa [#allocation3], 1
    %s5284 = scalar_lea.sflag [#allocation3], 1
    %5285 = vsyncpa %s5284, 1
    %5286 = vsyncpa [#allocation6], 1
    %s5287 = scalar_lea.sflag [#allocation6], 1
    %5288 = vsyncpa %s5287, 1
    %5289 = vsyncpa [#allocation9], 1
    %s5290 = scalar_lea.sflag [#allocation9], 1
    %5291 = vsyncpa %s5290, 1
    %5292 = vsyncpa [#allocation12], 1
    %s5293 = scalar_lea.sflag [#allocation12], 1
    %5294 = vsyncpa %s5293, 1
    %5295 = vsyncpa [#allocation15], 1
    %5296 = vsyncpa [#allocation18], 1
    %5297 = vsyncpa [#allocation21], 1
    %5298 = vsyncpa [#allocation24], 1
    %5299 = vsyncpa [#allocation4], 1
    %s5300 = scalar_lea.sflag [#allocation4], 1
    %5301 = vsyncpa %s5300, 1

</llo_original>
